<compile_context>
chip_gen: v7x
topology: tpu7x:2x2x1
jax: 0.10.0
libtpu: 0.0.40
codegen_flags: <defaults>
</compile_context>

<pallas_src>
import jax
import jax.numpy as jnp
from jax.experimental import pallas as pl
from jax.experimental.pallas import tpu as pltpu


# ---------------------------------------------------------------------------
# Fused forward kernel: PointNet shape encoder + pose head.
# ---------------------------------------------------------------------------
def _pose_estimator_kernel(pts_ref, img_ref,
                           w1_ref, b1_ref, w2_ref, b2_ref, w3_ref, b3_ref,
                           wsf_ref, bsf_ref, wcd_ref, bcd_ref,
                           w1cd_ref, w1img_ref, b1c_ref,
                           w2c_ref, b2c_ref, w3c_ref, b3c_ref,
                           wh_ref, bh_ref,
                           out_ref,
                           sraw_ref, uv_ref):
    B = out_ref.shape[0]
    BN = pts_ref.shape[0]
    N = BN // B                       # points per cloud (static)
    D = img_ref.shape[1]              # img_feature_dim (static)

    relu = lambda v: jnp.maximum(v, 0.0)

    def mm(a, w_ref, b_ref):
        # f32 accumulation on the MXU.  For bit-parity with PyTorch fp32 add
        # precision=jax.lax.Precision.HIGHEST; default kept for speed.
        return jnp.dot(a, w_ref[...], preferred_element_type=jnp.float32) + b_ref[...]

    # ---- PointNet (Conv1d kernel=1 == per-point Linear, BN folded) ----------
    # Layer 1 (K=3) on the VPU: three broadcast multiply-adds.  Avoids an MXU
    # pass whose fill/drain dominates its K=3 useful work and avoids reshapes.
    x = pts_ref[...]                                     # (B*N, 3)
    w1 = w1_ref[...]                                     # (3, 64)
    h = relu(x[:, 0:1] * w1[0:1, :]
             + x[:, 1:2] * w1[1:2, :]
             + x[:, 2:3] * w1[2:3, :]
             + b1_ref[...])                              # (B*N, 64)
    h = relu(mm(h, w2_ref, b2_ref))                      # (B*N, 128)
    h = mm(h, w3_ref, b3_ref)                            # (B*N, S)  bn3, no relu

    # torch.max(x, 2): per-batch max over N=64-row, sublane-tile-aligned slices
    # written into a VMEM scratch — no (B*N,S)->(B,N,S) reshape materialization.
    for b in range(B):                                   # B small & static
        sraw_ref[b:b + 1, :] = jnp.max(h[b * N:(b + 1) * N, :],
                                       axis=0, keepdims=True)
    shape_raw = sraw_ref[...]                            # (B, S)

    # ---- Pose head ----------------------------------------------------------
    img = img_ref[...]                                   # (B, D)
    sf = relu(mm(shape_raw, wsf_ref, bsf_ref))           # shape_fc -> (B, D)

    # corr_fc & diff_fc fused into one matmul with a block-diagonal weight.
    # [img*sf | img-sf] assembled with 128-lane-aligned stores (no concatenate).
    uv_ref[:, 0:D] = img * sf
    uv_ref[:, D:2 * D] = img - sf
    cd = relu(mm(uv_ref[...], wcd_ref, bcd_ref))         # (B, D) = [corr | diff]

    # compress[0]: cat(corr, diff, img) is never built — split (2D,800) weight
    # into row blocks and sum the partial products in one f32 accumulator.
    x1 = relu(jnp.dot(cd, w1cd_ref[...], preferred_element_type=jnp.float32)
              + jnp.dot(img, w1img_ref[...], preferred_element_type=jnp.float32)
              + b1c_ref[...])                            # (B, 800)
    x2 = relu(mm(x1, w2c_ref, b2c_ref))                  # (B, 400)
    x3 = relu(mm(x2, w3c_ref, b3c_ref))                  # (B, 200)

    # six heads fused along lanes and zero-padded to 128 -> unmasked full store.
    out_ref[...] = mm(x3, wh_ref, bh_ref)                # (B, 128)


def pose_estimator_forward(pts_flat, img, params, out_pad):
    B, D = img.shape
    S = params["wsf"].shape[0]
    args = (pts_flat, img,
            params["w1"], params["b1"], params["w2"], params["b2"],
            params["w3"], params["b3"],
            params["wsf"], params["bsf"], params["wcd"], params["bcd"],
            params["w1cd"], params["w1img"], params["b1c"],
            params["w2c"], params["b2c"], params["w3c"], params["b3c"],
            params["wh"], params["bh"])
    return pl.pallas_call(
        _pose_estimator_kernel,
        out_shape=jax.ShapeDtypeStruct((B, out_pad), jnp.float32),
        # Gridless whole-array VMEM residency: no double-buffering of the 21
        # operands (≈4 MB of weights -> well inside every generation's VMEM).
        in_specs=[pl.BlockSpec(memory_space=pltpu.MemorySpace.VMEM)
                  for _ in args],
        out_specs=pl.BlockSpec(memory_space=pltpu.MemorySpace.VMEM),
        scratch_shapes=[pltpu.VMEM((B, S), jnp.float32),        # shape_raw
                        pltpu.VMEM((B, 2 * D), jnp.float32)],   # [img*sf | img-sf]
    )(*args)


# ---------------------------------------------------------------------------
# Deterministic parameter construction (synthetic weights, BN folded).
# ---------------------------------------------------------------------------
def _fold_bn(w, b, gamma, beta, mean, var, eps=1e-5):
    scale = gamma / jnp.sqrt(var + eps)
    return w * scale[None, :], (b - mean) * scale + beta


def _init_fc_bn(key, c_in, c_out):
    kw, kb, kg, kbe, km, kv = jax.random.split(key, 6)
    w = 0.05 * jax.random.normal(kw, (c_in, c_out), jnp.float32)
    b = 0.05 * jax.random.normal(kb, (c_out,), jnp.float32)
    gamma = 1.0 + 0.1 * jax.random.normal(kg, (c_out,), jnp.float32)
    beta = 0.05 * jax.random.normal(kbe, (c_out,), jnp.float32)
    mean = 0.1 * jax.random.normal(km, (c_out,), jnp.float32)
    var = 0.9 + 0.2 * jax.random.uniform(kv, (c_out,), jnp.float32)
    wf, bf = _fold_bn(w, b, gamma, beta, mean, var)
    return wf, bf.reshape(1, c_out)


def _init_fc(key, c_in, c_out):
    kw, kb = jax.random.split(key)
    w = 0.05 * jax.random.normal(kw, (c_in, c_out), jnp.float32)
    b = 0.05 * jax.random.normal(kb, (c_out,), jnp.float32)
    return w, b.reshape(1, c_out)


class PoseEstimatorPallas:
    def __init__(self, img_feature_dim=256, shape_feature_dim=128,
                 azi_classes=24, ele_classes=12, inp_classes=24, seed=0):
        D, S = img_feature_dim, shape_feature_dim   # D % 128 == 0 for lane-aligned splits
        ks = jax.random.split(jax.random.PRNGKey(seed), 16)
        p = {}
        # PointNet: Conv1d(3,64,1) / Conv1d(64,128,1) / Conv1d(128,S,1), BN folded
        p["w1"], p["b1"] = _init_fc_bn(ks[0], 3, 64)
        p["w2"], p["b2"] = _init_fc_bn(ks[1], 64, 128)
        p["w3"], p["b3"] = _init_fc_bn(ks[2], 128, S)
        # shape_fc
        p["wsf"], p["bsf"] = _init_fc_bn(ks[3], S, D)
        # corr_fc / diff_fc -> one block-diagonal (2D, D) weight
        wc, bc = _init_fc_bn(ks[4], D, D // 2)
        wd, bd = _init_fc_bn(ks[5], D, D // 2)
        wcd = jnp.zeros((2 * D, D), jnp.float32)
        wcd = wcd.at[:D, :D // 2].set(wc)      # rows for img*sf  -> corr cols
        wcd = wcd.at[D:, D // 2:].set(wd)      # rows for img-sf  -> diff cols
        p["wcd"] = wcd
        p["bcd"] = jnp.concatenate([bc, bd], axis=1)
        # compress: 2D -> 800 -> 400 -> 200 (Linear+BN+ReLU).  First weight is
        # split into [corr|diff] rows and img rows (cat order: corr, diff, img).
        w1c, b1c = _init_fc_bn(ks[6], 2 * D, 800)
        p["w1cd"], p["w1img"], p["b1c"] = w1c[:D], w1c[D:], b1c
        p["w2c"], p["b2c"] = _init_fc_bn(ks[7], 800, 400)
        p["w3c"], p["b3c"] = _init_fc_bn(ks[8], 400, 200)
        # six heads fused along the output axis, zero-padded to 128 lanes
        self.head_dims = (azi_classes, ele_classes, inp_classes,
                          azi_classes, ele_classes, inp_classes)
        heads = [_init_fc(ks[9 + i], 200, d) for i, d in enumerate(self.head_dims)]
        wh = jnp.concatenate([w for w, _ in heads], axis=1)     # (200, 120)
        bh = jnp.concatenate([b for _, b in heads], axis=1)     # (1, 120)
        self.out_width = wh.shape[1]
        self.out_pad = ((self.out_width + 127) // 128) * 128
        pad = self.out_pad - self.out_width
        p["wh"] = jnp.pad(wh, ((0, 0), (0, pad)))
        p["bh"] = jnp.pad(bh, ((0, 0), (0, pad)))
        self.params = p

    def __call__(self, img_feature, shape_points):
        # shape_points: (B, 3, N_points) — PyTorch Conv1d NCL layout.
        B, C, N = shape_points.shape
        # Single tiny XLA copy to per-point rows (B*N, 3); keeps sub-tile (3,N)
        # transposes / reshapes out of the Pallas kernel.
        pts = jnp.transpose(shape_points, (0, 2, 1)).reshape(B * N, C)
        fused = pose_estimator_forward(pts, img_feature, self.params, self.out_pad)
        # Slice heads from the first `out_width` (unpadded) columns.
        outs, off = [], 0
        for d in self.head_dims:
            outs.append(fused[:, off:off + d])
            off += d
        return outs  # [cls_azi, cls_ele, cls_inp, reg_azi, reg_ele, reg_inp]


if __name__ == "__main__":
    B, N_PTS = 8, 64
    D_IMG, D_SHAPE = 256, 128
    k_im, k_pts = jax.random.split(jax.random.PRNGKey(0))
    img_feature = jax.random.normal(k_im, (B, D_IMG), jnp.float32)
    shape_points = jax.random.normal(k_pts, (B, 3, N_PTS), jnp.float32)

    model = PoseEstimatorPallas(img_feature_dim=D_IMG, shape_feature_dim=D_SHAPE,
                                azi_classes=24, ele_classes=12, inp_classes=24)
    outs = model(img_feature, shape_points)
    outs = [jax.block_until_ready(o) for o in outs]

    expected = [(B, 24), (B, 12), (B, 24), (B, 24), (B, 12), (B, 24)]
    assert [tuple(o.shape) for o in outs] == expected, [o.shape for o in outs]
    assert all(bool(jnp.all(jnp.isfinite(o))) for o in outs)
    print("KERNEL_OK")
</pallas_src>

<mosaic_0001>
module attributes {stable_mosaic.version = 11 : i64} {
  func.func @_pose_estimator_kernel(%arg0: memref<512x3xf32, #tpu.memory_space<vmem>>, %arg1: memref<8x256xf32, #tpu.memory_space<vmem>>, %arg2: memref<3x64xf32, #tpu.memory_space<vmem>>, %arg3: memref<1x64xf32, #tpu.memory_space<vmem>>, %arg4: memref<64x128xf32, #tpu.memory_space<vmem>>, %arg5: memref<1x128xf32, #tpu.memory_space<vmem>>, %arg6: memref<128x128xf32, #tpu.memory_space<vmem>>, %arg7: memref<1x128xf32, #tpu.memory_space<vmem>>, %arg8: memref<128x256xf32, #tpu.memory_space<vmem>>, %arg9: memref<1x256xf32, #tpu.memory_space<vmem>>, %arg10: memref<512x256xf32, #tpu.memory_space<vmem>>, %arg11: memref<1x256xf32, #tpu.memory_space<vmem>>, %arg12: memref<256x800xf32, #tpu.memory_space<vmem>>, %arg13: memref<256x800xf32, #tpu.memory_space<vmem>>, %arg14: memref<1x800xf32, #tpu.memory_space<vmem>>, %arg15: memref<800x400xf32, #tpu.memory_space<vmem>>, %arg16: memref<1x400xf32, #tpu.memory_space<vmem>>, %arg17: memref<400x200xf32, #tpu.memory_space<vmem>>, %arg18: memref<1x200xf32, #tpu.memory_space<vmem>>, %arg19: memref<200x128xf32, #tpu.memory_space<vmem>>, %arg20: memref<1x128xf32, #tpu.memory_space<vmem>>, %arg21: memref<8x128xf32, #tpu.memory_space<vmem>>, %arg22: memref<8x128xf32, #tpu.memory_space<vmem>>, %arg23: memref<8x512xf32, #tpu.memory_space<vmem>>) attributes {dimension_semantics = [], scalar_prefetch = 0 : i64, scratch_operands = 2 : i64, tpu.core_type = #tpu.core_type<tc>} {
    %c0 = arith.constant 0 : index
    %c0_0 = arith.constant 0 : index
    %0 = vector.load %arg0[%c0, %c0_0] : memref<512x3xf32, #tpu.memory_space<vmem>>, vector<512x3xf32>
    %c0_1 = arith.constant 0 : index
    %c0_2 = arith.constant 0 : index
    %1 = vector.load %arg2[%c0_1, %c0_2] : memref<3x64xf32, #tpu.memory_space<vmem>>, vector<3x64xf32>
    %2 = vector.extract_strided_slice %0 {offsets = [0, 0], sizes = [512, 1], strides = [1, 1]} : vector<512x3xf32> to vector<512x1xf32>
    %3 = vector.extract_strided_slice %1 {offsets = [0, 0], sizes = [1, 64], strides = [1, 1]} : vector<3x64xf32> to vector<1x64xf32>
    %4 = vector.broadcast %2 : vector<512x1xf32> to vector<512x64xf32>
    %5 = vector.broadcast %3 : vector<1x64xf32> to vector<512x64xf32>
    %6 = arith.mulf %4, %5 : vector<512x64xf32>
    %7 = vector.extract_strided_slice %0 {offsets = [0, 1], sizes = [512, 1], strides = [1, 1]} : vector<512x3xf32> to vector<512x1xf32>
    %8 = vector.extract_strided_slice %1 {offsets = [1, 0], sizes = [1, 64], strides = [1, 1]} : vector<3x64xf32> to vector<1x64xf32>
    %9 = vector.broadcast %7 : vector<512x1xf32> to vector<512x64xf32>
    %10 = vector.broadcast %8 : vector<1x64xf32> to vector<512x64xf32>
    %11 = arith.mulf %9, %10 : vector<512x64xf32>
    %12 = arith.addf %6, %11 : vector<512x64xf32>
    %13 = vector.extract_strided_slice %0 {offsets = [0, 2], sizes = [512, 1], strides = [1, 1]} : vector<512x3xf32> to vector<512x1xf32>
    %14 = vector.extract_strided_slice %1 {offsets = [2, 0], sizes = [1, 64], strides = [1, 1]} : vector<3x64xf32> to vector<1x64xf32>
    %15 = vector.broadcast %13 : vector<512x1xf32> to vector<512x64xf32>
    %16 = vector.broadcast %14 : vector<1x64xf32> to vector<512x64xf32>
    %17 = arith.mulf %15, %16 : vector<512x64xf32>
    %18 = arith.addf %12, %17 : vector<512x64xf32>
    %c0_3 = arith.constant 0 : index
    %c0_4 = arith.constant 0 : index
    %19 = vector.load %arg3[%c0_3, %c0_4] : memref<1x64xf32, #tpu.memory_space<vmem>>, vector<1x64xf32>
    %20 = vector.broadcast %19 : vector<1x64xf32> to vector<512x64xf32>
    %21 = arith.addf %18, %20 : vector<512x64xf32>
    %cst = arith.constant 0.000000e+00 : f32
    %22 = vector.broadcast %cst : f32 to vector<512x64xf32>
    %23 = arith.maximumf %21, %22 : vector<512x64xf32>
    %c0_5 = arith.constant 0 : index
    %c0_6 = arith.constant 0 : index
    %24 = vector.load %arg4[%c0_5, %c0_6] : memref<64x128xf32, #tpu.memory_space<vmem>>, vector<64x128xf32>
    %cst_7 = arith.constant dense<0.000000e+00> : vector<512x128xf32>
    %25 = tpu.matmul %23, %24, %cst_7 {dimension_numbers = #tpu.dot_dimension_numbers<[1], [0], [0], [1], [0, 0, 1, 1], [], []>} : vector<512x64xf32>, vector<64x128xf32>, vector<512x128xf32> -> vector<512x128xf32>
    %c0_8 = arith.constant 0 : index
    %c0_9 = arith.constant 0 : index
    %26 = vector.load %arg5[%c0_8, %c0_9] : memref<1x128xf32, #tpu.memory_space<vmem>>, vector<1x128xf32>
    %27 = vector.broadcast %26 : vector<1x128xf32> to vector<512x128xf32>
    %28 = arith.addf %25, %27 : vector<512x128xf32>
    %cst_10 = arith.constant 0.000000e+00 : f32
    %29 = vector.broadcast %cst_10 : f32 to vector<512x128xf32>
    %30 = arith.maximumf %28, %29 : vector<512x128xf32>
    %c0_11 = arith.constant 0 : index
    %c0_12 = arith.constant 0 : index
    %31 = vector.load %arg6[%c0_11, %c0_12] : memref<128x128xf32, #tpu.memory_space<vmem>>, vector<128x128xf32>
    %cst_13 = arith.constant dense<0.000000e+00> : vector<512x128xf32>
    %32 = tpu.matmul %30, %31, %cst_13 {dimension_numbers = #tpu.dot_dimension_numbers<[1], [0], [0], [1], [0, 0, 1, 1], [], []>} : vector<512x128xf32>, vector<128x128xf32>, vector<512x128xf32> -> vector<512x128xf32>
    %c0_14 = arith.constant 0 : index
    %c0_15 = arith.constant 0 : index
    %33 = vector.load %arg7[%c0_14, %c0_15] : memref<1x128xf32, #tpu.memory_space<vmem>>, vector<1x128xf32>
    %34 = vector.broadcast %33 : vector<1x128xf32> to vector<512x128xf32>
    %35 = arith.addf %32, %34 : vector<512x128xf32>
    %36 = vector.extract_strided_slice %35 {offsets = [0, 0], sizes = [64, 128], strides = [1, 1]} : vector<512x128xf32> to vector<64x128xf32>
    %cst_16 = arith.constant dense<0xFF800000> : vector<128xf32>
    %37 = vector.multi_reduction <maximumf>, %36, %cst_16 [0] : vector<64x128xf32> to vector<128xf32>
    %38 = vector.shape_cast %37 : vector<128xf32> to vector<1x128xf32>
    %c0_17 = arith.constant 0 : index
    %c0_18 = arith.constant 0 : index
    %39 = vector.load %arg22[%c0_17, %c0_18] : memref<8x128xf32, #tpu.memory_space<vmem>>, vector<1x128xf32>
    tpu.vector_store %arg22[%c0_17, %c0_18], %38 {strides = array<i32>} : memref<8x128xf32, #tpu.memory_space<vmem>>, vector<1x128xf32>,
    %40 = vector.extract_strided_slice %35 {offsets = [64, 0], sizes = [64, 128], strides = [1, 1]} : vector<512x128xf32> to vector<64x128xf32>
    %cst_19 = arith.constant dense<0xFF800000> : vector<128xf32>
    %41 = vector.multi_reduction <maximumf>, %40, %cst_19 [0] : vector<64x128xf32> to vector<128xf32>
    %42 = vector.shape_cast %41 : vector<128xf32> to vector<1x128xf32>
    %c1 = arith.constant 1 : index
    %c0_20 = arith.constant 0 : index
    %43 = vector.load %arg22[%c1, %c0_20] : memref<8x128xf32, #tpu.memory_space<vmem>>, vector<1x128xf32>
    tpu.vector_store %arg22[%c1, %c0_20], %42 {strides = array<i32>} : memref<8x128xf32, #tpu.memory_space<vmem>>, vector<1x128xf32>,
    %44 = vector.extract_strided_slice %35 {offsets = [128, 0], sizes = [64, 128], strides = [1, 1]} : vector<512x128xf32> to vector<64x128xf32>
    %cst_21 = arith.constant dense<0xFF800000> : vector<128xf32>
    %45 = vector.multi_reduction <maximumf>, %44, %cst_21 [0] : vector<64x128xf32> to vector<128xf32>
    %46 = vector.shape_cast %45 : vector<128xf32> to vector<1x128xf32>
    %c2 = arith.constant 2 : index
    %c0_22 = arith.constant 0 : index
    %47 = vector.load %arg22[%c2, %c0_22] : memref<8x128xf32, #tpu.memory_space<vmem>>, vector<1x128xf32>
    tpu.vector_store %arg22[%c2, %c0_22], %46 {strides = array<i32>} : memref<8x128xf32, #tpu.memory_space<vmem>>, vector<1x128xf32>,
    %48 = vector.extract_strided_slice %35 {offsets = [192, 0], sizes = [64, 128], strides = [1, 1]} : vector<512x128xf32> to vector<64x128xf32>
    %cst_23 = arith.constant dense<0xFF800000> : vector<128xf32>
    %49 = vector.multi_reduction <maximumf>, %48, %cst_23 [0] : vector<64x128xf32> to vector<128xf32>
    %50 = vector.shape_cast %49 : vector<128xf32> to vector<1x128xf32>
    %c3 = arith.constant 3 : index
    %c0_24 = arith.constant 0 : index
    %51 = vector.load %arg22[%c3, %c0_24] : memref<8x128xf32, #tpu.memory_space<vmem>>, vector<1x128xf32>
    tpu.vector_store %arg22[%c3, %c0_24], %50 {strides = array<i32>} : memref<8x128xf32, #tpu.memory_space<vmem>>, vector<1x128xf32>,
    %52 = vector.extract_strided_slice %35 {offsets = [256, 0], sizes = [64, 128], strides = [1, 1]} : vector<512x128xf32> to vector<64x128xf32>
    %cst_25 = arith.constant dense<0xFF800000> : vector<128xf32>
    %53 = vector.multi_reduction <maximumf>, %52, %cst_25 [0] : vector<64x128xf32> to vector<128xf32>
    %54 = vector.shape_cast %53 : vector<128xf32> to vector<1x128xf32>
    %c4 = arith.constant 4 : index
    %c0_26 = arith.constant 0 : index
    %55 = vector.load %arg22[%c4, %c0_26] : memref<8x128xf32, #tpu.memory_space<vmem>>, vector<1x128xf32>
    tpu.vector_store %arg22[%c4, %c0_26], %54 {strides = array<i32>} : memref<8x128xf32, #tpu.memory_space<vmem>>, vector<1x128xf32>,
    %56 = vector.extract_strided_slice %35 {offsets = [320, 0], sizes = [64, 128], strides = [1, 1]} : vector<512x128xf32> to vector<64x128xf32>
    %cst_27 = arith.constant dense<0xFF800000> : vector<128xf32>
    %57 = vector.multi_reduction <maximumf>, %56, %cst_27 [0] : vector<64x128xf32> to vector<128xf32>
    %58 = vector.shape_cast %57 : vector<128xf32> to vector<1x128xf32>
    %c5 = arith.constant 5 : index
    %c0_28 = arith.constant 0 : index
    %59 = vector.load %arg22[%c5, %c0_28] : memref<8x128xf32, #tpu.memory_space<vmem>>, vector<1x128xf32>
    tpu.vector_store %arg22[%c5, %c0_28], %58 {strides = array<i32>} : memref<8x128xf32, #tpu.memory_space<vmem>>, vector<1x128xf32>,
    %60 = vector.extract_strided_slice %35 {offsets = [384, 0], sizes = [64, 128], strides = [1, 1]} : vector<512x128xf32> to vector<64x128xf32>
    %cst_29 = arith.constant dense<0xFF800000> : vector<128xf32>
    %61 = vector.multi_reduction <maximumf>, %60, %cst_29 [0] : vector<64x128xf32> to vector<128xf32>
    %62 = vector.shape_cast %61 : vector<128xf32> to vector<1x128xf32>
    %c6 = arith.constant 6 : index
    %c0_30 = arith.constant 0 : index
    %63 = vector.load %arg22[%c6, %c0_30] : memref<8x128xf32, #tpu.memory_space<vmem>>, vector<1x128xf32>
    tpu.vector_store %arg22[%c6, %c0_30], %62 {strides = array<i32>} : memref<8x128xf32, #tpu.memory_space<vmem>>, vector<1x128xf32>,
    %64 = vector.extract_strided_slice %35 {offsets = [448, 0], sizes = [64, 128], strides = [1, 1]} : vector<512x128xf32> to vector<64x128xf32>
    %cst_31 = arith.constant dense<0xFF800000> : vector<128xf32>
    %65 = vector.multi_reduction <maximumf>, %64, %cst_31 [0] : vector<64x128xf32> to vector<128xf32>
    %66 = vector.shape_cast %65 : vector<128xf32> to vector<1x128xf32>
    %c7 = arith.constant 7 : index
    %c0_32 = arith.constant 0 : index
    %67 = vector.load %arg22[%c7, %c0_32] : memref<8x128xf32, #tpu.memory_space<vmem>>, vector<1x128xf32>
    tpu.vector_store %arg22[%c7, %c0_32], %66 {strides = array<i32>} : memref<8x128xf32, #tpu.memory_space<vmem>>, vector<1x128xf32>,
    %c0_33 = arith.constant 0 : index
    %c0_34 = arith.constant 0 : index
    %68 = vector.load %arg22[%c0_33, %c0_34] : memref<8x128xf32, #tpu.memory_space<vmem>>, vector<8x128xf32>
    %c0_35 = arith.constant 0 : index
    %c0_36 = arith.constant 0 : index
    %69 = vector.load %arg1[%c0_35, %c0_36] : memref<8x256xf32, #tpu.memory_space<vmem>>, vector<8x256xf32>
    %c0_37 = arith.constant 0 : index
    %c0_38 = arith.constant 0 : index
    %70 = vector.load %arg8[%c0_37, %c0_38] : memref<128x256xf32, #tpu.memory_space<vmem>>, vector<128x256xf32>
    %cst_39 = arith.constant dense<0.000000e+00> : vector<8x256xf32>
    %71 = tpu.matmul %68, %70, %cst_39 {dimension_numbers = #tpu.dot_dimension_numbers<[1], [0], [0], [1], [0, 0, 1, 1], [], []>} : vector<8x128xf32>, vector<128x256xf32>, vector<8x256xf32> -> vector<8x256xf32>
    %c0_40 = arith.constant 0 : index
    %c0_41 = arith.constant 0 : index
    %72 = vector.load %arg9[%c0_40, %c0_41] : memref<1x256xf32, #tpu.memory_space<vmem>>, vector<1x256xf32>
    %73 = vector.broadcast %72 : vector<1x256xf32> to vector<8x256xf32>
    %74 = arith.addf %71, %73 : vector<8x256xf32>
    %cst_42 = arith.constant 0.000000e+00 : f32
    %75 = vector.broadcast %cst_42 : f32 to vector<8x256xf32>
    %76 = arith.maximumf %74, %75 : vector<8x256xf32>
    %77 = arith.mulf %69, %76 : vector<8x256xf32>
    %c0_43 = arith.constant 0 : index
    %c0_44 = arith.constant 0 : index
    %78 = vector.load %arg23[%c0_43, %c0_44] : memref<8x512xf32, #tpu.memory_space<vmem>>, vector<8x256xf32>
    tpu.vector_store %arg23[%c0_43, %c0_44], %77 {strides = array<i32>} : memref<8x512xf32, #tpu.memory_space<vmem>>, vector<8x256xf32>,
    %79 = arith.subf %69, %76 : vector<8x256xf32>
    %c0_45 = arith.constant 0 : index
    %c256 = arith.constant 256 : index
    %80 = vector.load %arg23[%c0_45, %c256] : memref<8x512xf32, #tpu.memory_space<vmem>>, vector<8x256xf32>
    tpu.vector_store %arg23[%c0_45, %c256], %79 {strides = array<i32>} : memref<8x512xf32, #tpu.memory_space<vmem>>, vector<8x256xf32>,
    %c0_46 = arith.constant 0 : index
    %c0_47 = arith.constant 0 : index
    %81 = vector.load %arg23[%c0_46, %c0_47] : memref<8x512xf32, #tpu.memory_space<vmem>>, vector<8x512xf32>
    %c0_48 = arith.constant 0 : index
    %c0_49 = arith.constant 0 : index
    %82 = vector.load %arg10[%c0_48, %c0_49] : memref<512x256xf32, #tpu.memory_space<vmem>>, vector<512x256xf32>
    %cst_50 = arith.constant dense<0.000000e+00> : vector<8x256xf32>
    %83 = tpu.matmul %81, %82, %cst_50 {dimension_numbers = #tpu.dot_dimension_numbers<[1], [0], [0], [1], [0, 0, 1, 1], [], []>} : vector<8x512xf32>, vector<512x256xf32>, vector<8x256xf32> -> vector<8x256xf32>
    %c0_51 = arith.constant 0 : index
    %c0_52 = arith.constant 0 : index
    %84 = vector.load %arg11[%c0_51, %c0_52] : memref<1x256xf32, #tpu.memory_space<vmem>>, vector<1x256xf32>
    %85 = vector.broadcast %84 : vector<1x256xf32> to vector<8x256xf32>
    %86 = arith.addf %83, %85 : vector<8x256xf32>
    %cst_53 = arith.constant 0.000000e+00 : f32
    %87 = vector.broadcast %cst_53 : f32 to vector<8x256xf32>
    %88 = arith.maximumf %86, %87 : vector<8x256xf32>
    %c0_54 = arith.constant 0 : index
    %c0_55 = arith.constant 0 : index
    %89 = vector.load %arg12[%c0_54, %c0_55] : memref<256x800xf32, #tpu.memory_space<vmem>>, vector<256x800xf32>
    %cst_56 = arith.constant dense<0.000000e+00> : vector<8x800xf32>
    %90 = tpu.matmul %88, %89, %cst_56 {dimension_numbers = #tpu.dot_dimension_numbers<[1], [0], [0], [1], [0, 0, 1, 1], [], []>} : vector<8x256xf32>, vector<256x800xf32>, vector<8x800xf32> -> vector<8x800xf32>
    %c0_57 = arith.constant 0 : index
    %c0_58 = arith.constant 0 : index
    %91 = vector.load %arg13[%c0_57, %c0_58] : memref<256x800xf32, #tpu.memory_space<vmem>>, vector<256x800xf32>
    %cst_59 = arith.constant dense<0.000000e+00> : vector<8x800xf32>
    %92 = tpu.matmul %69, %91, %cst_59 {dimension_numbers = #tpu.dot_dimension_numbers<[1], [0], [0], [1], [0, 0, 1, 1], [], []>} : vector<8x256xf32>, vector<256x800xf32>, vector<8x800xf32> -> vector<8x800xf32>
    %93 = arith.addf %90, %92 : vector<8x800xf32>
    %c0_60 = arith.constant 0 : index
    %c0_61 = arith.constant 0 : index
    %94 = vector.load %arg14[%c0_60, %c0_61] : memref<1x800xf32, #tpu.memory_space<vmem>>, vector<1x800xf32>
    %95 = vector.broadcast %94 : vector<1x800xf32> to vector<8x800xf32>
    %96 = arith.addf %93, %95 : vector<8x800xf32>
    %cst_62 = arith.constant 0.000000e+00 : f32
    %97 = vector.broadcast %cst_62 : f32 to vector<8x800xf32>
    %98 = arith.maximumf %96, %97 : vector<8x800xf32>
    %c0_63 = arith.constant 0 : index
    %c0_64 = arith.constant 0 : index
    %99 = vector.load %arg15[%c0_63, %c0_64] : memref<800x400xf32, #tpu.memory_space<vmem>>, vector<800x400xf32>
    %cst_65 = arith.constant dense<0.000000e+00> : vector<8x400xf32>
    %100 = tpu.matmul %98, %99, %cst_65 {dimension_numbers = #tpu.dot_dimension_numbers<[1], [0], [0], [1], [0, 0, 1, 1], [], []>} : vector<8x800xf32>, vector<800x400xf32>, vector<8x400xf32> -> vector<8x400xf32>
    %c0_66 = arith.constant 0 : index
    %c0_67 = arith.constant 0 : index
    %101 = vector.load %arg16[%c0_66, %c0_67] : memref<1x400xf32, #tpu.memory_space<vmem>>, vector<1x400xf32>
    %102 = vector.broadcast %101 : vector<1x400xf32> to vector<8x400xf32>
    %103 = arith.addf %100, %102 : vector<8x400xf32>
    %cst_68 = arith.constant 0.000000e+00 : f32
    %104 = vector.broadcast %cst_68 : f32 to vector<8x400xf32>
    %105 = arith.maximumf %103, %104 : vector<8x400xf32>
    %c0_69 = arith.constant 0 : index
    %c0_70 = arith.constant 0 : index
    %106 = vector.load %arg17[%c0_69, %c0_70] : memref<400x200xf32, #tpu.memory_space<vmem>>, vector<400x200xf32>
    %cst_71 = arith.constant dense<0.000000e+00> : vector<8x200xf32>
    %107 = tpu.matmul %105, %106, %cst_71 {dimension_numbers = #tpu.dot_dimension_numbers<[1], [0], [0], [1], [0, 0, 1, 1], [], []>} : vector<8x400xf32>, vector<400x200xf32>, vector<8x200xf32> -> vector<8x200xf32>
    %c0_72 = arith.constant 0 : index
    %c0_73 = arith.constant 0 : index
    %108 = vector.load %arg18[%c0_72, %c0_73] : memref<1x200xf32, #tpu.memory_space<vmem>>, vector<1x200xf32>
    %109 = vector.broadcast %108 : vector<1x200xf32> to vector<8x200xf32>
    %110 = arith.addf %107, %109 : vector<8x200xf32>
    %cst_74 = arith.constant 0.000000e+00 : f32
    %111 = vector.broadcast %cst_74 : f32 to vector<8x200xf32>
    %112 = arith.maximumf %110, %111 : vector<8x200xf32>
    %c0_75 = arith.constant 0 : index
    %c0_76 = arith.constant 0 : index
    %113 = vector.load %arg19[%c0_75, %c0_76] : memref<200x128xf32, #tpu.memory_space<vmem>>, vector<200x128xf32>
    %cst_77 = arith.constant dense<0.000000e+00> : vector<8x128xf32>
    %114 = tpu.matmul %112, %113, %cst_77 {dimension_numbers = #tpu.dot_dimension_numbers<[1], [0], [0], [1], [0, 0, 1, 1], [], []>} : vector<8x200xf32>, vector<200x128xf32>, vector<8x128xf32> -> vector<8x128xf32>
    %c0_78 = arith.constant 0 : index
    %c0_79 = arith.constant 0 : index
    %115 = vector.load %arg20[%c0_78, %c0_79] : memref<1x128xf32, #tpu.memory_space<vmem>>, vector<1x128xf32>
    %116 = vector.broadcast %115 : vector<1x128xf32> to vector<8x128xf32>
    %117 = arith.addf %114, %116 : vector<8x128xf32>
    %c0_80 = arith.constant 0 : index
    %c0_81 = arith.constant 0 : index
    %118 = vector.load %arg21[%c0_80, %c0_81] : memref<8x128xf32, #tpu.memory_space<vmem>>, vector<8x128xf32>
    tpu.vector_store %arg21[%c0_80, %c0_81], %117 {strides = array<i32>} : memref<8x128xf32, #tpu.memory_space<vmem>>, vector<8x128xf32>,
    return
  }
}

</mosaic_0001>

<llo_original>
// kernel: tpu_custom_call.1
$region0: #{tpu_custom_call.1}
  #allocation0 [shape = 'u32[]', space=smem, size = 0x4, offset = 0x4, fixed_abs, tag = 'smem constant byte address 0x4 - core index']
  #allocation1 [shape = 'u32[144,128]{1,0:T(1,128)}', space=vmem, size = 0x12000, scoped, tag = 'internal scratch']
  #allocation2 [shape = 'f32[8,128]{1,0:T(8,128)}', space=vmem, size = 0x1000, scoped, tag = 'scratch operand']
  #allocation3 [shape = 'f32[8,512]{1,0:T(8,128)}', space=vmem, size = 0x4000, scoped, tag = 'scratch operand']
  %s0 = inlined_call_operand.vmem [shape: f32[512,3], index: 0, kind: input, shape index: {}]
  %s1 = inlined_call_operand.vmem [shape: f32[8,256], index: 1, kind: input, shape index: {}]
  %s2 = inlined_call_operand.vmem [shape: f32[3,64], index: 2, kind: input, shape index: {}]
  %s3 = inlined_call_operand.vmem [shape: f32[1,64], index: 3, kind: input, shape index: {}]
  %s4 = inlined_call_operand.vmem [shape: f32[64,128], index: 4, kind: input, shape index: {}]
  %s5 = inlined_call_operand.vmem [shape: f32[1,128], index: 5, kind: input, shape index: {}]
  %s6 = inlined_call_operand.vmem [shape: f32[128,128], index: 6, kind: input, shape index: {}]
  %s7 = inlined_call_operand.vmem [shape: f32[1,128], index: 7, kind: input, shape index: {}]
  %s8 = inlined_call_operand.vmem [shape: f32[128,256], index: 8, kind: input, shape index: {}]
  %s9 = inlined_call_operand.vmem [shape: f32[1,256], index: 9, kind: input, shape index: {}]
  %s10 = inlined_call_operand.vmem [shape: f32[512,256], index: 10, kind: input, shape index: {}]
  %s11 = inlined_call_operand.vmem [shape: f32[1,256], index: 11, kind: input, shape index: {}]
  %s12 = inlined_call_operand.vmem [shape: f32[256,800], index: 12, kind: input, shape index: {}]
  %s13 = inlined_call_operand.vmem [shape: f32[256,800], index: 13, kind: input, shape index: {}]
  %s14 = inlined_call_operand.vmem [shape: f32[1,800], index: 14, kind: input, shape index: {}]
  %s15 = inlined_call_operand.vmem [shape: f32[800,400], index: 15, kind: input, shape index: {}]
  %s16 = inlined_call_operand.vmem [shape: f32[1,400], index: 16, kind: input, shape index: {}]
  %s17 = inlined_call_operand.vmem [shape: f32[400,200], index: 17, kind: input, shape index: {}]
  %s18 = inlined_call_operand.vmem [shape: f32[1,200], index: 18, kind: input, shape index: {}]
  %s19 = inlined_call_operand.vmem [shape: f32[200,128], index: 19, kind: input, shape index: {}]
  %s20 = inlined_call_operand.vmem [shape: f32[1,128], index: 20, kind: input, shape index: {}]
  %s21 = inlined_call_operand.hbm [shape: f32[8,128], index: 21, kind: output, shape index: {}]
  %s22 = sld [smem:[#allocation0]]
  $region94: #{tpu_custom_call.1} parent=0
    _
  %s24 = ssub.s32 1, %s22
  %s25 = scalar_select 0, %s24, %s22
  $region1: #{tpu_custom_call.1} parent=0
    #allocation4 [shape = 'u8[4096]{0}', space=vmem, size = 0x1000, scoped, tag = 'output window, operand 0, single buffered']
    #allocation5 [shape = 's32[1]{0}', space=sflag, size = 0x4, scoped, tag = 'scoped memory for tpu_custom_call.1']
    %26 = vsyncpa [#allocation5], 0
    // Predicated region
    $region2: #{tpu_custom_call.1} parent=1 // pred_check
      _
    $region3: #{tpu_custom_call.1} parent=1 // pred_check_branch
      %28 = sbr.rel (0) target = $region5
    $region4: #{tpu_custom_call.1} parent=1 // pred_region
      _
    $region5: #{tpu_custom_call.1} parent=1 // pred_fallthru
      _
    // Predicated region
    $region6: #{tpu_custom_call.1} parent=1 // pred_check
      _
    $region7: #{tpu_custom_call.1} parent=1 // pred_check_branch
      %30 = sbr.rel (0) target = $region9
    $region8: #{tpu_custom_call.1} parent=1 // pred_region
      _
    $region9: #{tpu_custom_call.1} parent=1 // pred_fallthru
      _
    // Predicated region
    $region10: #{tpu_custom_call.1} parent=1 // pred_check
      _
    $region11: #{tpu_custom_call.1} parent=1 // pred_check_branch
      %32 = sbr.rel (0) target = $region13
    $region12: #{tpu_custom_call.1} parent=1 // pred_region
      _
    $region13: #{tpu_custom_call.1} parent=1 // pred_fallthru
      _
    // Predicated region
    $region14: #{tpu_custom_call.1} parent=1 // pred_check
      _
    $region15: #{tpu_custom_call.1} parent=1 // pred_check_branch
      %34 = sbr.rel (0) target = $region17
    $region16: #{tpu_custom_call.1} parent=1 // pred_region
      _
    $region17: #{tpu_custom_call.1} parent=1 // pred_fallthru
      _
    // Predicated region
    $region18: #{tpu_custom_call.1} parent=1 // pred_check
      _
    $region19: #{tpu_custom_call.1} parent=1 // pred_check_branch
      %36 = sbr.rel (0) target = $region21
    $region20: #{tpu_custom_call.1} parent=1 // pred_region
      _
    $region21: #{tpu_custom_call.1} parent=1 // pred_fallthru
      _
    // Predicated region
    $region22: #{tpu_custom_call.1} parent=1 // pred_check
      _
    $region23: #{tpu_custom_call.1} parent=1 // pred_check_branch
      %38 = sbr.rel (0) target = $region25
    $region24: #{tpu_custom_call.1} parent=1 // pred_region
      _
    $region25: #{tpu_custom_call.1} parent=1 // pred_fallthru
      _
    // Predicated region
    $region26: #{tpu_custom_call.1} parent=1 // pred_check
      _
    $region27: #{tpu_custom_call.1} parent=1 // pred_check_branch
      %40 = sbr.rel (0) target = $region29
    $region28: #{tpu_custom_call.1} parent=1 // pred_region
      _
    $region29: #{tpu_custom_call.1} parent=1 // pred_fallthru
      _
    // Predicated region
    $region30: #{tpu_custom_call.1} parent=1 // pred_check
      _
    $region31: #{tpu_custom_call.1} parent=1 // pred_check_branch
      %42 = sbr.rel (0) target = $region33
    $region32: #{tpu_custom_call.1} parent=1 // pred_region
      _
    $region33: #{tpu_custom_call.1} parent=1 // pred_fallthru
      _
    // Predicated region
    $region34: #{tpu_custom_call.1} parent=1 // pred_check
      _
    $region35: #{tpu_custom_call.1} parent=1 // pred_check_branch
      %44 = sbr.rel (0) target = $region37
    $region36: #{tpu_custom_call.1} parent=1 // pred_region
      _
    $region37: #{tpu_custom_call.1} parent=1 // pred_fallthru
      _
    // Predicated region
    $region38: #{tpu_custom_call.1} parent=1 // pred_check
      _
    $region39: #{tpu_custom_call.1} parent=1 // pred_check_branch
      %46 = sbr.rel (0) target = $region41
    $region40: #{tpu_custom_call.1} parent=1 // pred_region
      _
    $region41: #{tpu_custom_call.1} parent=1 // pred_fallthru
      _
    // Predicated region
    $region42: #{tpu_custom_call.1} parent=1 // pred_check
      _
    $region43: #{tpu_custom_call.1} parent=1 // pred_check_branch
      %48 = sbr.rel (0) target = $region45
    $region44: #{tpu_custom_call.1} parent=1 // pred_region
      _
    $region45: #{tpu_custom_call.1} parent=1 // pred_fallthru
      _
    // Predicated region
    $region46: #{tpu_custom_call.1} parent=1 // pred_check
      _
    $region47: #{tpu_custom_call.1} parent=1 // pred_check_branch
      %50 = sbr.rel (0) target = $region49
    $region48: #{tpu_custom_call.1} parent=1 // pred_region
      _
    $region49: #{tpu_custom_call.1} parent=1 // pred_fallthru
      _
    // Predicated region
    $region50: #{tpu_custom_call.1} parent=1 // pred_check
      _
    $region51: #{tpu_custom_call.1} parent=1 // pred_check_branch
      %52 = sbr.rel (0) target = $region53
    $region52: #{tpu_custom_call.1} parent=1 // pred_region
      _
    $region53: #{tpu_custom_call.1} parent=1 // pred_fallthru
      _
    // Predicated region
    $region54: #{tpu_custom_call.1} parent=1 // pred_check
      _
    $region55: #{tpu_custom_call.1} parent=1 // pred_check_branch
      %54 = sbr.rel (0) target = $region57
    $region56: #{tpu_custom_call.1} parent=1 // pred_region
      _
    $region57: #{tpu_custom_call.1} parent=1 // pred_fallthru
      _
    // Predicated region
    $region58: #{tpu_custom_call.1} parent=1 // pred_check
      _
    $region59: #{tpu_custom_call.1} parent=1 // pred_check_branch
      %56 = sbr.rel (0) target = $region61
    $region60: #{tpu_custom_call.1} parent=1 // pred_region
      _
    $region61: #{tpu_custom_call.1} parent=1 // pred_fallthru
      _
    // Predicated region
    $region62: #{tpu_custom_call.1} parent=1 // pred_check
      _
    $region63: #{tpu_custom_call.1} parent=1 // pred_check_branch
      %58 = sbr.rel (0) target = $region65
    $region64: #{tpu_custom_call.1} parent=1 // pred_region
      _
    $region65: #{tpu_custom_call.1} parent=1 // pred_fallthru
      _
    // Predicated region
    $region66: #{tpu_custom_call.1} parent=1 // pred_check
      _
    $region67: #{tpu_custom_call.1} parent=1 // pred_check_branch
      %60 = sbr.rel (0) target = $region69
    $region68: #{tpu_custom_call.1} parent=1 // pred_region
      _
    $region69: #{tpu_custom_call.1} parent=1 // pred_fallthru
      _
    // Predicated region
    $region70: #{tpu_custom_call.1} parent=1 // pred_check
      _
    $region71: #{tpu_custom_call.1} parent=1 // pred_check_branch
      %62 = sbr.rel (0) target = $region73
    $region72: #{tpu_custom_call.1} parent=1 // pred_region
      _
    $region73: #{tpu_custom_call.1} parent=1 // pred_fallthru
      _
    // Predicated region
    $region74: #{tpu_custom_call.1} parent=1 // pred_check
      _
    $region75: #{tpu_custom_call.1} parent=1 // pred_check_branch
      %64 = sbr.rel (0) target = $region77
    $region76: #{tpu_custom_call.1} parent=1 // pred_region
      _
    $region77: #{tpu_custom_call.1} parent=1 // pred_fallthru
      _
    // Predicated region
    $region78: #{tpu_custom_call.1} parent=1 // pred_check
      _
    $region79: #{tpu_custom_call.1} parent=1 // pred_check_branch
      %66 = sbr.rel (0) target = $region81
    $region80: #{tpu_custom_call.1} parent=1 // pred_region
      _
    $region81: #{tpu_custom_call.1} parent=1 // pred_fallthru
      _
    // Predicated region
    $region82: #{tpu_custom_call.1} parent=1 // pred_check
      _
    $region83: #{tpu_custom_call.1} parent=1 // pred_check_branch
      %68 = sbr.rel (0) target = $region85
    $region84: #{tpu_custom_call.1} parent=1 // pred_region
      _
    $region85: #{tpu_custom_call.1} parent=1 // pred_fallthru
      _
    %v69 = vld [vmem:[%s0] sm:$0xff]
    %v70 = vld [vmem:[%s0 + $0x8] sm:$0xff]
    %v71 = vld [vmem:[%s0 + $0x10] sm:$0xff]
    %v72 = vld [vmem:[%s0 + $0x18] sm:$0xff]
    %v73 = vld [vmem:[%s0 + $0x20] sm:$0xff]
    %v74 = vld [vmem:[%s0 + $0x28] sm:$0xff]
    %v75 = vld [vmem:[%s0 + $0x30] sm:$0xff]
    %v76 = vld [vmem:[%s0 + $0x38] sm:$0xff]
    %v77 = vld [vmem:[%s0 + $0x40] sm:$0xff]
    %v78 = vld [vmem:[%s0 + $0x48] sm:$0xff]
    %v79 = vld [vmem:[%s0 + $0x50] sm:$0xff]
    %v80 = vld [vmem:[%s0 + $0x58] sm:$0xff]
    %v81 = vld [vmem:[%s0 + $0x60] sm:$0xff]
    %v82 = vld [vmem:[%s0 + $0x68] sm:$0xff]
    %v83 = vld [vmem:[%s0 + $0x70] sm:$0xff]
    %v84 = vld [vmem:[%s0 + $0x78] sm:$0xff]
    %v85 = vld [vmem:[%s0 + $0x80] sm:$0xff]
    %v86 = vld [vmem:[%s0 + $0x88] sm:$0xff]
    %v87 = vld [vmem:[%s0 + $0x90] sm:$0xff]
    %v88 = vld [vmem:[%s0 + $0x98] sm:$0xff]
    %v89 = vld [vmem:[%s0 + $0xa0] sm:$0xff]
    %v90 = vld [vmem:[%s0 + $0xa8] sm:$0xff]
    %v91 = vld [vmem:[%s0 + $0xb0] sm:$0xff]
    %v92 = vld [vmem:[%s0 + $0xb8] sm:$0xff]
    %v93 = vld [vmem:[%s0 + $0xc0] sm:$0xff]
    %v94 = vld [vmem:[%s0 + $0xc8] sm:$0xff]
    %v95 = vld [vmem:[%s0 + $0xd0] sm:$0xff]
    %v96 = vld [vmem:[%s0 + $0xd8] sm:$0xff]
    %v97 = vld [vmem:[%s0 + $0xe0] sm:$0xff]
    %v98 = vld [vmem:[%s0 + $0xe8] sm:$0xff]
    %v99 = vld [vmem:[%s0 + $0xf0] sm:$0xff]
    %v100 = vld [vmem:[%s0 + $0xf8] sm:$0xff]
    %v101 = vld [vmem:[%s0 + $0x100] sm:$0xff]
    %v102 = vld [vmem:[%s0 + $0x108] sm:$0xff]
    %v103 = vld [vmem:[%s0 + $0x110] sm:$0xff]
    %v104 = vld [vmem:[%s0 + $0x118] sm:$0xff]
    %v105 = vld [vmem:[%s0 + $0x120] sm:$0xff]
    %v106 = vld [vmem:[%s0 + $0x128] sm:$0xff]
    %v107 = vld [vmem:[%s0 + $0x130] sm:$0xff]
    %v108 = vld [vmem:[%s0 + $0x138] sm:$0xff]
    %v109 = vld [vmem:[%s0 + $0x140] sm:$0xff]
    %v110 = vld [vmem:[%s0 + $0x148] sm:$0xff]
    %v111 = vld [vmem:[%s0 + $0x150] sm:$0xff]
    %v112 = vld [vmem:[%s0 + $0x158] sm:$0xff]
    %v113 = vld [vmem:[%s0 + $0x160] sm:$0xff]
    %v114 = vld [vmem:[%s0 + $0x168] sm:$0xff]
    %v115 = vld [vmem:[%s0 + $0x170] sm:$0xff]
    %v116 = vld [vmem:[%s0 + $0x178] sm:$0xff]
    %v117 = vld [vmem:[%s0 + $0x180] sm:$0xff]
    %v118 = vld [vmem:[%s0 + $0x188] sm:$0xff]
    %v119 = vld [vmem:[%s0 + $0x190] sm:$0xff]
    %v120 = vld [vmem:[%s0 + $0x198] sm:$0xff]
    %v121 = vld [vmem:[%s0 + $0x1a0] sm:$0xff]
    %v122 = vld [vmem:[%s0 + $0x1a8] sm:$0xff]
    %v123 = vld [vmem:[%s0 + $0x1b0] sm:$0xff]
    %v124 = vld [vmem:[%s0 + $0x1b8] sm:$0xff]
    %v125 = vld [vmem:[%s0 + $0x1c0] sm:$0xff]
    %v126 = vld [vmem:[%s0 + $0x1c8] sm:$0xff]
    %v127 = vld [vmem:[%s0 + $0x1d0] sm:$0xff]
    %v128 = vld [vmem:[%s0 + $0x1d8] sm:$0xff]
    %v129 = vld [vmem:[%s0 + $0x1e0] sm:$0xff]
    %v130 = vld [vmem:[%s0 + $0x1e8] sm:$0xff]
    %v131 = vld [vmem:[%s0 + $0x1f0] sm:$0xff]
    %v132 = vld [vmem:[%s0 + $0x1f8] sm:$0xff]
    %v133 = vld [vmem:[%s2] sm:$0x7]
    %135 = vset.pattern.permute.xlu0 0
    %136 = vperm.xlu0 %135, %v69
    %v137 = vpop.permute.xlu0 %136
    %140 = vset.pattern.permute.xlu0 0
    %141 = vperm.xlu0 %140, %v70
    %v142 = vpop.permute.xlu0 %141
    %145 = vset.pattern.permute.xlu0 0
    %146 = vperm.xlu0 %145, %v71
    %v147 = vpop.permute.xlu0 %146
    %150 = vset.pattern.permute.xlu0 0
    %151 = vperm.xlu0 %150, %v72
    %v152 = vpop.permute.xlu0 %151
    %155 = vset.pattern.permute.xlu0 0
    %156 = vperm.xlu0 %155, %v73
    %v157 = vpop.permute.xlu0 %156
    %160 = vset.pattern.permute.xlu0 0
    %161 = vperm.xlu0 %160, %v74
    %v162 = vpop.permute.xlu0 %161
    %165 = vset.pattern.permute.xlu0 0
    %166 = vperm.xlu0 %165, %v75
    %v167 = vpop.permute.xlu0 %166
    %170 = vset.pattern.permute.xlu0 0
    %171 = vperm.xlu0 %170, %v76
    %v172 = vpop.permute.xlu0 %171
    %175 = vset.pattern.permute.xlu0 0
    %176 = vperm.xlu0 %175, %v77
    %v177 = vpop.permute.xlu0 %176
    %180 = vset.pattern.permute.xlu0 0
    %181 = vperm.xlu0 %180, %v78
    %v182 = vpop.permute.xlu0 %181
    %185 = vset.pattern.permute.xlu0 0
    %186 = vperm.xlu0 %185, %v79
    %v187 = vpop.permute.xlu0 %186
    %190 = vset.pattern.permute.xlu0 0
    %191 = vperm.xlu0 %190, %v80
    %v192 = vpop.permute.xlu0 %191
    %195 = vset.pattern.permute.xlu0 0
    %196 = vperm.xlu0 %195, %v81
    %v197 = vpop.permute.xlu0 %196
    %200 = vset.pattern.permute.xlu0 0
    %201 = vperm.xlu0 %200, %v82
    %v202 = vpop.permute.xlu0 %201
    %205 = vset.pattern.permute.xlu0 0
    %206 = vperm.xlu0 %205, %v83
    %v207 = vpop.permute.xlu0 %206
    %210 = vset.pattern.permute.xlu0 0
    %211 = vperm.xlu0 %210, %v84
    %v212 = vpop.permute.xlu0 %211
    %215 = vset.pattern.permute.xlu0 0
    %216 = vperm.xlu0 %215, %v85
    %v217 = vpop.permute.xlu0 %216
    %220 = vset.pattern.permute.xlu0 0
    %221 = vperm.xlu0 %220, %v86
    %v222 = vpop.permute.xlu0 %221
    %225 = vset.pattern.permute.xlu0 0
    %226 = vperm.xlu0 %225, %v87
    %v227 = vpop.permute.xlu0 %226
    %230 = vset.pattern.permute.xlu0 0
    %231 = vperm.xlu0 %230, %v88
    %v232 = vpop.permute.xlu0 %231
    %235 = vset.pattern.permute.xlu0 0
    %236 = vperm.xlu0 %235, %v89
    %v237 = vpop.permute.xlu0 %236
    %240 = vset.pattern.permute.xlu0 0
    %241 = vperm.xlu0 %240, %v90
    %v242 = vpop.permute.xlu0 %241
    %245 = vset.pattern.permute.xlu0 0
    %246 = vperm.xlu0 %245, %v91
    %v247 = vpop.permute.xlu0 %246
    %250 = vset.pattern.permute.xlu0 0
    %251 = vperm.xlu0 %250, %v92
    %v252 = vpop.permute.xlu0 %251
    %255 = vset.pattern.permute.xlu0 0
    %256 = vperm.xlu0 %255, %v93
    %v257 = vpop.permute.xlu0 %256
    %260 = vset.pattern.permute.xlu0 0
    %261 = vperm.xlu0 %260, %v94
    %v262 = vpop.permute.xlu0 %261
    %265 = vset.pattern.permute.xlu0 0
    %266 = vperm.xlu0 %265, %v95
    %v267 = vpop.permute.xlu0 %266
    %270 = vset.pattern.permute.xlu0 0
    %271 = vperm.xlu0 %270, %v96
    %v272 = vpop.permute.xlu0 %271
    %275 = vset.pattern.permute.xlu0 0
    %276 = vperm.xlu0 %275, %v97
    %v277 = vpop.permute.xlu0 %276
    %280 = vset.pattern.permute.xlu0 0
    %281 = vperm.xlu0 %280, %v98
    %v282 = vpop.permute.xlu0 %281
    %285 = vset.pattern.permute.xlu0 0
    %286 = vperm.xlu0 %285, %v99
    %v287 = vpop.permute.xlu0 %286
    %290 = vset.pattern.permute.xlu0 0
    %291 = vperm.xlu0 %290, %v100
    %v292 = vpop.permute.xlu0 %291
    %295 = vset.pattern.permute.xlu0 0
    %296 = vperm.xlu0 %295, %v101
    %v297 = vpop.permute.xlu0 %296
    %300 = vset.pattern.permute.xlu0 0
    %301 = vperm.xlu0 %300, %v102
    %v302 = vpop.permute.xlu0 %301
    %305 = vset.pattern.permute.xlu0 0
    %306 = vperm.xlu0 %305, %v103
    %v307 = vpop.permute.xlu0 %306
    %310 = vset.pattern.permute.xlu0 0
    %311 = vperm.xlu0 %310, %v104
    %v312 = vpop.permute.xlu0 %311
    %315 = vset.pattern.permute.xlu0 0
    %316 = vperm.xlu0 %315, %v105
    %v317 = vpop.permute.xlu0 %316
    %320 = vset.pattern.permute.xlu0 0
    %321 = vperm.xlu0 %320, %v106
    %v322 = vpop.permute.xlu0 %321
    %325 = vset.pattern.permute.xlu0 0
    %326 = vperm.xlu0 %325, %v107
    %v327 = vpop.permute.xlu0 %326
    %330 = vset.pattern.permute.xlu0 0
    %331 = vperm.xlu0 %330, %v108
    %v332 = vpop.permute.xlu0 %331
    %335 = vset.pattern.permute.xlu0 0
    %336 = vperm.xlu0 %335, %v109
    %v337 = vpop.permute.xlu0 %336
    %340 = vset.pattern.permute.xlu0 0
    %341 = vperm.xlu0 %340, %v110
    %v342 = vpop.permute.xlu0 %341
    %345 = vset.pattern.permute.xlu0 0
    %346 = vperm.xlu0 %345, %v111
    %v347 = vpop.permute.xlu0 %346
    %350 = vset.pattern.permute.xlu0 0
    %351 = vperm.xlu0 %350, %v112
    %v352 = vpop.permute.xlu0 %351
    %355 = vset.pattern.permute.xlu0 0
    %356 = vperm.xlu0 %355, %v113
    %v357 = vpop.permute.xlu0 %356
    %360 = vset.pattern.permute.xlu0 0
    %361 = vperm.xlu0 %360, %v114
    %v362 = vpop.permute.xlu0 %361
    %365 = vset.pattern.permute.xlu0 0
    %366 = vperm.xlu0 %365, %v115
    %v367 = vpop.permute.xlu0 %366
    %370 = vset.pattern.permute.xlu0 0
    %371 = vperm.xlu0 %370, %v116
    %v372 = vpop.permute.xlu0 %371
    %375 = vset.pattern.permute.xlu0 0
    %376 = vperm.xlu0 %375, %v117
    %v377 = vpop.permute.xlu0 %376
    %380 = vset.pattern.permute.xlu0 0
    %381 = vperm.xlu0 %380, %v118
    %v382 = vpop.permute.xlu0 %381
    %385 = vset.pattern.permute.xlu0 0
    %386 = vperm.xlu0 %385, %v119
    %v387 = vpop.permute.xlu0 %386
    %390 = vset.pattern.permute.xlu0 0
    %391 = vperm.xlu0 %390, %v120
    %v392 = vpop.permute.xlu0 %391
    %395 = vset.pattern.permute.xlu0 0
    %396 = vperm.xlu0 %395, %v121
    %v397 = vpop.permute.xlu0 %396
    %400 = vset.pattern.permute.xlu0 0
    %401 = vperm.xlu0 %400, %v122
    %v402 = vpop.permute.xlu0 %401
    %405 = vset.pattern.permute.xlu0 0
    %406 = vperm.xlu0 %405, %v123
    %v407 = vpop.permute.xlu0 %406
    %410 = vset.pattern.permute.xlu0 0
    %411 = vperm.xlu0 %410, %v124
    %v412 = vpop.permute.xlu0 %411
    %415 = vset.pattern.permute.xlu0 0
    %416 = vperm.xlu0 %415, %v125
    %v417 = vpop.permute.xlu0 %416
    %420 = vset.pattern.permute.xlu0 0
    %421 = vperm.xlu0 %420, %v126
    %v422 = vpop.permute.xlu0 %421
    %425 = vset.pattern.permute.xlu0 0
    %426 = vperm.xlu0 %425, %v127
    %v427 = vpop.permute.xlu0 %426
    %430 = vset.pattern.permute.xlu0 0
    %431 = vperm.xlu0 %430, %v128
    %v432 = vpop.permute.xlu0 %431
    %435 = vset.pattern.permute.xlu0 0
    %436 = vperm.xlu0 %435, %v129
    %v437 = vpop.permute.xlu0 %436
    %440 = vset.pattern.permute.xlu0 0
    %441 = vperm.xlu0 %440, %v130
    %v442 = vpop.permute.xlu0 %441
    %445 = vset.pattern.permute.xlu0 0
    %446 = vperm.xlu0 %445, %v131
    %v447 = vpop.permute.xlu0 %446
    %450 = vset.pattern.permute.xlu0 0
    %451 = vperm.xlu0 %450, %v132
    %v452 = vpop.permute.xlu0 %451
    %v454 = vlaneseq
    %v455 = vshrl.u32 %v454, 7
    %v456 = vsub.s32 0, %v455
    %v457 = vrot.slane %v133, %v456
    %v458 = vmul.f32 %v137, %v457
    %v459 = vmul.f32 %v142, %v457
    %v460 = vmul.f32 %v147, %v457
    %v461 = vmul.f32 %v152, %v457
    %v462 = vmul.f32 %v157, %v457
    %v463 = vmul.f32 %v162, %v457
    %v464 = vmul.f32 %v167, %v457
    %v465 = vmul.f32 %v172, %v457
    %v466 = vmul.f32 %v177, %v457
    %v467 = vmul.f32 %v182, %v457
    %v468 = vmul.f32 %v187, %v457
    %v469 = vmul.f32 %v192, %v457
    %v470 = vmul.f32 %v197, %v457
    %v471 = vmul.f32 %v202, %v457
    %v472 = vmul.f32 %v207, %v457
    %v473 = vmul.f32 %v212, %v457
    %v474 = vmul.f32 %v217, %v457
    %v475 = vmul.f32 %v222, %v457
    %v476 = vmul.f32 %v227, %v457
    %v477 = vmul.f32 %v232, %v457
    %v478 = vmul.f32 %v237, %v457
    %v479 = vmul.f32 %v242, %v457
    %v480 = vmul.f32 %v247, %v457
    %v481 = vmul.f32 %v252, %v457
    %v482 = vmul.f32 %v257, %v457
    %v483 = vmul.f32 %v262, %v457
    %v484 = vmul.f32 %v267, %v457
    %v485 = vmul.f32 %v272, %v457
    %v486 = vmul.f32 %v277, %v457
    %v487 = vmul.f32 %v282, %v457
    %v488 = vmul.f32 %v287, %v457
    %v489 = vmul.f32 %v292, %v457
    %v490 = vmul.f32 %v297, %v457
    %v491 = vmul.f32 %v302, %v457
    %v492 = vmul.f32 %v307, %v457
    %v493 = vmul.f32 %v312, %v457
    %v494 = vmul.f32 %v317, %v457
    %v495 = vmul.f32 %v322, %v457
    %v496 = vmul.f32 %v327, %v457
    %v497 = vmul.f32 %v332, %v457
    %v498 = vmul.f32 %v337, %v457
    %v499 = vmul.f32 %v342, %v457
    %v500 = vmul.f32 %v347, %v457
    %v501 = vmul.f32 %v352, %v457
    %v502 = vmul.f32 %v357, %v457
    %v503 = vmul.f32 %v362, %v457
    %v504 = vmul.f32 %v367, %v457
    %v505 = vmul.f32 %v372, %v457
    %v506 = vmul.f32 %v377, %v457
    %v507 = vmul.f32 %v382, %v457
    %v508 = vmul.f32 %v387, %v457
    %v509 = vmul.f32 %v392, %v457
    %v510 = vmul.f32 %v397, %v457
    %v511 = vmul.f32 %v402, %v457
    %v512 = vmul.f32 %v407, %v457
    %v513 = vmul.f32 %v412, %v457
    %v514 = vmul.f32 %v417, %v457
    %v515 = vmul.f32 %v422, %v457
    %v516 = vmul.f32 %v427, %v457
    %v517 = vmul.f32 %v432, %v457
    %v518 = vmul.f32 %v437, %v457
    %v519 = vmul.f32 %v442, %v457
    %v520 = vmul.f32 %v447, %v457
    %v521 = vmul.f32 %v452, %v457
    %522 = vset.pattern.permute.xlu0 1
    %523 = vperm.xlu0 %522, %v69
    %v524 = vpop.permute.xlu0 %523
    %526 = vset.pattern.permute.xlu0 1
    %527 = vperm.xlu0 %526, %v70
    %v528 = vpop.permute.xlu0 %527
    %530 = vset.pattern.permute.xlu0 1
    %531 = vperm.xlu0 %530, %v71
    %v532 = vpop.permute.xlu0 %531
    %534 = vset.pattern.permute.xlu0 1
    %535 = vperm.xlu0 %534, %v72
    %v536 = vpop.permute.xlu0 %535
    %538 = vset.pattern.permute.xlu0 1
    %539 = vperm.xlu0 %538, %v73
    %v540 = vpop.permute.xlu0 %539
    %542 = vset.pattern.permute.xlu0 1
    %543 = vperm.xlu0 %542, %v74
    %v544 = vpop.permute.xlu0 %543
    %546 = vset.pattern.permute.xlu0 1
    %547 = vperm.xlu0 %546, %v75
    %v548 = vpop.permute.xlu0 %547
    %550 = vset.pattern.permute.xlu0 1
    %551 = vperm.xlu0 %550, %v76
    %v552 = vpop.permute.xlu0 %551
    %554 = vset.pattern.permute.xlu0 1
    %555 = vperm.xlu0 %554, %v77
    %v556 = vpop.permute.xlu0 %555
    %558 = vset.pattern.permute.xlu0 1
    %559 = vperm.xlu0 %558, %v78
    %v560 = vpop.permute.xlu0 %559
    %562 = vset.pattern.permute.xlu0 1
    %563 = vperm.xlu0 %562, %v79
    %v564 = vpop.permute.xlu0 %563
    %566 = vset.pattern.permute.xlu0 1
    %567 = vperm.xlu0 %566, %v80
    %v568 = vpop.permute.xlu0 %567
    %570 = vset.pattern.permute.xlu0 1
    %571 = vperm.xlu0 %570, %v81
    %v572 = vpop.permute.xlu0 %571
    %574 = vset.pattern.permute.xlu0 1
    %575 = vperm.xlu0 %574, %v82
    %v576 = vpop.permute.xlu0 %575
    %578 = vset.pattern.permute.xlu0 1
    %579 = vperm.xlu0 %578, %v83
    %v580 = vpop.permute.xlu0 %579
    %582 = vset.pattern.permute.xlu0 1
    %583 = vperm.xlu0 %582, %v84
    %v584 = vpop.permute.xlu0 %583
    %586 = vset.pattern.permute.xlu0 1
    %587 = vperm.xlu0 %586, %v85
    %v588 = vpop.permute.xlu0 %587
    %590 = vset.pattern.permute.xlu0 1
    %591 = vperm.xlu0 %590, %v86
    %v592 = vpop.permute.xlu0 %591
    %594 = vset.pattern.permute.xlu0 1
    %595 = vperm.xlu0 %594, %v87
    %v596 = vpop.permute.xlu0 %595
    %598 = vset.pattern.permute.xlu0 1
    %599 = vperm.xlu0 %598, %v88
    %v600 = vpop.permute.xlu0 %599
    %602 = vset.pattern.permute.xlu0 1
    %603 = vperm.xlu0 %602, %v89
    %v604 = vpop.permute.xlu0 %603
    %606 = vset.pattern.permute.xlu0 1
    %607 = vperm.xlu0 %606, %v90
    %v608 = vpop.permute.xlu0 %607
    %610 = vset.pattern.permute.xlu0 1
    %611 = vperm.xlu0 %610, %v91
    %v612 = vpop.permute.xlu0 %611
    %614 = vset.pattern.permute.xlu0 1
    %615 = vperm.xlu0 %614, %v92
    %v616 = vpop.permute.xlu0 %615
    %618 = vset.pattern.permute.xlu0 1
    %619 = vperm.xlu0 %618, %v93
    %v620 = vpop.permute.xlu0 %619
    %622 = vset.pattern.permute.xlu0 1
    %623 = vperm.xlu0 %622, %v94
    %v624 = vpop.permute.xlu0 %623
    %626 = vset.pattern.permute.xlu0 1
    %627 = vperm.xlu0 %626, %v95
    %v628 = vpop.permute.xlu0 %627
    %630 = vset.pattern.permute.xlu0 1
    %631 = vperm.xlu0 %630, %v96
    %v632 = vpop.permute.xlu0 %631
    %634 = vset.pattern.permute.xlu0 1
    %635 = vperm.xlu0 %634, %v97
    %v636 = vpop.permute.xlu0 %635
    %638 = vset.pattern.permute.xlu0 1
    %639 = vperm.xlu0 %638, %v98
    %v640 = vpop.permute.xlu0 %639
    %642 = vset.pattern.permute.xlu0 1
    %643 = vperm.xlu0 %642, %v99
    %v644 = vpop.permute.xlu0 %643
    %646 = vset.pattern.permute.xlu0 1
    %647 = vperm.xlu0 %646, %v100
    %v648 = vpop.permute.xlu0 %647
    %650 = vset.pattern.permute.xlu0 1
    %651 = vperm.xlu0 %650, %v101
    %v652 = vpop.permute.xlu0 %651
    %654 = vset.pattern.permute.xlu0 1
    %655 = vperm.xlu0 %654, %v102
    %v656 = vpop.permute.xlu0 %655
    %658 = vset.pattern.permute.xlu0 1
    %659 = vperm.xlu0 %658, %v103
    %v660 = vpop.permute.xlu0 %659
    %662 = vset.pattern.permute.xlu0 1
    %663 = vperm.xlu0 %662, %v104
    %v664 = vpop.permute.xlu0 %663
    %666 = vset.pattern.permute.xlu0 1
    %667 = vperm.xlu0 %666, %v105
    %v668 = vpop.permute.xlu0 %667
    %670 = vset.pattern.permute.xlu0 1
    %671 = vperm.xlu0 %670, %v106
    %v672 = vpop.permute.xlu0 %671
    %674 = vset.pattern.permute.xlu0 1
    %675 = vperm.xlu0 %674, %v107
    %v676 = vpop.permute.xlu0 %675
    %678 = vset.pattern.permute.xlu0 1
    %679 = vperm.xlu0 %678, %v108
    %v680 = vpop.permute.xlu0 %679
    %682 = vset.pattern.permute.xlu0 1
    %683 = vperm.xlu0 %682, %v109
    %v684 = vpop.permute.xlu0 %683
    %686 = vset.pattern.permute.xlu0 1
    %687 = vperm.xlu0 %686, %v110
    %v688 = vpop.permute.xlu0 %687
    %690 = vset.pattern.permute.xlu0 1
    %691 = vperm.xlu0 %690, %v111
    %v692 = vpop.permute.xlu0 %691
    %694 = vset.pattern.permute.xlu0 1
    %695 = vperm.xlu0 %694, %v112
    %v696 = vpop.permute.xlu0 %695
    %698 = vset.pattern.permute.xlu0 1
    %699 = vperm.xlu0 %698, %v113
    %v700 = vpop.permute.xlu0 %699
    %702 = vset.pattern.permute.xlu0 1
    %703 = vperm.xlu0 %702, %v114
    %v704 = vpop.permute.xlu0 %703
    %706 = vset.pattern.permute.xlu0 1
    %707 = vperm.xlu0 %706, %v115
    %v708 = vpop.permute.xlu0 %707
    %710 = vset.pattern.permute.xlu0 1
    %711 = vperm.xlu0 %710, %v116
    %v712 = vpop.permute.xlu0 %711
    %714 = vset.pattern.permute.xlu0 1
    %715 = vperm.xlu0 %714, %v117
    %v716 = vpop.permute.xlu0 %715
    %718 = vset.pattern.permute.xlu0 1
    %719 = vperm.xlu0 %718, %v118
    %v720 = vpop.permute.xlu0 %719
    %722 = vset.pattern.permute.xlu0 1
    %723 = vperm.xlu0 %722, %v119
    %v724 = vpop.permute.xlu0 %723
    %726 = vset.pattern.permute.xlu0 1
    %727 = vperm.xlu0 %726, %v120
    %v728 = vpop.permute.xlu0 %727
    %730 = vset.pattern.permute.xlu0 1
    %731 = vperm.xlu0 %730, %v121
    %v732 = vpop.permute.xlu0 %731
    %734 = vset.pattern.permute.xlu0 1
    %735 = vperm.xlu0 %734, %v122
    %v736 = vpop.permute.xlu0 %735
    %738 = vset.pattern.permute.xlu0 1
    %739 = vperm.xlu0 %738, %v123
    %v740 = vpop.permute.xlu0 %739
    %742 = vset.pattern.permute.xlu0 1
    %743 = vperm.xlu0 %742, %v124
    %v744 = vpop.permute.xlu0 %743
    %746 = vset.pattern.permute.xlu0 1
    %747 = vperm.xlu0 %746, %v125
    %v748 = vpop.permute.xlu0 %747
    %750 = vset.pattern.permute.xlu0 1
    %751 = vperm.xlu0 %750, %v126
    %v752 = vpop.permute.xlu0 %751
    %754 = vset.pattern.permute.xlu0 1
    %755 = vperm.xlu0 %754, %v127
    %v756 = vpop.permute.xlu0 %755
    %758 = vset.pattern.permute.xlu0 1
    %759 = vperm.xlu0 %758, %v128
    %v760 = vpop.permute.xlu0 %759
    %762 = vset.pattern.permute.xlu0 1
    %763 = vperm.xlu0 %762, %v129
    %v764 = vpop.permute.xlu0 %763
    %766 = vset.pattern.permute.xlu0 1
    %767 = vperm.xlu0 %766, %v130
    %v768 = vpop.permute.xlu0 %767
    %770 = vset.pattern.permute.xlu0 1
    %771 = vperm.xlu0 %770, %v131
    %v772 = vpop.permute.xlu0 %771
    %774 = vset.pattern.permute.xlu0 1
    %775 = vperm.xlu0 %774, %v132
    %v776 = vpop.permute.xlu0 %775
    %v778 = vlaneseq
    %v779 = vshrl.u32 %v778, 7
    %v780 = vsub.s32 1, %v779
    %v781 = vrot.slane %v133, %v780
    %v782 = vmul.f32 %v524, %v781
    %v783 = vmul.f32 %v528, %v781
    %v784 = vmul.f32 %v532, %v781
    %v785 = vmul.f32 %v536, %v781
    %v786 = vmul.f32 %v540, %v781
    %v787 = vmul.f32 %v544, %v781
    %v788 = vmul.f32 %v548, %v781
    %v789 = vmul.f32 %v552, %v781
    %v790 = vmul.f32 %v556, %v781
    %v791 = vmul.f32 %v560, %v781
    %v792 = vmul.f32 %v564, %v781
    %v793 = vmul.f32 %v568, %v781
    %v794 = vmul.f32 %v572, %v781
    %v795 = vmul.f32 %v576, %v781
    %v796 = vmul.f32 %v580, %v781
    %v797 = vmul.f32 %v584, %v781
    %v798 = vmul.f32 %v588, %v781
    %v799 = vmul.f32 %v592, %v781
    %v800 = vmul.f32 %v596, %v781
    %v801 = vmul.f32 %v600, %v781
    %v802 = vmul.f32 %v604, %v781
    %v803 = vmul.f32 %v608, %v781
    %v804 = vmul.f32 %v612, %v781
    %v805 = vmul.f32 %v616, %v781
    %v806 = vmul.f32 %v620, %v781
    %v807 = vmul.f32 %v624, %v781
    %v808 = vmul.f32 %v628, %v781
    %v809 = vmul.f32 %v632, %v781
    %v810 = vmul.f32 %v636, %v781
    %v811 = vmul.f32 %v640, %v781
    %v812 = vmul.f32 %v644, %v781
    %v813 = vmul.f32 %v648, %v781
    %v814 = vmul.f32 %v652, %v781
    %v815 = vmul.f32 %v656, %v781
    %v816 = vmul.f32 %v660, %v781
    %v817 = vmul.f32 %v664, %v781
    %v818 = vmul.f32 %v668, %v781
    %v819 = vmul.f32 %v672, %v781
    %v820 = vmul.f32 %v676, %v781
    %v821 = vmul.f32 %v680, %v781
    %v822 = vmul.f32 %v684, %v781
    %v823 = vmul.f32 %v688, %v781
    %v824 = vmul.f32 %v692, %v781
    %v825 = vmul.f32 %v696, %v781
    %v826 = vmul.f32 %v700, %v781
    %v827 = vmul.f32 %v704, %v781
    %v828 = vmul.f32 %v708, %v781
    %v829 = vmul.f32 %v712, %v781
    %v830 = vmul.f32 %v716, %v781
    %v831 = vmul.f32 %v720, %v781
    %v832 = vmul.f32 %v724, %v781
    %v833 = vmul.f32 %v728, %v781
    %v834 = vmul.f32 %v732, %v781
    %v835 = vmul.f32 %v736, %v781
    %v836 = vmul.f32 %v740, %v781
    %v837 = vmul.f32 %v744, %v781
    %v838 = vmul.f32 %v748, %v781
    %v839 = vmul.f32 %v752, %v781
    %v840 = vmul.f32 %v756, %v781
    %v841 = vmul.f32 %v760, %v781
    %v842 = vmul.f32 %v764, %v781
    %v843 = vmul.f32 %v768, %v781
    %v844 = vmul.f32 %v772, %v781
    %v845 = vmul.f32 %v776, %v781
    %v846 = vadd.f32 %v458, %v782
    %v847 = vadd.f32 %v459, %v783
    %v848 = vadd.f32 %v460, %v784
    %v849 = vadd.f32 %v461, %v785
    %v850 = vadd.f32 %v462, %v786
    %v851 = vadd.f32 %v463, %v787
    %v852 = vadd.f32 %v464, %v788
    %v853 = vadd.f32 %v465, %v789
    %v854 = vadd.f32 %v466, %v790
    %v855 = vadd.f32 %v467, %v791
    %v856 = vadd.f32 %v468, %v792
    %v857 = vadd.f32 %v469, %v793
    %v858 = vadd.f32 %v470, %v794
    %v859 = vadd.f32 %v471, %v795
    %v860 = vadd.f32 %v472, %v796
    %v861 = vadd.f32 %v473, %v797
    %v862 = vadd.f32 %v474, %v798
    %v863 = vadd.f32 %v475, %v799
    %v864 = vadd.f32 %v476, %v800
    %v865 = vadd.f32 %v477, %v801
    %v866 = vadd.f32 %v478, %v802
    %v867 = vadd.f32 %v479, %v803
    %v868 = vadd.f32 %v480, %v804
    %v869 = vadd.f32 %v481, %v805
    %v870 = vadd.f32 %v482, %v806
    %v871 = vadd.f32 %v483, %v807
    %v872 = vadd.f32 %v484, %v808
    %v873 = vadd.f32 %v485, %v809
    %v874 = vadd.f32 %v486, %v810
    %v875 = vadd.f32 %v487, %v811
    %v876 = vadd.f32 %v488, %v812
    %v877 = vadd.f32 %v489, %v813
    %v878 = vadd.f32 %v490, %v814
    %v879 = vadd.f32 %v491, %v815
    %v880 = vadd.f32 %v492, %v816
    %v881 = vadd.f32 %v493, %v817
    %v882 = vadd.f32 %v494, %v818
    %v883 = vadd.f32 %v495, %v819
    %v884 = vadd.f32 %v496, %v820
    %v885 = vadd.f32 %v497, %v821
    %v886 = vadd.f32 %v498, %v822
    %v887 = vadd.f32 %v499, %v823
    %v888 = vadd.f32 %v500, %v824
    %v889 = vadd.f32 %v501, %v825
    %v890 = vadd.f32 %v502, %v826
    %v891 = vadd.f32 %v503, %v827
    %v892 = vadd.f32 %v504, %v828
    %v893 = vadd.f32 %v505, %v829
    %v894 = vadd.f32 %v506, %v830
    %v895 = vadd.f32 %v507, %v831
    %v896 = vadd.f32 %v508, %v832
    %v897 = vadd.f32 %v509, %v833
    %v898 = vadd.f32 %v510, %v834
    %v899 = vadd.f32 %v511, %v835
    %v900 = vadd.f32 %v512, %v836
    %v901 = vadd.f32 %v513, %v837
    %v902 = vadd.f32 %v514, %v838
    %v903 = vadd.f32 %v515, %v839
    %v904 = vadd.f32 %v516, %v840
    %v905 = vadd.f32 %v517, %v841
    %v906 = vadd.f32 %v518, %v842
    %v907 = vadd.f32 %v519, %v843
    %v908 = vadd.f32 %v520, %v844
    %v909 = vadd.f32 %v521, %v845
    %910 = vset.pattern.permute.xlu0 2
    %911 = vperm.xlu0 %910, %v69
    %v912 = vpop.permute.xlu0 %911
    %914 = vset.pattern.permute.xlu0 2
    %915 = vperm.xlu0 %914, %v70
    %v916 = vpop.permute.xlu0 %915
    %918 = vset.pattern.permute.xlu0 2
    %919 = vperm.xlu0 %918, %v71
    %v920 = vpop.permute.xlu0 %919
    %922 = vset.pattern.permute.xlu0 2
    %923 = vperm.xlu0 %922, %v72
    %v924 = vpop.permute.xlu0 %923
    %926 = vset.pattern.permute.xlu0 2
    %927 = vperm.xlu0 %926, %v73
    %v928 = vpop.permute.xlu0 %927
    %930 = vset.pattern.permute.xlu0 2
    %931 = vperm.xlu0 %930, %v74
    %v932 = vpop.permute.xlu0 %931
    %934 = vset.pattern.permute.xlu0 2
    %935 = vperm.xlu0 %934, %v75
    %v936 = vpop.permute.xlu0 %935
    %938 = vset.pattern.permute.xlu0 2
    %939 = vperm.xlu0 %938, %v76
    %v940 = vpop.permute.xlu0 %939
    %942 = vset.pattern.permute.xlu0 2
    %943 = vperm.xlu0 %942, %v77
    %v944 = vpop.permute.xlu0 %943
    %946 = vset.pattern.permute.xlu0 2
    %947 = vperm.xlu0 %946, %v78
    %v948 = vpop.permute.xlu0 %947
    %950 = vset.pattern.permute.xlu0 2
    %951 = vperm.xlu0 %950, %v79
    %v952 = vpop.permute.xlu0 %951
    %954 = vset.pattern.permute.xlu0 2
    %955 = vperm.xlu0 %954, %v80
    %v956 = vpop.permute.xlu0 %955
    %958 = vset.pattern.permute.xlu0 2
    %959 = vperm.xlu0 %958, %v81
    %v960 = vpop.permute.xlu0 %959
    %962 = vset.pattern.permute.xlu0 2
    %963 = vperm.xlu0 %962, %v82
    %v964 = vpop.permute.xlu0 %963
    %966 = vset.pattern.permute.xlu0 2
    %967 = vperm.xlu0 %966, %v83
    %v968 = vpop.permute.xlu0 %967
    %970 = vset.pattern.permute.xlu0 2
    %971 = vperm.xlu0 %970, %v84
    %v972 = vpop.permute.xlu0 %971
    %974 = vset.pattern.permute.xlu0 2
    %975 = vperm.xlu0 %974, %v85
    %v976 = vpop.permute.xlu0 %975
    %978 = vset.pattern.permute.xlu0 2
    %979 = vperm.xlu0 %978, %v86
    %v980 = vpop.permute.xlu0 %979
    %982 = vset.pattern.permute.xlu0 2
    %983 = vperm.xlu0 %982, %v87
    %v984 = vpop.permute.xlu0 %983
    %986 = vset.pattern.permute.xlu0 2
    %987 = vperm.xlu0 %986, %v88
    %v988 = vpop.permute.xlu0 %987
    %990 = vset.pattern.permute.xlu0 2
    %991 = vperm.xlu0 %990, %v89
    %v992 = vpop.permute.xlu0 %991
    %994 = vset.pattern.permute.xlu0 2
    %995 = vperm.xlu0 %994, %v90
    %v996 = vpop.permute.xlu0 %995
    %998 = vset.pattern.permute.xlu0 2
    %999 = vperm.xlu0 %998, %v91
    %v1000 = vpop.permute.xlu0 %999
    %1002 = vset.pattern.permute.xlu0 2
    %1003 = vperm.xlu0 %1002, %v92
    %v1004 = vpop.permute.xlu0 %1003
    %1006 = vset.pattern.permute.xlu0 2
    %1007 = vperm.xlu0 %1006, %v93
    %v1008 = vpop.permute.xlu0 %1007
    %1010 = vset.pattern.permute.xlu0 2
    %1011 = vperm.xlu0 %1010, %v94
    %v1012 = vpop.permute.xlu0 %1011
    %1014 = vset.pattern.permute.xlu0 2
    %1015 = vperm.xlu0 %1014, %v95
    %v1016 = vpop.permute.xlu0 %1015
    %1018 = vset.pattern.permute.xlu0 2
    %1019 = vperm.xlu0 %1018, %v96
    %v1020 = vpop.permute.xlu0 %1019
    %1022 = vset.pattern.permute.xlu0 2
    %1023 = vperm.xlu0 %1022, %v97
    %v1024 = vpop.permute.xlu0 %1023
    %1026 = vset.pattern.permute.xlu0 2
    %1027 = vperm.xlu0 %1026, %v98
    %v1028 = vpop.permute.xlu0 %1027
    %1030 = vset.pattern.permute.xlu0 2
    %1031 = vperm.xlu0 %1030, %v99
    %v1032 = vpop.permute.xlu0 %1031
    %1034 = vset.pattern.permute.xlu0 2
    %1035 = vperm.xlu0 %1034, %v100
    %v1036 = vpop.permute.xlu0 %1035
    %1038 = vset.pattern.permute.xlu0 2
    %1039 = vperm.xlu0 %1038, %v101
    %v1040 = vpop.permute.xlu0 %1039
    %1042 = vset.pattern.permute.xlu0 2
    %1043 = vperm.xlu0 %1042, %v102
    %v1044 = vpop.permute.xlu0 %1043
    %1046 = vset.pattern.permute.xlu0 2
    %1047 = vperm.xlu0 %1046, %v103
    %v1048 = vpop.permute.xlu0 %1047
    %1050 = vset.pattern.permute.xlu0 2
    %1051 = vperm.xlu0 %1050, %v104
    %v1052 = vpop.permute.xlu0 %1051
    %1054 = vset.pattern.permute.xlu0 2
    %1055 = vperm.xlu0 %1054, %v105
    %v1056 = vpop.permute.xlu0 %1055
    %1058 = vset.pattern.permute.xlu0 2
    %1059 = vperm.xlu0 %1058, %v106
    %v1060 = vpop.permute.xlu0 %1059
    %1062 = vset.pattern.permute.xlu0 2
    %1063 = vperm.xlu0 %1062, %v107
    %v1064 = vpop.permute.xlu0 %1063
    %1066 = vset.pattern.permute.xlu0 2
    %1067 = vperm.xlu0 %1066, %v108
    %v1068 = vpop.permute.xlu0 %1067
    %1070 = vset.pattern.permute.xlu0 2
    %1071 = vperm.xlu0 %1070, %v109
    %v1072 = vpop.permute.xlu0 %1071
    %1074 = vset.pattern.permute.xlu0 2
    %1075 = vperm.xlu0 %1074, %v110
    %v1076 = vpop.permute.xlu0 %1075
    %1078 = vset.pattern.permute.xlu0 2
    %1079 = vperm.xlu0 %1078, %v111
    %v1080 = vpop.permute.xlu0 %1079
    %1082 = vset.pattern.permute.xlu0 2
    %1083 = vperm.xlu0 %1082, %v112
    %v1084 = vpop.permute.xlu0 %1083
    %1086 = vset.pattern.permute.xlu0 2
    %1087 = vperm.xlu0 %1086, %v113
    %v1088 = vpop.permute.xlu0 %1087
    %1090 = vset.pattern.permute.xlu0 2
    %1091 = vperm.xlu0 %1090, %v114
    %v1092 = vpop.permute.xlu0 %1091
    %1094 = vset.pattern.permute.xlu0 2
    %1095 = vperm.xlu0 %1094, %v115
    %v1096 = vpop.permute.xlu0 %1095
    %1098 = vset.pattern.permute.xlu0 2
    %1099 = vperm.xlu0 %1098, %v116
    %v1100 = vpop.permute.xlu0 %1099
    %1102 = vset.pattern.permute.xlu0 2
    %1103 = vperm.xlu0 %1102, %v117
    %v1104 = vpop.permute.xlu0 %1103
    %1106 = vset.pattern.permute.xlu0 2
    %1107 = vperm.xlu0 %1106, %v118
    %v1108 = vpop.permute.xlu0 %1107
    %1110 = vset.pattern.permute.xlu0 2
    %1111 = vperm.xlu0 %1110, %v119
    %v1112 = vpop.permute.xlu0 %1111
    %1114 = vset.pattern.permute.xlu0 2
    %1115 = vperm.xlu0 %1114, %v120
    %v1116 = vpop.permute.xlu0 %1115
    %1118 = vset.pattern.permute.xlu0 2
    %1119 = vperm.xlu0 %1118, %v121
    %v1120 = vpop.permute.xlu0 %1119
    %1122 = vset.pattern.permute.xlu0 2
    %1123 = vperm.xlu0 %1122, %v122
    %v1124 = vpop.permute.xlu0 %1123
    %1126 = vset.pattern.permute.xlu0 2
    %1127 = vperm.xlu0 %1126, %v123
    %v1128 = vpop.permute.xlu0 %1127
    %1130 = vset.pattern.permute.xlu0 2
    %1131 = vperm.xlu0 %1130, %v124
    %v1132 = vpop.permute.xlu0 %1131
    %1134 = vset.pattern.permute.xlu0 2
    %1135 = vperm.xlu0 %1134, %v125
    %v1136 = vpop.permute.xlu0 %1135
    %1138 = vset.pattern.permute.xlu0 2
    %1139 = vperm.xlu0 %1138, %v126
    %v1140 = vpop.permute.xlu0 %1139
    %1142 = vset.pattern.permute.xlu0 2
    %1143 = vperm.xlu0 %1142, %v127
    %v1144 = vpop.permute.xlu0 %1143
    %1146 = vset.pattern.permute.xlu0 2
    %1147 = vperm.xlu0 %1146, %v128
    %v1148 = vpop.permute.xlu0 %1147
    %1150 = vset.pattern.permute.xlu0 2
    %1151 = vperm.xlu0 %1150, %v129
    %v1152 = vpop.permute.xlu0 %1151
    %1154 = vset.pattern.permute.xlu0 2
    %1155 = vperm.xlu0 %1154, %v130
    %v1156 = vpop.permute.xlu0 %1155
    %1158 = vset.pattern.permute.xlu0 2
    %1159 = vperm.xlu0 %1158, %v131
    %v1160 = vpop.permute.xlu0 %1159
    %1162 = vset.pattern.permute.xlu0 2
    %1163 = vperm.xlu0 %1162, %v132
    %v1164 = vpop.permute.xlu0 %1163
    %v1166 = vlaneseq
    %v1167 = vshrl.u32 %v1166, 7
    %v1168 = vsub.s32 2, %v1167
    %v1169 = vrot.slane %v133, %v1168
    %v1170 = vmul.f32 %v912, %v1169
    %v1171 = vmul.f32 %v916, %v1169
    %v1172 = vmul.f32 %v920, %v1169
    %v1173 = vmul.f32 %v924, %v1169
    %v1174 = vmul.f32 %v928, %v1169
    %v1175 = vmul.f32 %v932, %v1169
    %v1176 = vmul.f32 %v936, %v1169
    %v1177 = vmul.f32 %v940, %v1169
    %v1178 = vmul.f32 %v944, %v1169
    %v1179 = vmul.f32 %v948, %v1169
    %v1180 = vmul.f32 %v952, %v1169
    %v1181 = vmul.f32 %v956, %v1169
    %v1182 = vmul.f32 %v960, %v1169
    %v1183 = vmul.f32 %v964, %v1169
    %v1184 = vmul.f32 %v968, %v1169
    %v1185 = vmul.f32 %v972, %v1169
    %v1186 = vmul.f32 %v976, %v1169
    %v1187 = vmul.f32 %v980, %v1169
    %v1188 = vmul.f32 %v984, %v1169
    %v1189 = vmul.f32 %v988, %v1169
    %v1190 = vmul.f32 %v992, %v1169
    %v1191 = vmul.f32 %v996, %v1169
    %v1192 = vmul.f32 %v1000, %v1169
    %v1193 = vmul.f32 %v1004, %v1169
    %v1194 = vmul.f32 %v1008, %v1169
    %v1195 = vmul.f32 %v1012, %v1169
    %v1196 = vmul.f32 %v1016, %v1169
    %v1197 = vmul.f32 %v1020, %v1169
    %v1198 = vmul.f32 %v1024, %v1169
    %v1199 = vmul.f32 %v1028, %v1169
    %v1200 = vmul.f32 %v1032, %v1169
    %v1201 = vmul.f32 %v1036, %v1169
    %v1202 = vmul.f32 %v1040, %v1169
    %v1203 = vmul.f32 %v1044, %v1169
    %v1204 = vmul.f32 %v1048, %v1169
    %v1205 = vmul.f32 %v1052, %v1169
    %v1206 = vmul.f32 %v1056, %v1169
    %v1207 = vmul.f32 %v1060, %v1169
    %v1208 = vmul.f32 %v1064, %v1169
    %v1209 = vmul.f32 %v1068, %v1169
    %v1210 = vmul.f32 %v1072, %v1169
    %v1211 = vmul.f32 %v1076, %v1169
    %v1212 = vmul.f32 %v1080, %v1169
    %v1213 = vmul.f32 %v1084, %v1169
    %v1214 = vmul.f32 %v1088, %v1169
    %v1215 = vmul.f32 %v1092, %v1169
    %v1216 = vmul.f32 %v1096, %v1169
    %v1217 = vmul.f32 %v1100, %v1169
    %v1218 = vmul.f32 %v1104, %v1169
    %v1219 = vmul.f32 %v1108, %v1169
    %v1220 = vmul.f32 %v1112, %v1169
    %v1221 = vmul.f32 %v1116, %v1169
    %v1222 = vmul.f32 %v1120, %v1169
    %v1223 = vmul.f32 %v1124, %v1169
    %v1224 = vmul.f32 %v1128, %v1169
    %v1225 = vmul.f32 %v1132, %v1169
    %v1226 = vmul.f32 %v1136, %v1169
    %v1227 = vmul.f32 %v1140, %v1169
    %v1228 = vmul.f32 %v1144, %v1169
    %v1229 = vmul.f32 %v1148, %v1169
    %v1230 = vmul.f32 %v1152, %v1169
    %v1231 = vmul.f32 %v1156, %v1169
    %v1232 = vmul.f32 %v1160, %v1169
    %v1233 = vmul.f32 %v1164, %v1169
    %v1234 = vadd.f32 %v846, %v1170
    %v1235 = vadd.f32 %v847, %v1171
    %v1236 = vadd.f32 %v848, %v1172
    %v1237 = vadd.f32 %v849, %v1173
    %v1238 = vadd.f32 %v850, %v1174
    %v1239 = vadd.f32 %v851, %v1175
    %v1240 = vadd.f32 %v852, %v1176
    %v1241 = vadd.f32 %v853, %v1177
    %v1242 = vadd.f32 %v854, %v1178
    %v1243 = vadd.f32 %v855, %v1179
    %v1244 = vadd.f32 %v856, %v1180
    %v1245 = vadd.f32 %v857, %v1181
    %v1246 = vadd.f32 %v858, %v1182
    %v1247 = vadd.f32 %v859, %v1183
    %v1248 = vadd.f32 %v860, %v1184
    %v1249 = vadd.f32 %v861, %v1185
    %v1250 = vadd.f32 %v862, %v1186
    %v1251 = vadd.f32 %v863, %v1187
    %v1252 = vadd.f32 %v864, %v1188
    %v1253 = vadd.f32 %v865, %v1189
    %v1254 = vadd.f32 %v866, %v1190
    %v1255 = vadd.f32 %v867, %v1191
    %v1256 = vadd.f32 %v868, %v1192
    %v1257 = vadd.f32 %v869, %v1193
    %v1258 = vadd.f32 %v870, %v1194
    %v1259 = vadd.f32 %v871, %v1195
    %v1260 = vadd.f32 %v872, %v1196
    %v1261 = vadd.f32 %v873, %v1197
    %v1262 = vadd.f32 %v874, %v1198
    %v1263 = vadd.f32 %v875, %v1199
    %v1264 = vadd.f32 %v876, %v1200
    %v1265 = vadd.f32 %v877, %v1201
    %v1266 = vadd.f32 %v878, %v1202
    %v1267 = vadd.f32 %v879, %v1203
    %v1268 = vadd.f32 %v880, %v1204
    %v1269 = vadd.f32 %v881, %v1205
    %v1270 = vadd.f32 %v882, %v1206
    %v1271 = vadd.f32 %v883, %v1207
    %v1272 = vadd.f32 %v884, %v1208
    %v1273 = vadd.f32 %v885, %v1209
    %v1274 = vadd.f32 %v886, %v1210
    %v1275 = vadd.f32 %v887, %v1211
    %v1276 = vadd.f32 %v888, %v1212
    %v1277 = vadd.f32 %v889, %v1213
    %v1278 = vadd.f32 %v890, %v1214
    %v1279 = vadd.f32 %v891, %v1215
    %v1280 = vadd.f32 %v892, %v1216
    %v1281 = vadd.f32 %v893, %v1217
    %v1282 = vadd.f32 %v894, %v1218
    %v1283 = vadd.f32 %v895, %v1219
    %v1284 = vadd.f32 %v896, %v1220
    %v1285 = vadd.f32 %v897, %v1221
    %v1286 = vadd.f32 %v898, %v1222
    %v1287 = vadd.f32 %v899, %v1223
    %v1288 = vadd.f32 %v900, %v1224
    %v1289 = vadd.f32 %v901, %v1225
    %v1290 = vadd.f32 %v902, %v1226
    %v1291 = vadd.f32 %v903, %v1227
    %v1292 = vadd.f32 %v904, %v1228
    %v1293 = vadd.f32 %v905, %v1229
    %v1294 = vadd.f32 %v906, %v1230
    %v1295 = vadd.f32 %v907, %v1231
    %v1296 = vadd.f32 %v908, %v1232
    %v1297 = vadd.f32 %v909, %v1233
    %v1298 = vld [vmem:[%s3] sm:$0x1]
    %v1300 = vlaneseq
    %v1301 = vshrl.u32 %v1300, 7
    %v1302 = vsub.s32 0, %v1301
    %v1303 = vrot.slane %v1298, %v1302
    %v1305 = vadd.f32 %v1234, %v1303
    %v1306 = vadd.f32 %v1235, %v1303
    %v1307 = vadd.f32 %v1236, %v1303
    %v1308 = vadd.f32 %v1237, %v1303
    %v1309 = vadd.f32 %v1238, %v1303
    %v1310 = vadd.f32 %v1239, %v1303
    %v1311 = vadd.f32 %v1240, %v1303
    %v1312 = vadd.f32 %v1241, %v1303
    %v1313 = vadd.f32 %v1242, %v1303
    %v1314 = vadd.f32 %v1243, %v1303
    %v1315 = vadd.f32 %v1244, %v1303
    %v1316 = vadd.f32 %v1245, %v1303
    %v1317 = vadd.f32 %v1246, %v1303
    %v1318 = vadd.f32 %v1247, %v1303
    %v1319 = vadd.f32 %v1248, %v1303
    %v1320 = vadd.f32 %v1249, %v1303
    %v1321 = vadd.f32 %v1250, %v1303
    %v1322 = vadd.f32 %v1251, %v1303
    %v1323 = vadd.f32 %v1252, %v1303
    %v1324 = vadd.f32 %v1253, %v1303
    %v1325 = vadd.f32 %v1254, %v1303
    %v1326 = vadd.f32 %v1255, %v1303
    %v1327 = vadd.f32 %v1256, %v1303
    %v1328 = vadd.f32 %v1257, %v1303
    %v1329 = vadd.f32 %v1258, %v1303
    %v1330 = vadd.f32 %v1259, %v1303
    %v1331 = vadd.f32 %v1260, %v1303
    %v1332 = vadd.f32 %v1261, %v1303
    %v1333 = vadd.f32 %v1262, %v1303
    %v1334 = vadd.f32 %v1263, %v1303
    %v1335 = vadd.f32 %v1264, %v1303
    %v1336 = vadd.f32 %v1265, %v1303
    %v1337 = vadd.f32 %v1266, %v1303
    %v1338 = vadd.f32 %v1267, %v1303
    %v1339 = vadd.f32 %v1268, %v1303
    %v1340 = vadd.f32 %v1269, %v1303
    %v1341 = vadd.f32 %v1270, %v1303
    %v1342 = vadd.f32 %v1271, %v1303
    %v1343 = vadd.f32 %v1272, %v1303
    %v1344 = vadd.f32 %v1273, %v1303
    %v1345 = vadd.f32 %v1274, %v1303
    %v1346 = vadd.f32 %v1275, %v1303
    %v1347 = vadd.f32 %v1276, %v1303
    %v1348 = vadd.f32 %v1277, %v1303
    %v1349 = vadd.f32 %v1278, %v1303
    %v1350 = vadd.f32 %v1279, %v1303
    %v1351 = vadd.f32 %v1280, %v1303
    %v1352 = vadd.f32 %v1281, %v1303
    %v1353 = vadd.f32 %v1282, %v1303
    %v1354 = vadd.f32 %v1283, %v1303
    %v1355 = vadd.f32 %v1284, %v1303
    %v1356 = vadd.f32 %v1285, %v1303
    %v1357 = vadd.f32 %v1286, %v1303
    %v1358 = vadd.f32 %v1287, %v1303
    %v1359 = vadd.f32 %v1288, %v1303
    %v1360 = vadd.f32 %v1289, %v1303
    %v1361 = vadd.f32 %v1290, %v1303
    %v1362 = vadd.f32 %v1291, %v1303
    %v1363 = vadd.f32 %v1292, %v1303
    %v1364 = vadd.f32 %v1293, %v1303
    %v1365 = vadd.f32 %v1294, %v1303
    %v1366 = vadd.f32 %v1295, %v1303
    %v1367 = vadd.f32 %v1296, %v1303
    %v1368 = vadd.f32 %v1297, %v1303
    %v1369 = vmax.f32 %v1305, 0.0
    %v1370 = vmax.f32 %v1306, 0.0
    %v1371 = vmax.f32 %v1307, 0.0
    %v1372 = vmax.f32 %v1308, 0.0
    %v1373 = vmax.f32 %v1309, 0.0
    %v1374 = vmax.f32 %v1310, 0.0
    %v1375 = vmax.f32 %v1311, 0.0
    %v1376 = vmax.f32 %v1312, 0.0
    %v1377 = vmax.f32 %v1313, 0.0
    %v1378 = vmax.f32 %v1314, 0.0
    %v1379 = vmax.f32 %v1315, 0.0
    %v1380 = vmax.f32 %v1316, 0.0
    %v1381 = vmax.f32 %v1317, 0.0
    %v1382 = vmax.f32 %v1318, 0.0
    %v1383 = vmax.f32 %v1319, 0.0
    %v1384 = vmax.f32 %v1320, 0.0
    %v1385 = vmax.f32 %v1321, 0.0
    %v1386 = vmax.f32 %v1322, 0.0
    %v1387 = vmax.f32 %v1323, 0.0
    %v1388 = vmax.f32 %v1324, 0.0
    %v1389 = vmax.f32 %v1325, 0.0
    %v1390 = vmax.f32 %v1326, 0.0
    %v1391 = vmax.f32 %v1327, 0.0
    %v1392 = vmax.f32 %v1328, 0.0
    %v1393 = vmax.f32 %v1329, 0.0
    %v1394 = vmax.f32 %v1330, 0.0
    %v1395 = vmax.f32 %v1331, 0.0
    %v1396 = vmax.f32 %v1332, 0.0
    %v1397 = vmax.f32 %v1333, 0.0
    %v1398 = vmax.f32 %v1334, 0.0
    %v1399 = vmax.f32 %v1335, 0.0
    %v1400 = vmax.f32 %v1336, 0.0
    %v1401 = vmax.f32 %v1337, 0.0
    %v1402 = vmax.f32 %v1338, 0.0
    %v1403 = vmax.f32 %v1339, 0.0
    %v1404 = vmax.f32 %v1340, 0.0
    %v1405 = vmax.f32 %v1341, 0.0
    %v1406 = vmax.f32 %v1342, 0.0
    %v1407 = vmax.f32 %v1343, 0.0
    %v1408 = vmax.f32 %v1344, 0.0
    %v1409 = vmax.f32 %v1345, 0.0
    %v1410 = vmax.f32 %v1346, 0.0
    %v1411 = vmax.f32 %v1347, 0.0
    %v1412 = vmax.f32 %v1348, 0.0
    %v1413 = vmax.f32 %v1349, 0.0
    %v1414 = vmax.f32 %v1350, 0.0
    %v1415 = vmax.f32 %v1351, 0.0
    %v1416 = vmax.f32 %v1352, 0.0
    %v1417 = vmax.f32 %v1353, 0.0
    %v1418 = vmax.f32 %v1354, 0.0
    %v1419 = vmax.f32 %v1355, 0.0
    %v1420 = vmax.f32 %v1356, 0.0
    %v1421 = vmax.f32 %v1357, 0.0
    %v1422 = vmax.f32 %v1358, 0.0
    %v1423 = vmax.f32 %v1359, 0.0
    %v1424 = vmax.f32 %v1360, 0.0
    %v1425 = vmax.f32 %v1361, 0.0
    %v1426 = vmax.f32 %v1362, 0.0
    %v1427 = vmax.f32 %v1363, 0.0
    %v1428 = vmax.f32 %v1364, 0.0
    %v1429 = vmax.f32 %v1365, 0.0
    %v1430 = vmax.f32 %v1366, 0.0
    %v1431 = vmax.f32 %v1367, 0.0
    %v1432 = vmax.f32 %v1368, 0.0
    %v1433 = vld [vmem:[%s4] sm:$0xff]
    %v1434 = vld [vmem:[%s4 + $0x8] sm:$0xff]
    %v1435 = vld [vmem:[%s4 + $0x10] sm:$0xff]
    %v1436 = vld [vmem:[%s4 + $0x18] sm:$0xff]
    %v1437 = vld [vmem:[%s4 + $0x20] sm:$0xff]
    %v1438 = vld [vmem:[%s4 + $0x28] sm:$0xff]
    %v1439 = vld [vmem:[%s4 + $0x30] sm:$0xff]
    %v1440 = vld [vmem:[%s4 + $0x38] sm:$0xff]
    %v1441 = vld [vmem:[%s5] sm:$0x1]
    %v1443 = vlaneseq
    %v1444 = vshrl.u32 %v1443, 7
    %v1445 = vsub.s32 0, %v1444
    %v1446 = vrot.slane %v1441, %v1445
    %vm1448 = vcmask 523264
    %v1450 = vsel %vm1448, %v1369, 0
    %v1453 = vsel %vm1448, %v1370, 0
    %v1456 = vsel %vm1448, %v1371, 0
    %v1459 = vsel %vm1448, %v1372, 0
    %v1462 = vsel %vm1448, %v1373, 0
    %v1465 = vsel %vm1448, %v1374, 0
    %v1468 = vsel %vm1448, %v1375, 0
    %v1471 = vsel %vm1448, %v1376, 0
    %v1474 = vsel %vm1448, %v1377, 0
    %v1477 = vsel %vm1448, %v1378, 0
    %v1480 = vsel %vm1448, %v1379, 0
    %v1483 = vsel %vm1448, %v1380, 0
    %v1486 = vsel %vm1448, %v1381, 0
    %v1489 = vsel %vm1448, %v1382, 0
    %v1492 = vsel %vm1448, %v1383, 0
    %v1495 = vsel %vm1448, %v1384, 0
    %v1498 = vsel %vm1448, %v1385, 0
    %v1501 = vsel %vm1448, %v1386, 0
    %v1504 = vsel %vm1448, %v1387, 0
    %v1507 = vsel %vm1448, %v1388, 0
    %v1510 = vsel %vm1448, %v1389, 0
    %v1513 = vsel %vm1448, %v1390, 0
    %v1516 = vsel %vm1448, %v1391, 0
    %v1519 = vsel %vm1448, %v1392, 0
    %v1522 = vsel %vm1448, %v1393, 0
    %v1525 = vsel %vm1448, %v1394, 0
    %v1528 = vsel %vm1448, %v1395, 0
    %v1531 = vsel %vm1448, %v1396, 0
    %v1534 = vsel %vm1448, %v1397, 0
    %v1537 = vsel %vm1448, %v1398, 0
    %v1540 = vsel %vm1448, %v1399, 0
    %v1543 = vsel %vm1448, %v1400, 0
    %v1546 = vsel %vm1448, %v1401, 0
    %v1549 = vsel %vm1448, %v1402, 0
    %v1552 = vsel %vm1448, %v1403, 0
    %v1555 = vsel %vm1448, %v1404, 0
    %v1558 = vsel %vm1448, %v1405, 0
    %v1561 = vsel %vm1448, %v1406, 0
    %v1564 = vsel %vm1448, %v1407, 0
    %v1567 = vsel %vm1448, %v1408, 0
    %v1570 = vsel %vm1448, %v1409, 0
    %v1573 = vsel %vm1448, %v1410, 0
    %v1576 = vsel %vm1448, %v1411, 0
    %v1579 = vsel %vm1448, %v1412, 0
    %v1582 = vsel %vm1448, %v1413, 0
    %v1585 = vsel %vm1448, %v1414, 0
    %v1588 = vsel %vm1448, %v1415, 0
    %v1591 = vsel %vm1448, %v1416, 0
    %v1594 = vsel %vm1448, %v1417, 0
    %v1597 = vsel %vm1448, %v1418, 0
    %v1600 = vsel %vm1448, %v1419, 0
    %v1603 = vsel %vm1448, %v1420, 0
    %v1606 = vsel %vm1448, %v1421, 0
    %v1609 = vsel %vm1448, %v1422, 0
    %v1612 = vsel %vm1448, %v1423, 0
    %v1615 = vsel %vm1448, %v1424, 0
    %v1618 = vsel %vm1448, %v1425, 0
    %v1621 = vsel %vm1448, %v1426, 0
    %v1624 = vsel %vm1448, %v1427, 0
    %v1627 = vsel %vm1448, %v1428, 0
    %v1630 = vsel %vm1448, %v1429, 0
    %v1633 = vsel %vm1448, %v1430, 0
    %v1636 = vsel %vm1448, %v1431, 0
    %v1639 = vsel %vm1448, %v1432, 0
    %1641 = vmatprep.subr.mxu0 0.0
    %1642 = vmatpush1.msra.mxu0 %v1433
    %1643 = vmatprep.subr.mxu0 0.0
    %1644 = vmatpush1.msra.mxu0 %v1434
    %1645 = vmatprep.subr.mxu0 0.0
    %1646 = vmatpush1.msra.mxu0 %v1435
    %1647 = vmatprep.subr.mxu0 0.0
    %1648 = vmatpush1.msra.mxu0 %v1436
    %1649 = vmatprep.subr.mxu0 0.0
    %1650 = vmatpush1.msra.mxu0 %v1437
    %1651 = vmatprep.subr.mxu0 0.0
    %1652 = vmatpush1.msra.mxu0 %v1438
    %1653 = vmatprep.subr.mxu0 0.0
    %1654 = vmatpush1.msra.mxu0 %v1439
    %1655 = vmatprep.subr.mxu0 0.0
    %1656 = vmatpush1.msra.mxu0 %v1440
    %1657 = vmatprep.subr.mxu0 0.0
    %1658 = vmatpush1.msra.mxu0 0.0
    %1659 = vmatprep.subr.mxu0 0.0
    %1660 = vmatpush1.msra.mxu0 0.0
    %1661 = vmatprep.subr.mxu0 0.0
    %1662 = vmatpush1.msra.mxu0 0.0
    %1663 = vmatprep.subr.mxu0 0.0
    %1664 = vmatpush1.msra.mxu0 0.0
    %1665 = vmatprep.subr.mxu0 0.0
    %1666 = vmatpush1.msra.mxu0 0.0
    %1667 = vmatprep.subr.mxu0 0.0
    %1668 = vmatpush1.msra.mxu0 0.0
    %1669 = vmatprep.subr.mxu0 0.0
    %1670 = vmatpush1.msra.mxu0 0.0
    %1671 = vmatprep.subr.mxu0 0.0
    %1672 = vmatpush1.msra.mxu0 0.0
    %1673 = vmatprep.subr.mxu0 0.0
    %1674 = vmatpush1.msra.mxu0 0.0
    %1675 = vmatprep.subr.mxu0 0.0
    %1676 = vmatpush1.msra.mxu0 0.0
    %1677 = vmatprep.subr.mxu0 0.0
    %1678 = vmatpush1.msra.mxu0 0.0
    %1679 = vmatprep.subr.mxu0 0.0
    %1680 = vmatpush1.msra.mxu0 0.0
    %1681 = vmatprep.subr.mxu0 0.0
    %1682 = vmatpush1.msra.mxu0 0.0
    %1683 = vmatprep.subr.mxu0 0.0
    %1684 = vmatpush1.msra.mxu0 0.0
    %1685 = vmatprep.subr.mxu0 0.0
    %1686 = vmatpush1.msra.mxu0 0.0
    %1687 = vmatprep.subr.mxu0 0.0
    %1688 = vmatpush1.msra.mxu0 0.0
    %1689 = vmatprep.subr.mxu0 0.0
    %1690 = vmatpush1.msra.mxu0 0.0
    %1691 = vmatprep.subr.mxu0 0.0
    %1692 = vmatpush1.msra.mxu0 0.0
    %1693 = vmatprep.subr.mxu0 0.0
    %1694 = vmatpush1.msra.mxu0 0.0
    %1695 = vmatprep.subr.mxu0 0.0
    %1696 = vmatpush1.msra.mxu0 0.0
    %1697 = vmatprep.subr.mxu0 0.0
    %1698 = vmatpush1.msra.mxu0 0.0
    %1699 = vmatprep.subr.mxu0 0.0
    %1700 = vmatpush1.msra.mxu0 0.0
    %1701 = vmatprep.subr.mxu0 0.0
    %1702 = vmatpush1.msra.mxu0 0.0
    %1703 = vmatprep.subr.mxu0 0.0
    %1704 = vmatpush1.msra.mxu0 0.0
    %1705 = vmatprep.mubr.f32.mxu0 0.0
    %1706 = vmatmul.mubr.f32.gmra.mrb[0].mxu0 %v1450
    %v1707 = vpop.f32.mrb[0].mxu0
    %v1708 = vadd.f32 %v1446, %v1707
    %v1709 = vpop.f32.mrb[0].mxu0
    %1710 = vmatprep.mubr.f32.mxu0 0.0
    %1711 = vmatmul.mubr.f32.gmra.mrb[0].mxu0 %v1453
    %v1712 = vpop.f32.mrb[0].mxu0
    %v1713 = vadd.f32 %v1446, %v1712
    %v1714 = vpop.f32.mrb[0].mxu0
    %1715 = vmatprep.mubr.f32.mxu0 0.0
    %1716 = vmatmul.mubr.f32.gmra.mrb[0].mxu0 %v1456
    %v1717 = vpop.f32.mrb[0].mxu0
    %v1718 = vadd.f32 %v1446, %v1717
    %v1719 = vpop.f32.mrb[0].mxu0
    %1720 = vmatprep.mubr.f32.mxu0 0.0
    %1721 = vmatmul.mubr.f32.gmra.mrb[0].mxu0 %v1459
    %v1722 = vpop.f32.mrb[0].mxu0
    %v1723 = vadd.f32 %v1446, %v1722
    %v1724 = vpop.f32.mrb[0].mxu0
    %1725 = vmatprep.mubr.f32.mxu0 0.0
    %1726 = vmatmul.mubr.f32.gmra.mrb[0].mxu0 %v1462
    %v1727 = vpop.f32.mrb[0].mxu0
    %v1728 = vadd.f32 %v1446, %v1727
    %v1729 = vpop.f32.mrb[0].mxu0
    %1730 = vmatprep.mubr.f32.mxu0 0.0
    %1731 = vmatmul.mubr.f32.gmra.mrb[0].mxu0 %v1465
    %v1732 = vpop.f32.mrb[0].mxu0
    %v1733 = vadd.f32 %v1446, %v1732
    %v1734 = vpop.f32.mrb[0].mxu0
    %1735 = vmatprep.mubr.f32.mxu0 0.0
    %1736 = vmatmul.mubr.f32.gmra.mrb[0].mxu0 %v1468
    %v1737 = vpop.f32.mrb[0].mxu0
    %v1738 = vadd.f32 %v1446, %v1737
    %v1739 = vpop.f32.mrb[0].mxu0
    %1740 = vmatprep.mubr.f32.mxu0 0.0
    %1741 = vmatmul.mubr.f32.gmra.mrb[0].mxu0 %v1471
    %v1742 = vpop.f32.mrb[0].mxu0
    %v1743 = vadd.f32 %v1446, %v1742
    %v1744 = vpop.f32.mrb[0].mxu0
    %1745 = vmatprep.mubr.f32.mxu0 0.0
    %1746 = vmatmul.mubr.f32.gmra.mrb[0].mxu0 %v1474
    %v1747 = vpop.f32.mrb[0].mxu0
    %v1748 = vadd.f32 %v1446, %v1747
    %v1749 = vpop.f32.mrb[0].mxu0
    %1750 = vmatprep.mubr.f32.mxu0 0.0
    %1751 = vmatmul.mubr.f32.gmra.mrb[0].mxu0 %v1477
    %v1752 = vpop.f32.mrb[0].mxu0
    %v1753 = vadd.f32 %v1446, %v1752
    %v1754 = vpop.f32.mrb[0].mxu0
    %1755 = vmatprep.mubr.f32.mxu0 0.0
    %1756 = vmatmul.mubr.f32.gmra.mrb[0].mxu0 %v1480
    %v1757 = vpop.f32.mrb[0].mxu0
    %v1758 = vadd.f32 %v1446, %v1757
    %v1759 = vpop.f32.mrb[0].mxu0
    %1760 = vmatprep.mubr.f32.mxu0 0.0
    %1761 = vmatmul.mubr.f32.gmra.mrb[0].mxu0 %v1483
    %v1762 = vpop.f32.mrb[0].mxu0
    %v1763 = vadd.f32 %v1446, %v1762
    %v1764 = vpop.f32.mrb[0].mxu0
    %1765 = vmatprep.mubr.f32.mxu0 0.0
    %1766 = vmatmul.mubr.f32.gmra.mrb[0].mxu0 %v1486
    %v1767 = vpop.f32.mrb[0].mxu0
    %v1768 = vadd.f32 %v1446, %v1767
    %v1769 = vpop.f32.mrb[0].mxu0
    %1770 = vmatprep.mubr.f32.mxu0 0.0
    %1771 = vmatmul.mubr.f32.gmra.mrb[0].mxu0 %v1489
    %v1772 = vpop.f32.mrb[0].mxu0
    %v1773 = vadd.f32 %v1446, %v1772
    %v1774 = vpop.f32.mrb[0].mxu0
    %1775 = vmatprep.mubr.f32.mxu0 0.0
    %1776 = vmatmul.mubr.f32.gmra.mrb[0].mxu0 %v1492
    %v1777 = vpop.f32.mrb[0].mxu0
    %v1778 = vadd.f32 %v1446, %v1777
    %v1779 = vpop.f32.mrb[0].mxu0
    %1780 = vmatprep.mubr.f32.mxu0 0.0
    %1781 = vmatmul.mubr.f32.gmra.mrb[0].mxu0 %v1495
    %v1782 = vpop.f32.mrb[0].mxu0
    %v1783 = vadd.f32 %v1446, %v1782
    %v1784 = vpop.f32.mrb[0].mxu0
    %1785 = vmatprep.mubr.f32.mxu0 0.0
    %1786 = vmatmul.mubr.f32.gmra.mrb[0].mxu0 %v1498
    %v1787 = vpop.f32.mrb[0].mxu0
    %v1788 = vadd.f32 %v1446, %v1787
    %v1789 = vpop.f32.mrb[0].mxu0
    %1790 = vmatprep.mubr.f32.mxu0 0.0
    %1791 = vmatmul.mubr.f32.gmra.mrb[0].mxu0 %v1501
    %v1792 = vpop.f32.mrb[0].mxu0
    %v1793 = vadd.f32 %v1446, %v1792
    %v1794 = vpop.f32.mrb[0].mxu0
    %1795 = vmatprep.mubr.f32.mxu0 0.0
    %1796 = vmatmul.mubr.f32.gmra.mrb[0].mxu0 %v1504
    %v1797 = vpop.f32.mrb[0].mxu0
    %v1798 = vadd.f32 %v1446, %v1797
    %v1799 = vpop.f32.mrb[0].mxu0
    %1800 = vmatprep.mubr.f32.mxu0 0.0
    %1801 = vmatmul.mubr.f32.gmra.mrb[0].mxu0 %v1507
    %v1802 = vpop.f32.mrb[0].mxu0
    %v1803 = vadd.f32 %v1446, %v1802
    %v1804 = vpop.f32.mrb[0].mxu0
    %1805 = vmatprep.mubr.f32.mxu0 0.0
    %1806 = vmatmul.mubr.f32.gmra.mrb[0].mxu0 %v1510
    %v1807 = vpop.f32.mrb[0].mxu0
    %v1808 = vadd.f32 %v1446, %v1807
    %v1809 = vpop.f32.mrb[0].mxu0
    %1810 = vmatprep.mubr.f32.mxu0 0.0
    %1811 = vmatmul.mubr.f32.gmra.mrb[0].mxu0 %v1513
    %v1812 = vpop.f32.mrb[0].mxu0
    %v1813 = vadd.f32 %v1446, %v1812
    %v1814 = vpop.f32.mrb[0].mxu0
    %1815 = vmatprep.mubr.f32.mxu0 0.0
    %1816 = vmatmul.mubr.f32.gmra.mrb[0].mxu0 %v1516
    %v1817 = vpop.f32.mrb[0].mxu0
    %v1818 = vadd.f32 %v1446, %v1817
    %v1819 = vpop.f32.mrb[0].mxu0
    %1820 = vmatprep.mubr.f32.mxu0 0.0
    %1821 = vmatmul.mubr.f32.gmra.mrb[0].mxu0 %v1519
    %v1822 = vpop.f32.mrb[0].mxu0
    %v1823 = vadd.f32 %v1446, %v1822
    %v1824 = vpop.f32.mrb[0].mxu0
    %1825 = vmatprep.mubr.f32.mxu0 0.0
    %1826 = vmatmul.mubr.f32.gmra.mrb[0].mxu0 %v1522
    %v1827 = vpop.f32.mrb[0].mxu0
    %v1828 = vadd.f32 %v1446, %v1827
    %v1829 = vpop.f32.mrb[0].mxu0
    %1830 = vmatprep.mubr.f32.mxu0 0.0
    %1831 = vmatmul.mubr.f32.gmra.mrb[0].mxu0 %v1525
    %v1832 = vpop.f32.mrb[0].mxu0
    %v1833 = vadd.f32 %v1446, %v1832
    %v1834 = vpop.f32.mrb[0].mxu0
    %1835 = vmatprep.mubr.f32.mxu0 0.0
    %1836 = vmatmul.mubr.f32.gmra.mrb[0].mxu0 %v1528
    %v1837 = vpop.f32.mrb[0].mxu0
    %v1838 = vadd.f32 %v1446, %v1837
    %v1839 = vpop.f32.mrb[0].mxu0
    %1840 = vmatprep.mubr.f32.mxu0 0.0
    %1841 = vmatmul.mubr.f32.gmra.mrb[0].mxu0 %v1531
    %v1842 = vpop.f32.mrb[0].mxu0
    %v1843 = vadd.f32 %v1446, %v1842
    %v1844 = vpop.f32.mrb[0].mxu0
    %1845 = vmatprep.mubr.f32.mxu0 0.0
    %1846 = vmatmul.mubr.f32.gmra.mrb[0].mxu0 %v1534
    %v1847 = vpop.f32.mrb[0].mxu0
    %v1848 = vadd.f32 %v1446, %v1847
    %v1849 = vpop.f32.mrb[0].mxu0
    %1850 = vmatprep.mubr.f32.mxu0 0.0
    %1851 = vmatmul.mubr.f32.gmra.mrb[0].mxu0 %v1537
    %v1852 = vpop.f32.mrb[0].mxu0
    %v1853 = vadd.f32 %v1446, %v1852
    %v1854 = vpop.f32.mrb[0].mxu0
    %1855 = vmatprep.mubr.f32.mxu0 0.0
    %1856 = vmatmul.mubr.f32.gmra.mrb[0].mxu0 %v1540
    %v1857 = vpop.f32.mrb[0].mxu0
    %v1858 = vadd.f32 %v1446, %v1857
    %v1859 = vpop.f32.mrb[0].mxu0
    %1860 = vmatprep.mubr.f32.mxu0 0.0
    %1861 = vmatmul.mubr.f32.gmra.mrb[0].mxu0 %v1543
    %v1862 = vpop.f32.mrb[0].mxu0
    %v1863 = vadd.f32 %v1446, %v1862
    %v1864 = vpop.f32.mrb[0].mxu0
    %1865 = vmatprep.mubr.f32.mxu0 0.0
    %1866 = vmatmul.mubr.f32.gmra.mrb[0].mxu0 %v1546
    %v1867 = vpop.f32.mrb[0].mxu0
    %v1868 = vadd.f32 %v1446, %v1867
    %v1869 = vpop.f32.mrb[0].mxu0
    %1870 = vmatprep.mubr.f32.mxu0 0.0
    %1871 = vmatmul.mubr.f32.gmra.mrb[0].mxu0 %v1549
    %v1872 = vpop.f32.mrb[0].mxu0
    %v1873 = vadd.f32 %v1446, %v1872
    %v1874 = vpop.f32.mrb[0].mxu0
    %1875 = vmatprep.mubr.f32.mxu0 0.0
    %1876 = vmatmul.mubr.f32.gmra.mrb[0].mxu0 %v1552
    %v1877 = vpop.f32.mrb[0].mxu0
    %v1878 = vadd.f32 %v1446, %v1877
    %v1879 = vpop.f32.mrb[0].mxu0
    %1880 = vmatprep.mubr.f32.mxu0 0.0
    %1881 = vmatmul.mubr.f32.gmra.mrb[0].mxu0 %v1555
    %v1882 = vpop.f32.mrb[0].mxu0
    %v1883 = vadd.f32 %v1446, %v1882
    %v1884 = vpop.f32.mrb[0].mxu0
    %1885 = vmatprep.mubr.f32.mxu0 0.0
    %1886 = vmatmul.mubr.f32.gmra.mrb[0].mxu0 %v1558
    %v1887 = vpop.f32.mrb[0].mxu0
    %v1888 = vadd.f32 %v1446, %v1887
    %v1889 = vpop.f32.mrb[0].mxu0
    %1890 = vmatprep.mubr.f32.mxu0 0.0
    %1891 = vmatmul.mubr.f32.gmra.mrb[0].mxu0 %v1561
    %v1892 = vpop.f32.mrb[0].mxu0
    %v1893 = vadd.f32 %v1446, %v1892
    %v1894 = vpop.f32.mrb[0].mxu0
    %1895 = vmatprep.mubr.f32.mxu0 0.0
    %1896 = vmatmul.mubr.f32.gmra.mrb[0].mxu0 %v1564
    %v1897 = vpop.f32.mrb[0].mxu0
    %v1898 = vadd.f32 %v1446, %v1897
    %v1899 = vpop.f32.mrb[0].mxu0
    %1900 = vmatprep.mubr.f32.mxu0 0.0
    %1901 = vmatmul.mubr.f32.gmra.mrb[0].mxu0 %v1567
    %v1902 = vpop.f32.mrb[0].mxu0
    %v1903 = vadd.f32 %v1446, %v1902
    %v1904 = vpop.f32.mrb[0].mxu0
    %1905 = vmatprep.mubr.f32.mxu0 0.0
    %1906 = vmatmul.mubr.f32.gmra.mrb[0].mxu0 %v1570
    %v1907 = vpop.f32.mrb[0].mxu0
    %v1908 = vadd.f32 %v1446, %v1907
    %v1909 = vpop.f32.mrb[0].mxu0
    %1910 = vmatprep.mubr.f32.mxu0 0.0
    %1911 = vmatmul.mubr.f32.gmra.mrb[0].mxu0 %v1573
    %v1912 = vpop.f32.mrb[0].mxu0
    %v1913 = vadd.f32 %v1446, %v1912
    %v1914 = vpop.f32.mrb[0].mxu0
    %1915 = vmatprep.mubr.f32.mxu0 0.0
    %1916 = vmatmul.mubr.f32.gmra.mrb[0].mxu0 %v1576
    %v1917 = vpop.f32.mrb[0].mxu0
    %v1918 = vadd.f32 %v1446, %v1917
    %v1919 = vpop.f32.mrb[0].mxu0
    %1920 = vmatprep.mubr.f32.mxu0 0.0
    %1921 = vmatmul.mubr.f32.gmra.mrb[0].mxu0 %v1579
    %v1922 = vpop.f32.mrb[0].mxu0
    %v1923 = vadd.f32 %v1446, %v1922
    %v1924 = vpop.f32.mrb[0].mxu0
    %1925 = vmatprep.mubr.f32.mxu0 0.0
    %1926 = vmatmul.mubr.f32.gmra.mrb[0].mxu0 %v1582
    %v1927 = vpop.f32.mrb[0].mxu0
    %v1928 = vadd.f32 %v1446, %v1927
    %v1929 = vpop.f32.mrb[0].mxu0
    %1930 = vmatprep.mubr.f32.mxu0 0.0
    %1931 = vmatmul.mubr.f32.gmra.mrb[0].mxu0 %v1585
    %v1932 = vpop.f32.mrb[0].mxu0
    %v1933 = vadd.f32 %v1446, %v1932
    %v1934 = vpop.f32.mrb[0].mxu0
    %1935 = vmatprep.mubr.f32.mxu0 0.0
    %1936 = vmatmul.mubr.f32.gmra.mrb[0].mxu0 %v1588
    %v1937 = vpop.f32.mrb[0].mxu0
    %v1938 = vadd.f32 %v1446, %v1937
    %v1939 = vpop.f32.mrb[0].mxu0
    %1940 = vmatprep.mubr.f32.mxu0 0.0
    %1941 = vmatmul.mubr.f32.gmra.mrb[0].mxu0 %v1591
    %v1942 = vpop.f32.mrb[0].mxu0
    %v1943 = vadd.f32 %v1446, %v1942
    %v1944 = vpop.f32.mrb[0].mxu0
    %1945 = vmatprep.mubr.f32.mxu0 0.0
    %1946 = vmatmul.mubr.f32.gmra.mrb[0].mxu0 %v1594
    %v1947 = vpop.f32.mrb[0].mxu0
    %v1948 = vadd.f32 %v1446, %v1947
    %v1949 = vpop.f32.mrb[0].mxu0
    %1950 = vmatprep.mubr.f32.mxu0 0.0
    %1951 = vmatmul.mubr.f32.gmra.mrb[0].mxu0 %v1597
    %v1952 = vpop.f32.mrb[0].mxu0
    %v1953 = vadd.f32 %v1446, %v1952
    %v1954 = vpop.f32.mrb[0].mxu0
    %1955 = vmatprep.mubr.f32.mxu0 0.0
    %1956 = vmatmul.mubr.f32.gmra.mrb[0].mxu0 %v1600
    %v1957 = vpop.f32.mrb[0].mxu0
    %v1958 = vadd.f32 %v1446, %v1957
    %v1959 = vpop.f32.mrb[0].mxu0
    %1960 = vmatprep.mubr.f32.mxu0 0.0
    %1961 = vmatmul.mubr.f32.gmra.mrb[0].mxu0 %v1603
    %v1962 = vpop.f32.mrb[0].mxu0
    %v1963 = vadd.f32 %v1446, %v1962
    %v1964 = vpop.f32.mrb[0].mxu0
    %1965 = vmatprep.mubr.f32.mxu0 0.0
    %1966 = vmatmul.mubr.f32.gmra.mrb[0].mxu0 %v1606
    %v1967 = vpop.f32.mrb[0].mxu0
    %v1968 = vadd.f32 %v1446, %v1967
    %v1969 = vpop.f32.mrb[0].mxu0
    %1970 = vmatprep.mubr.f32.mxu0 0.0
    %1971 = vmatmul.mubr.f32.gmra.mrb[0].mxu0 %v1609
    %v1972 = vpop.f32.mrb[0].mxu0
    %v1973 = vadd.f32 %v1446, %v1972
    %v1974 = vpop.f32.mrb[0].mxu0
    %1975 = vmatprep.mubr.f32.mxu0 0.0
    %1976 = vmatmul.mubr.f32.gmra.mrb[0].mxu0 %v1612
    %v1977 = vpop.f32.mrb[0].mxu0
    %v1978 = vadd.f32 %v1446, %v1977
    %v1979 = vpop.f32.mrb[0].mxu0
    %1980 = vmatprep.mubr.f32.mxu0 0.0
    %1981 = vmatmul.mubr.f32.gmra.mrb[0].mxu0 %v1615
    %v1982 = vpop.f32.mrb[0].mxu0
    %v1983 = vadd.f32 %v1446, %v1982
    %v1984 = vpop.f32.mrb[0].mxu0
    %1985 = vmatprep.mubr.f32.mxu0 0.0
    %1986 = vmatmul.mubr.f32.gmra.mrb[0].mxu0 %v1618
    %v1987 = vpop.f32.mrb[0].mxu0
    %v1988 = vadd.f32 %v1446, %v1987
    %v1989 = vpop.f32.mrb[0].mxu0
    %1990 = vmatprep.mubr.f32.mxu0 0.0
    %1991 = vmatmul.mubr.f32.gmra.mrb[0].mxu0 %v1621
    %v1992 = vpop.f32.mrb[0].mxu0
    %v1993 = vadd.f32 %v1446, %v1992
    %v1994 = vpop.f32.mrb[0].mxu0
    %1995 = vmatprep.mubr.f32.mxu0 0.0
    %1996 = vmatmul.mubr.f32.gmra.mrb[0].mxu0 %v1624
    %v1997 = vpop.f32.mrb[0].mxu0
    %v1998 = vadd.f32 %v1446, %v1997
    %v1999 = vpop.f32.mrb[0].mxu0
    %2000 = vmatprep.mubr.f32.mxu0 0.0
    %2001 = vmatmul.mubr.f32.gmra.mrb[0].mxu0 %v1627
    %v2002 = vpop.f32.mrb[0].mxu0
    %v2003 = vadd.f32 %v1446, %v2002
    %v2004 = vpop.f32.mrb[0].mxu0
    %2005 = vmatprep.mubr.f32.mxu0 0.0
    %2006 = vmatmul.mubr.f32.gmra.mrb[0].mxu0 %v1630
    %v2007 = vpop.f32.mrb[0].mxu0
    %v2008 = vadd.f32 %v1446, %v2007
    %v2009 = vpop.f32.mrb[0].mxu0
    %2010 = vmatprep.mubr.f32.mxu0 0.0
    %2011 = vmatmul.mubr.f32.gmra.mrb[0].mxu0 %v1633
    %v2012 = vpop.f32.mrb[0].mxu0
    %v2013 = vadd.f32 %v1446, %v2012
    %v2014 = vpop.f32.mrb[0].mxu0
    %2015 = vmatprep.mubr.f32.mxu0 0.0
    %2016 = vmatmul.mubr.f32.gmra.mrb[0].mxu0 %v1636
    %v2017 = vpop.f32.mrb[0].mxu0
    %v2018 = vadd.f32 %v1446, %v2017
    %v2019 = vpop.f32.mrb[0].mxu0
    %2020 = vmatprep.mubr.f32.mxu0 0.0
    %2021 = vmatmul.mubr.f32.gmra.mrb[0].mxu0 %v1639
    %v2022 = vpop.f32.mrb[0].mxu0
    %v2023 = vadd.f32 %v1446, %v2022
    %v2024 = vpop.f32.mrb[0].mxu0
    %2025 = vdwg.mxu0
    %v2026 = vmax.f32 %v1708, 0.0
    %v2027 = vmax.f32 %v1713, 0.0
    %v2028 = vmax.f32 %v1718, 0.0
    %v2029 = vmax.f32 %v1723, 0.0
    %v2030 = vmax.f32 %v1728, 0.0
    %v2031 = vmax.f32 %v1733, 0.0
    %v2032 = vmax.f32 %v1738, 0.0
    %v2033 = vmax.f32 %v1743, 0.0
    %v2034 = vmax.f32 %v1748, 0.0
    %v2035 = vmax.f32 %v1753, 0.0
    %v2036 = vmax.f32 %v1758, 0.0
    %v2037 = vmax.f32 %v1763, 0.0
    %v2038 = vmax.f32 %v1768, 0.0
    %v2039 = vmax.f32 %v1773, 0.0
    %v2040 = vmax.f32 %v1778, 0.0
    %v2041 = vmax.f32 %v1783, 0.0
    %v2042 = vmax.f32 %v1788, 0.0
    %v2043 = vmax.f32 %v1793, 0.0
    %v2044 = vmax.f32 %v1798, 0.0
    %v2045 = vmax.f32 %v1803, 0.0
    %v2046 = vmax.f32 %v1808, 0.0
    %v2047 = vmax.f32 %v1813, 0.0
    %v2048 = vmax.f32 %v1818, 0.0
    %v2049 = vmax.f32 %v1823, 0.0
    %v2050 = vmax.f32 %v1828, 0.0
    %v2051 = vmax.f32 %v1833, 0.0
    %v2052 = vmax.f32 %v1838, 0.0
    %v2053 = vmax.f32 %v1843, 0.0
    %v2054 = vmax.f32 %v1848, 0.0
    %v2055 = vmax.f32 %v1853, 0.0
    %v2056 = vmax.f32 %v1858, 0.0
    %v2057 = vmax.f32 %v1863, 0.0
    %v2058 = vmax.f32 %v1868, 0.0
    %v2059 = vmax.f32 %v1873, 0.0
    %v2060 = vmax.f32 %v1878, 0.0
    %v2061 = vmax.f32 %v1883, 0.0
    %v2062 = vmax.f32 %v1888, 0.0
    %v2063 = vmax.f32 %v1893, 0.0
    %v2064 = vmax.f32 %v1898, 0.0
    %v2065 = vmax.f32 %v1903, 0.0
    %v2066 = vmax.f32 %v1908, 0.0
    %v2067 = vmax.f32 %v1913, 0.0
    %v2068 = vmax.f32 %v1918, 0.0
    %v2069 = vmax.f32 %v1923, 0.0
    %v2070 = vmax.f32 %v1928, 0.0
    %v2071 = vmax.f32 %v1933, 0.0
    %v2072 = vmax.f32 %v1938, 0.0
    %v2073 = vmax.f32 %v1943, 0.0
    %v2074 = vmax.f32 %v1948, 0.0
    %v2075 = vmax.f32 %v1953, 0.0
    %v2076 = vmax.f32 %v1958, 0.0
    %v2077 = vmax.f32 %v1963, 0.0
    %v2078 = vmax.f32 %v1968, 0.0
    %v2079 = vmax.f32 %v1973, 0.0
    %v2080 = vmax.f32 %v1978, 0.0
    %v2081 = vmax.f32 %v1983, 0.0
    %v2082 = vmax.f32 %v1988, 0.0
    %v2083 = vmax.f32 %v1993, 0.0
    %v2084 = vmax.f32 %v1998, 0.0
    %v2085 = vmax.f32 %v2003, 0.0
    %v2086 = vmax.f32 %v2008, 0.0
    %v2087 = vmax.f32 %v2013, 0.0
    %v2088 = vmax.f32 %v2018, 0.0
    %v2089 = vmax.f32 %v2023, 0.0
    %v2090 = vld [vmem:[%s6] sm:$0xff]
    %v2091 = vld [vmem:[%s6 + $0x8] sm:$0xff]
    %v2092 = vld [vmem:[%s6 + $0x10] sm:$0xff]
    %v2093 = vld [vmem:[%s6 + $0x18] sm:$0xff]
    %v2094 = vld [vmem:[%s6 + $0x20] sm:$0xff]
    %v2095 = vld [vmem:[%s6 + $0x28] sm:$0xff]
    %v2096 = vld [vmem:[%s6 + $0x30] sm:$0xff]
    %v2097 = vld [vmem:[%s6 + $0x38] sm:$0xff]
    %v2098 = vld [vmem:[%s6 + $0x40] sm:$0xff]
    %v2099 = vld [vmem:[%s6 + $0x48] sm:$0xff]
    %v2100 = vld [vmem:[%s6 + $0x50] sm:$0xff]
    %v2101 = vld [vmem:[%s6 + $0x58] sm:$0xff]
    %v2102 = vld [vmem:[%s6 + $0x60] sm:$0xff]
    %v2103 = vld [vmem:[%s6 + $0x68] sm:$0xff]
    %v2104 = vld [vmem:[%s6 + $0x70] sm:$0xff]
    %v2105 = vld [vmem:[%s6 + $0x78] sm:$0xff]
    %v2106 = vld [vmem:[%s7] sm:$0x1]
    %v2108 = vlaneseq
    %v2109 = vshrl.u32 %v2108, 7
    %v2110 = vsub.s32 0, %v2109
    %v2111 = vrot.slane %v2106, %v2110
    %2113 = vmatprep.subr.mxu0 0.0
    %2114 = vmatpush1.msra.mxu0 %v2090
    %2115 = vmatprep.subr.mxu0 0.0
    %2116 = vmatpush1.msra.mxu0 %v2091
    %2117 = vmatprep.subr.mxu0 0.0
    %2118 = vmatpush1.msra.mxu0 %v2092
    %2119 = vmatprep.subr.mxu0 0.0
    %2120 = vmatpush1.msra.mxu0 %v2093
    %2121 = vmatprep.subr.mxu0 0.0
    %2122 = vmatpush1.msra.mxu0 %v2094
    %2123 = vmatprep.subr.mxu0 0.0
    %2124 = vmatpush1.msra.mxu0 %v2095
    %2125 = vmatprep.subr.mxu0 0.0
    %2126 = vmatpush1.msra.mxu0 %v2096
    %2127 = vmatprep.subr.mxu0 0.0
    %2128 = vmatpush1.msra.mxu0 %v2097
    %2129 = vmatprep.subr.mxu0 0.0
    %2130 = vmatpush1.msra.mxu0 %v2098
    %2131 = vmatprep.subr.mxu0 0.0
    %2132 = vmatpush1.msra.mxu0 %v2099
    %2133 = vmatprep.subr.mxu0 0.0
    %2134 = vmatpush1.msra.mxu0 %v2100
    %2135 = vmatprep.subr.mxu0 0.0
    %2136 = vmatpush1.msra.mxu0 %v2101
    %2137 = vmatprep.subr.mxu0 0.0
    %2138 = vmatpush1.msra.mxu0 %v2102
    %2139 = vmatprep.subr.mxu0 0.0
    %2140 = vmatpush1.msra.mxu0 %v2103
    %2141 = vmatprep.subr.mxu0 0.0
    %2142 = vmatpush1.msra.mxu0 %v2104
    %2143 = vmatprep.subr.mxu0 0.0
    %2144 = vmatpush1.msra.mxu0 %v2105
    %2145 = vmatprep.subr.mxu0 0.0
    %2146 = vmatpush1.msra.mxu0 0.0
    %2147 = vmatprep.subr.mxu0 0.0
    %2148 = vmatpush1.msra.mxu0 0.0
    %2149 = vmatprep.subr.mxu0 0.0
    %2150 = vmatpush1.msra.mxu0 0.0
    %2151 = vmatprep.subr.mxu0 0.0
    %2152 = vmatpush1.msra.mxu0 0.0
    %2153 = vmatprep.subr.mxu0 0.0
    %2154 = vmatpush1.msra.mxu0 0.0
    %2155 = vmatprep.subr.mxu0 0.0
    %2156 = vmatpush1.msra.mxu0 0.0
    %2157 = vmatprep.subr.mxu0 0.0
    %2158 = vmatpush1.msra.mxu0 0.0
    %2159 = vmatprep.subr.mxu0 0.0
    %2160 = vmatpush1.msra.mxu0 0.0
    %2161 = vmatprep.subr.mxu0 0.0
    %2162 = vmatpush1.msra.mxu0 0.0
    %2163 = vmatprep.subr.mxu0 0.0
    %2164 = vmatpush1.msra.mxu0 0.0
    %2165 = vmatprep.subr.mxu0 0.0
    %2166 = vmatpush1.msra.mxu0 0.0
    %2167 = vmatprep.subr.mxu0 0.0
    %2168 = vmatpush1.msra.mxu0 0.0
    %2169 = vmatprep.subr.mxu0 0.0
    %2170 = vmatpush1.msra.mxu0 0.0
    %2171 = vmatprep.subr.mxu0 0.0
    %2172 = vmatpush1.msra.mxu0 0.0
    %2173 = vmatprep.subr.mxu0 0.0
    %2174 = vmatpush1.msra.mxu0 0.0
    %2175 = vmatprep.subr.mxu0 0.0
    %2176 = vmatpush1.msra.mxu0 0.0
    %2177 = vmatprep.mubr.f32.mxu0 0.0
    %2178 = vmatmul.mubr.f32.gmra.mrb[0].mxu0 %v2026
    %v2179 = vpop.f32.mrb[0].mxu0
    %v2180 = vadd.f32 %v2111, %v2179
    %v2181 = vpop.f32.mrb[0].mxu0
    %2182 = vmatprep.mubr.f32.mxu0 0.0
    %2183 = vmatmul.mubr.f32.gmra.mrb[0].mxu0 %v2027
    %v2184 = vpop.f32.mrb[0].mxu0
    %v2185 = vadd.f32 %v2111, %v2184
    %v2186 = vpop.f32.mrb[0].mxu0
    %2187 = vmatprep.mubr.f32.mxu0 0.0
    %2188 = vmatmul.mubr.f32.gmra.mrb[0].mxu0 %v2028
    %v2189 = vpop.f32.mrb[0].mxu0
    %v2190 = vadd.f32 %v2111, %v2189
    %v2191 = vpop.f32.mrb[0].mxu0
    %2192 = vmatprep.mubr.f32.mxu0 0.0
    %2193 = vmatmul.mubr.f32.gmra.mrb[0].mxu0 %v2029
    %v2194 = vpop.f32.mrb[0].mxu0
    %v2195 = vadd.f32 %v2111, %v2194
    %v2196 = vpop.f32.mrb[0].mxu0
    %2197 = vmatprep.mubr.f32.mxu0 0.0
    %2198 = vmatmul.mubr.f32.gmra.mrb[0].mxu0 %v2030
    %v2199 = vpop.f32.mrb[0].mxu0
    %v2200 = vadd.f32 %v2111, %v2199
    %v2201 = vpop.f32.mrb[0].mxu0
    %2202 = vmatprep.mubr.f32.mxu0 0.0
    %2203 = vmatmul.mubr.f32.gmra.mrb[0].mxu0 %v2031
    %v2204 = vpop.f32.mrb[0].mxu0
    %v2205 = vadd.f32 %v2111, %v2204
    %v2206 = vpop.f32.mrb[0].mxu0
    %2207 = vmatprep.mubr.f32.mxu0 0.0
    %2208 = vmatmul.mubr.f32.gmra.mrb[0].mxu0 %v2032
    %v2209 = vpop.f32.mrb[0].mxu0
    %v2210 = vadd.f32 %v2111, %v2209
    %v2211 = vpop.f32.mrb[0].mxu0
    %2212 = vmatprep.mubr.f32.mxu0 0.0
    %2213 = vmatmul.mubr.f32.gmra.mrb[0].mxu0 %v2033
    %v2214 = vpop.f32.mrb[0].mxu0
    %v2215 = vadd.f32 %v2111, %v2214
    %v2216 = vpop.f32.mrb[0].mxu0
    %2217 = vmatprep.mubr.f32.mxu0 0.0
    %2218 = vmatmul.mubr.f32.gmra.mrb[0].mxu0 %v2034
    %v2219 = vpop.f32.mrb[0].mxu0
    %v2220 = vadd.f32 %v2111, %v2219
    %v2221 = vpop.f32.mrb[0].mxu0
    %2222 = vmatprep.mubr.f32.mxu0 0.0
    %2223 = vmatmul.mubr.f32.gmra.mrb[0].mxu0 %v2035
    %v2224 = vpop.f32.mrb[0].mxu0
    %v2225 = vadd.f32 %v2111, %v2224
    %v2226 = vpop.f32.mrb[0].mxu0
    %2227 = vmatprep.mubr.f32.mxu0 0.0
    %2228 = vmatmul.mubr.f32.gmra.mrb[0].mxu0 %v2036
    %v2229 = vpop.f32.mrb[0].mxu0
    %v2230 = vadd.f32 %v2111, %v2229
    %v2231 = vpop.f32.mrb[0].mxu0
    %2232 = vmatprep.mubr.f32.mxu0 0.0
    %2233 = vmatmul.mubr.f32.gmra.mrb[0].mxu0 %v2037
    %v2234 = vpop.f32.mrb[0].mxu0
    %v2235 = vadd.f32 %v2111, %v2234
    %v2236 = vpop.f32.mrb[0].mxu0
    %2237 = vmatprep.mubr.f32.mxu0 0.0
    %2238 = vmatmul.mubr.f32.gmra.mrb[0].mxu0 %v2038
    %v2239 = vpop.f32.mrb[0].mxu0
    %v2240 = vadd.f32 %v2111, %v2239
    %v2241 = vpop.f32.mrb[0].mxu0
    %2242 = vmatprep.mubr.f32.mxu0 0.0
    %2243 = vmatmul.mubr.f32.gmra.mrb[0].mxu0 %v2039
    %v2244 = vpop.f32.mrb[0].mxu0
    %v2245 = vadd.f32 %v2111, %v2244
    %v2246 = vpop.f32.mrb[0].mxu0
    %2247 = vmatprep.mubr.f32.mxu0 0.0
    %2248 = vmatmul.mubr.f32.gmra.mrb[0].mxu0 %v2040
    %v2249 = vpop.f32.mrb[0].mxu0
    %v2250 = vadd.f32 %v2111, %v2249
    %v2251 = vpop.f32.mrb[0].mxu0
    %2252 = vmatprep.mubr.f32.mxu0 0.0
    %2253 = vmatmul.mubr.f32.gmra.mrb[0].mxu0 %v2041
    %v2254 = vpop.f32.mrb[0].mxu0
    %v2255 = vadd.f32 %v2111, %v2254
    %v2256 = vpop.f32.mrb[0].mxu0
    %2257 = vmatprep.mubr.f32.mxu0 0.0
    %2258 = vmatmul.mubr.f32.gmra.mrb[0].mxu0 %v2042
    %v2259 = vpop.f32.mrb[0].mxu0
    %v2260 = vadd.f32 %v2111, %v2259
    %v2261 = vpop.f32.mrb[0].mxu0
    %2262 = vmatprep.mubr.f32.mxu0 0.0
    %2263 = vmatmul.mubr.f32.gmra.mrb[0].mxu0 %v2043
    %v2264 = vpop.f32.mrb[0].mxu0
    %v2265 = vadd.f32 %v2111, %v2264
    %v2266 = vpop.f32.mrb[0].mxu0
    %2267 = vmatprep.mubr.f32.mxu0 0.0
    %2268 = vmatmul.mubr.f32.gmra.mrb[0].mxu0 %v2044
    %v2269 = vpop.f32.mrb[0].mxu0
    %v2270 = vadd.f32 %v2111, %v2269
    %v2271 = vpop.f32.mrb[0].mxu0
    %2272 = vmatprep.mubr.f32.mxu0 0.0
    %2273 = vmatmul.mubr.f32.gmra.mrb[0].mxu0 %v2045
    %v2274 = vpop.f32.mrb[0].mxu0
    %v2275 = vadd.f32 %v2111, %v2274
    %v2276 = vpop.f32.mrb[0].mxu0
    %2277 = vmatprep.mubr.f32.mxu0 0.0
    %2278 = vmatmul.mubr.f32.gmra.mrb[0].mxu0 %v2046
    %v2279 = vpop.f32.mrb[0].mxu0
    %v2280 = vadd.f32 %v2111, %v2279
    %v2281 = vpop.f32.mrb[0].mxu0
    %2282 = vmatprep.mubr.f32.mxu0 0.0
    %2283 = vmatmul.mubr.f32.gmra.mrb[0].mxu0 %v2047
    %v2284 = vpop.f32.mrb[0].mxu0
    %v2285 = vadd.f32 %v2111, %v2284
    %v2286 = vpop.f32.mrb[0].mxu0
    %2287 = vmatprep.mubr.f32.mxu0 0.0
    %2288 = vmatmul.mubr.f32.gmra.mrb[0].mxu0 %v2048
    %v2289 = vpop.f32.mrb[0].mxu0
    %v2290 = vadd.f32 %v2111, %v2289
    %v2291 = vpop.f32.mrb[0].mxu0
    %2292 = vmatprep.mubr.f32.mxu0 0.0
    %2293 = vmatmul.mubr.f32.gmra.mrb[0].mxu0 %v2049
    %v2294 = vpop.f32.mrb[0].mxu0
    %v2295 = vadd.f32 %v2111, %v2294
    %v2296 = vpop.f32.mrb[0].mxu0
    %2297 = vmatprep.mubr.f32.mxu0 0.0
    %2298 = vmatmul.mubr.f32.gmra.mrb[0].mxu0 %v2050
    %v2299 = vpop.f32.mrb[0].mxu0
    %v2300 = vadd.f32 %v2111, %v2299
    %v2301 = vpop.f32.mrb[0].mxu0
    %2302 = vmatprep.mubr.f32.mxu0 0.0
    %2303 = vmatmul.mubr.f32.gmra.mrb[0].mxu0 %v2051
    %v2304 = vpop.f32.mrb[0].mxu0
    %v2305 = vadd.f32 %v2111, %v2304
    %v2306 = vpop.f32.mrb[0].mxu0
    %2307 = vmatprep.mubr.f32.mxu0 0.0
    %2308 = vmatmul.mubr.f32.gmra.mrb[0].mxu0 %v2052
    %v2309 = vpop.f32.mrb[0].mxu0
    %v2310 = vadd.f32 %v2111, %v2309
    %v2311 = vpop.f32.mrb[0].mxu0
    %2312 = vmatprep.mubr.f32.mxu0 0.0
    %2313 = vmatmul.mubr.f32.gmra.mrb[0].mxu0 %v2053
    %v2314 = vpop.f32.mrb[0].mxu0
    %v2315 = vadd.f32 %v2111, %v2314
    %v2316 = vpop.f32.mrb[0].mxu0
    %2317 = vmatprep.mubr.f32.mxu0 0.0
    %2318 = vmatmul.mubr.f32.gmra.mrb[0].mxu0 %v2054
    %v2319 = vpop.f32.mrb[0].mxu0
    %v2320 = vadd.f32 %v2111, %v2319
    %v2321 = vpop.f32.mrb[0].mxu0
    %2322 = vmatprep.mubr.f32.mxu0 0.0
    %2323 = vmatmul.mubr.f32.gmra.mrb[0].mxu0 %v2055
    %v2324 = vpop.f32.mrb[0].mxu0
    %v2325 = vadd.f32 %v2111, %v2324
    %v2326 = vpop.f32.mrb[0].mxu0
    %2327 = vmatprep.mubr.f32.mxu0 0.0
    %2328 = vmatmul.mubr.f32.gmra.mrb[0].mxu0 %v2056
    %v2329 = vpop.f32.mrb[0].mxu0
    %v2330 = vadd.f32 %v2111, %v2329
    %v2331 = vpop.f32.mrb[0].mxu0
    %2332 = vmatprep.mubr.f32.mxu0 0.0
    %2333 = vmatmul.mubr.f32.gmra.mrb[0].mxu0 %v2057
    %v2334 = vpop.f32.mrb[0].mxu0
    %v2335 = vadd.f32 %v2111, %v2334
    %v2336 = vpop.f32.mrb[0].mxu0
    %2337 = vmatprep.mubr.f32.mxu0 0.0
    %2338 = vmatmul.mubr.f32.gmra.mrb[0].mxu0 %v2058
    %v2339 = vpop.f32.mrb[0].mxu0
    %v2340 = vadd.f32 %v2111, %v2339
    %v2341 = vpop.f32.mrb[0].mxu0
    %2342 = vmatprep.mubr.f32.mxu0 0.0
    %2343 = vmatmul.mubr.f32.gmra.mrb[0].mxu0 %v2059
    %v2344 = vpop.f32.mrb[0].mxu0
    %v2345 = vadd.f32 %v2111, %v2344
    %v2346 = vpop.f32.mrb[0].mxu0
    %2347 = vmatprep.mubr.f32.mxu0 0.0
    %2348 = vmatmul.mubr.f32.gmra.mrb[0].mxu0 %v2060
    %v2349 = vpop.f32.mrb[0].mxu0
    %v2350 = vadd.f32 %v2111, %v2349
    %v2351 = vpop.f32.mrb[0].mxu0
    %2352 = vmatprep.mubr.f32.mxu0 0.0
    %2353 = vmatmul.mubr.f32.gmra.mrb[0].mxu0 %v2061
    %v2354 = vpop.f32.mrb[0].mxu0
    %v2355 = vadd.f32 %v2111, %v2354
    %v2356 = vpop.f32.mrb[0].mxu0
    %2357 = vmatprep.mubr.f32.mxu0 0.0
    %2358 = vmatmul.mubr.f32.gmra.mrb[0].mxu0 %v2062
    %v2359 = vpop.f32.mrb[0].mxu0
    %v2360 = vadd.f32 %v2111, %v2359
    %v2361 = vpop.f32.mrb[0].mxu0
    %2362 = vmatprep.mubr.f32.mxu0 0.0
    %2363 = vmatmul.mubr.f32.gmra.mrb[0].mxu0 %v2063
    %v2364 = vpop.f32.mrb[0].mxu0
    %v2365 = vadd.f32 %v2111, %v2364
    %v2366 = vpop.f32.mrb[0].mxu0
    %2367 = vmatprep.mubr.f32.mxu0 0.0
    %2368 = vmatmul.mubr.f32.gmra.mrb[0].mxu0 %v2064
    %v2369 = vpop.f32.mrb[0].mxu0
    %v2370 = vadd.f32 %v2111, %v2369
    %v2371 = vpop.f32.mrb[0].mxu0
    %2372 = vmatprep.mubr.f32.mxu0 0.0
    %2373 = vmatmul.mubr.f32.gmra.mrb[0].mxu0 %v2065
    %v2374 = vpop.f32.mrb[0].mxu0
    %v2375 = vadd.f32 %v2111, %v2374
    %v2376 = vpop.f32.mrb[0].mxu0
    %2377 = vmatprep.mubr.f32.mxu0 0.0
    %2378 = vmatmul.mubr.f32.gmra.mrb[0].mxu0 %v2066
    %v2379 = vpop.f32.mrb[0].mxu0
    %v2380 = vadd.f32 %v2111, %v2379
    %v2381 = vpop.f32.mrb[0].mxu0
    %2382 = vmatprep.mubr.f32.mxu0 0.0
    %2383 = vmatmul.mubr.f32.gmra.mrb[0].mxu0 %v2067
    %v2384 = vpop.f32.mrb[0].mxu0
    %v2385 = vadd.f32 %v2111, %v2384
    %v2386 = vpop.f32.mrb[0].mxu0
    %2387 = vmatprep.mubr.f32.mxu0 0.0
    %2388 = vmatmul.mubr.f32.gmra.mrb[0].mxu0 %v2068
    %v2389 = vpop.f32.mrb[0].mxu0
    %v2390 = vadd.f32 %v2111, %v2389
    %v2391 = vpop.f32.mrb[0].mxu0
    %2392 = vmatprep.mubr.f32.mxu0 0.0
    %2393 = vmatmul.mubr.f32.gmra.mrb[0].mxu0 %v2069
    %v2394 = vpop.f32.mrb[0].mxu0
    %v2395 = vadd.f32 %v2111, %v2394
    %v2396 = vpop.f32.mrb[0].mxu0
    %2397 = vmatprep.mubr.f32.mxu0 0.0
    %2398 = vmatmul.mubr.f32.gmra.mrb[0].mxu0 %v2070
    %v2399 = vpop.f32.mrb[0].mxu0
    %v2400 = vadd.f32 %v2111, %v2399
    %v2401 = vpop.f32.mrb[0].mxu0
    %2402 = vmatprep.mubr.f32.mxu0 0.0
    %2403 = vmatmul.mubr.f32.gmra.mrb[0].mxu0 %v2071
    %v2404 = vpop.f32.mrb[0].mxu0
    %v2405 = vadd.f32 %v2111, %v2404
    %v2406 = vpop.f32.mrb[0].mxu0
    %2407 = vmatprep.mubr.f32.mxu0 0.0
    %2408 = vmatmul.mubr.f32.gmra.mrb[0].mxu0 %v2072
    %v2409 = vpop.f32.mrb[0].mxu0
    %v2410 = vadd.f32 %v2111, %v2409
    %v2411 = vpop.f32.mrb[0].mxu0
    %2412 = vmatprep.mubr.f32.mxu0 0.0
    %2413 = vmatmul.mubr.f32.gmra.mrb[0].mxu0 %v2073
    %v2414 = vpop.f32.mrb[0].mxu0
    %v2415 = vadd.f32 %v2111, %v2414
    %v2416 = vpop.f32.mrb[0].mxu0
    %2417 = vmatprep.mubr.f32.mxu0 0.0
    %2418 = vmatmul.mubr.f32.gmra.mrb[0].mxu0 %v2074
    %v2419 = vpop.f32.mrb[0].mxu0
    %v2420 = vadd.f32 %v2111, %v2419
    %v2421 = vpop.f32.mrb[0].mxu0
    %2422 = vmatprep.mubr.f32.mxu0 0.0
    %2423 = vmatmul.mubr.f32.gmra.mrb[0].mxu0 %v2075
    %v2424 = vpop.f32.mrb[0].mxu0
    %v2425 = vadd.f32 %v2111, %v2424
    %v2426 = vpop.f32.mrb[0].mxu0
    %2427 = vmatprep.mubr.f32.mxu0 0.0
    %2428 = vmatmul.mubr.f32.gmra.mrb[0].mxu0 %v2076
    %v2429 = vpop.f32.mrb[0].mxu0
    %v2430 = vadd.f32 %v2111, %v2429
    %v2431 = vpop.f32.mrb[0].mxu0
    %2432 = vmatprep.mubr.f32.mxu0 0.0
    %2433 = vmatmul.mubr.f32.gmra.mrb[0].mxu0 %v2077
    %v2434 = vpop.f32.mrb[0].mxu0
    %v2435 = vadd.f32 %v2111, %v2434
    %v2436 = vpop.f32.mrb[0].mxu0
    %2437 = vmatprep.mubr.f32.mxu0 0.0
    %2438 = vmatmul.mubr.f32.gmra.mrb[0].mxu0 %v2078
    %v2439 = vpop.f32.mrb[0].mxu0
    %v2440 = vadd.f32 %v2111, %v2439
    %v2441 = vpop.f32.mrb[0].mxu0
    %2442 = vmatprep.mubr.f32.mxu0 0.0
    %2443 = vmatmul.mubr.f32.gmra.mrb[0].mxu0 %v2079
    %v2444 = vpop.f32.mrb[0].mxu0
    %v2445 = vadd.f32 %v2111, %v2444
    %v2446 = vpop.f32.mrb[0].mxu0
    %2447 = vmatprep.mubr.f32.mxu0 0.0
    %2448 = vmatmul.mubr.f32.gmra.mrb[0].mxu0 %v2080
    %v2449 = vpop.f32.mrb[0].mxu0
    %v2450 = vadd.f32 %v2111, %v2449
    %v2451 = vpop.f32.mrb[0].mxu0
    %2452 = vmatprep.mubr.f32.mxu0 0.0
    %2453 = vmatmul.mubr.f32.gmra.mrb[0].mxu0 %v2081
    %v2454 = vpop.f32.mrb[0].mxu0
    %v2455 = vadd.f32 %v2111, %v2454
    %v2456 = vpop.f32.mrb[0].mxu0
    %2457 = vmatprep.mubr.f32.mxu0 0.0
    %2458 = vmatmul.mubr.f32.gmra.mrb[0].mxu0 %v2082
    %v2459 = vpop.f32.mrb[0].mxu0
    %v2460 = vadd.f32 %v2111, %v2459
    %v2461 = vpop.f32.mrb[0].mxu0
    %2462 = vmatprep.mubr.f32.mxu0 0.0
    %2463 = vmatmul.mubr.f32.gmra.mrb[0].mxu0 %v2083
    %v2464 = vpop.f32.mrb[0].mxu0
    %v2465 = vadd.f32 %v2111, %v2464
    %v2466 = vpop.f32.mrb[0].mxu0
    %2467 = vmatprep.mubr.f32.mxu0 0.0
    %2468 = vmatmul.mubr.f32.gmra.mrb[0].mxu0 %v2084
    %v2469 = vpop.f32.mrb[0].mxu0
    %v2470 = vadd.f32 %v2111, %v2469
    %v2471 = vpop.f32.mrb[0].mxu0
    %2472 = vmatprep.mubr.f32.mxu0 0.0
    %2473 = vmatmul.mubr.f32.gmra.mrb[0].mxu0 %v2085
    %v2474 = vpop.f32.mrb[0].mxu0
    %v2475 = vadd.f32 %v2111, %v2474
    %v2476 = vpop.f32.mrb[0].mxu0
    %2477 = vmatprep.mubr.f32.mxu0 0.0
    %2478 = vmatmul.mubr.f32.gmra.mrb[0].mxu0 %v2086
    %v2479 = vpop.f32.mrb[0].mxu0
    %v2480 = vadd.f32 %v2111, %v2479
    %v2481 = vpop.f32.mrb[0].mxu0
    %2482 = vmatprep.mubr.f32.mxu0 0.0
    %2483 = vmatmul.mubr.f32.gmra.mrb[0].mxu0 %v2087
    %v2484 = vpop.f32.mrb[0].mxu0
    %v2485 = vadd.f32 %v2111, %v2484
    %v2486 = vpop.f32.mrb[0].mxu0
    %2487 = vmatprep.mubr.f32.mxu0 0.0
    %2488 = vmatmul.mubr.f32.gmra.mrb[0].mxu0 %v2088
    %v2489 = vpop.f32.mrb[0].mxu0
    %v2490 = vadd.f32 %v2111, %v2489
    %v2491 = vpop.f32.mrb[0].mxu0
    %2492 = vmatprep.mubr.f32.mxu0 0.0
    %2493 = vmatmul.mubr.f32.gmra.mrb[0].mxu0 %v2089
    %v2494 = vpop.f32.mrb[0].mxu0
    %v2495 = vadd.f32 %v2111, %v2494
    %v2496 = vpop.f32.mrb[0].mxu0
    %2497 = vdwg.mxu0
    %v2498 = vmax.f32 %v2180, %v2200
    %v2499 = vmax.f32 %v2185, %v2205
    %v2500 = vmax.f32 %v2190, %v2210
    %v2501 = vmax.f32 %v2195, %v2215
    %v2502 = vmax.f32 %v2498, %v2499
    %v2503 = vmax.f32 %v2500, %v2501
    %v2504 = vmax.f32 %v2502, %v2503
    %v2505 = vrot.slane %v2504, 4
    %v2506 = vmax.f32 %v2504, %v2505
    %v2507 = vrot.slane %v2506, 2
    %v2508 = vmax.f32 %v2506, %v2507
    %v2509 = vrot.slane %v2508, 1
    %v2510 = vmax.f32 %v2508, %v2509
    %2511 = vst [vmem:[#allocation2] sm:$0x1] %v2510
    %v2512 = vmax.f32 %v2220, %v2240
    %v2513 = vmax.f32 %v2225, %v2245
    %v2514 = vmax.f32 %v2230, %v2250
    %v2515 = vmax.f32 %v2235, %v2255
    %v2516 = vmax.f32 %v2512, %v2513
    %v2517 = vmax.f32 %v2514, %v2515
    %v2518 = vmax.f32 %v2516, %v2517
    %v2519 = vrot.slane %v2518, 4
    %v2520 = vmax.f32 %v2518, %v2519
    %v2521 = vrot.slane %v2520, 2
    %v2522 = vmax.f32 %v2520, %v2521
    %v2523 = vrot.slane %v2522, 1
    %v2524 = vmax.f32 %v2522, %v2523
    %2525 = vst [vmem:[#allocation2 + $0x1] sm:$0x1] %v2524
    %v2526 = vmax.f32 %v2260, %v2280
    %v2527 = vmax.f32 %v2265, %v2285
    %v2528 = vmax.f32 %v2270, %v2290
    %v2529 = vmax.f32 %v2275, %v2295
    %v2530 = vmax.f32 %v2526, %v2527
    %v2531 = vmax.f32 %v2528, %v2529
    %v2532 = vmax.f32 %v2530, %v2531
    %v2533 = vrot.slane %v2532, 4
    %v2534 = vmax.f32 %v2532, %v2533
    %v2535 = vrot.slane %v2534, 2
    %v2536 = vmax.f32 %v2534, %v2535
    %v2537 = vrot.slane %v2536, 1
    %v2538 = vmax.f32 %v2536, %v2537
    %2539 = vst [vmem:[#allocation2 + $0x2] sm:$0x1] %v2538
    %v2540 = vmax.f32 %v2300, %v2320
    %v2541 = vmax.f32 %v2305, %v2325
    %v2542 = vmax.f32 %v2310, %v2330
    %v2543 = vmax.f32 %v2315, %v2335
    %v2544 = vmax.f32 %v2540, %v2541
    %v2545 = vmax.f32 %v2542, %v2543
    %v2546 = vmax.f32 %v2544, %v2545
    %v2547 = vrot.slane %v2546, 4
    %v2548 = vmax.f32 %v2546, %v2547
    %v2549 = vrot.slane %v2548, 2
    %v2550 = vmax.f32 %v2548, %v2549
    %v2551 = vrot.slane %v2550, 1
    %v2552 = vmax.f32 %v2550, %v2551
    %2553 = vst [vmem:[#allocation2 + $0x3] sm:$0x1] %v2552
    %v2554 = vmax.f32 %v2340, %v2360
    %v2555 = vmax.f32 %v2345, %v2365
    %v2556 = vmax.f32 %v2350, %v2370
    %v2557 = vmax.f32 %v2355, %v2375
    %v2558 = vmax.f32 %v2554, %v2555
    %v2559 = vmax.f32 %v2556, %v2557
    %v2560 = vmax.f32 %v2558, %v2559
    %v2561 = vrot.slane %v2560, 4
    %v2562 = vmax.f32 %v2560, %v2561
    %v2563 = vrot.slane %v2562, 2
    %v2564 = vmax.f32 %v2562, %v2563
    %v2565 = vrot.slane %v2564, 1
    %v2566 = vmax.f32 %v2564, %v2565
    %2567 = vst [vmem:[#allocation2 + $0x4] sm:$0x1] %v2566
    %v2568 = vmax.f32 %v2380, %v2400
    %v2569 = vmax.f32 %v2385, %v2405
    %v2570 = vmax.f32 %v2390, %v2410
    %v2571 = vmax.f32 %v2395, %v2415
    %v2572 = vmax.f32 %v2568, %v2569
    %v2573 = vmax.f32 %v2570, %v2571
    %v2574 = vmax.f32 %v2572, %v2573
    %v2575 = vrot.slane %v2574, 4
    %v2576 = vmax.f32 %v2574, %v2575
    %v2577 = vrot.slane %v2576, 2
    %v2578 = vmax.f32 %v2576, %v2577
    %v2579 = vrot.slane %v2578, 1
    %v2580 = vmax.f32 %v2578, %v2579
    %2581 = vst [vmem:[#allocation2 + $0x5] sm:$0x1] %v2580
    %v2582 = vmax.f32 %v2420, %v2440
    %v2583 = vmax.f32 %v2425, %v2445
    %v2584 = vmax.f32 %v2430, %v2450
    %v2585 = vmax.f32 %v2435, %v2455
    %v2586 = vmax.f32 %v2582, %v2583
    %v2587 = vmax.f32 %v2584, %v2585
    %v2588 = vmax.f32 %v2586, %v2587
    %v2589 = vrot.slane %v2588, 4
    %v2590 = vmax.f32 %v2588, %v2589
    %v2591 = vrot.slane %v2590, 2
    %v2592 = vmax.f32 %v2590, %v2591
    %v2593 = vrot.slane %v2592, 1
    %v2594 = vmax.f32 %v2592, %v2593
    %2595 = vst [vmem:[#allocation2 + $0x6] sm:$0x1] %v2594
    %v2596 = vmax.f32 %v2460, %v2480
    %v2597 = vmax.f32 %v2465, %v2485
    %v2598 = vmax.f32 %v2470, %v2490
    %v2599 = vmax.f32 %v2475, %v2495
    %v2600 = vmax.f32 %v2596, %v2597
    %v2601 = vmax.f32 %v2598, %v2599
    %v2602 = vmax.f32 %v2600, %v2601
    %v2603 = vrot.slane %v2602, 4
    %v2604 = vmax.f32 %v2602, %v2603
    %v2605 = vrot.slane %v2604, 2
    %v2606 = vmax.f32 %v2604, %v2605
    %v2607 = vrot.slane %v2606, 1
    %v2608 = vmax.f32 %v2606, %v2607
    %2609 = vst [vmem:[#allocation2 + $0x7] sm:$0x1] %v2608
    %v2610 = vld [vmem:[#allocation2] sm:$0xff]
    %v2611 = vld [vmem:[%s1] sm:$0xff]
    %v2612 = vld [vmem:[%s1 + $0x8] sm:$0xff]
    %v2613 = vld [vmem:[%s8] sm:$0xff]
    %v2614 = vld [vmem:[%s8 + $0x8] sm:$0xff]
    %v2615 = vld [vmem:[%s8 + $0x10] sm:$0xff]
    %v2616 = vld [vmem:[%s8 + $0x18] sm:$0xff]
    %v2617 = vld [vmem:[%s8 + $0x20] sm:$0xff]
    %v2618 = vld [vmem:[%s8 + $0x28] sm:$0xff]
    %v2619 = vld [vmem:[%s8 + $0x30] sm:$0xff]
    %v2620 = vld [vmem:[%s8 + $0x38] sm:$0xff]
    %v2621 = vld [vmem:[%s8 + $0x40] sm:$0xff]
    %v2622 = vld [vmem:[%s8 + $0x48] sm:$0xff]
    %v2623 = vld [vmem:[%s8 + $0x50] sm:$0xff]
    %v2624 = vld [vmem:[%s8 + $0x58] sm:$0xff]
    %v2625 = vld [vmem:[%s8 + $0x60] sm:$0xff]
    %v2626 = vld [vmem:[%s8 + $0x68] sm:$0xff]
    %v2627 = vld [vmem:[%s8 + $0x70] sm:$0xff]
    %v2628 = vld [vmem:[%s8 + $0x78] sm:$0xff]
    %v2629 = vld [vmem:[%s8 + $0x80] sm:$0xff]
    %v2630 = vld [vmem:[%s8 + $0x88] sm:$0xff]
    %v2631 = vld [vmem:[%s8 + $0x90] sm:$0xff]
    %v2632 = vld [vmem:[%s8 + $0x98] sm:$0xff]
    %v2633 = vld [vmem:[%s8 + $0xa0] sm:$0xff]
    %v2634 = vld [vmem:[%s8 + $0xa8] sm:$0xff]
    %v2635 = vld [vmem:[%s8 + $0xb0] sm:$0xff]
    %v2636 = vld [vmem:[%s8 + $0xb8] sm:$0xff]
    %v2637 = vld [vmem:[%s8 + $0xc0] sm:$0xff]
    %v2638 = vld [vmem:[%s8 + $0xc8] sm:$0xff]
    %v2639 = vld [vmem:[%s8 + $0xd0] sm:$0xff]
    %v2640 = vld [vmem:[%s8 + $0xd8] sm:$0xff]
    %v2641 = vld [vmem:[%s8 + $0xe0] sm:$0xff]
    %v2642 = vld [vmem:[%s8 + $0xe8] sm:$0xff]
    %v2643 = vld [vmem:[%s8 + $0xf0] sm:$0xff]
    %v2644 = vld [vmem:[%s8 + $0xf8] sm:$0xff]
    %v2645 = vld [vmem:[%s9] sm:$0x3]
    %v2647 = vlaneseq
    %v2648 = vshrl.u32 %v2647, 7
    %v2649 = vsub.s32 0, %v2648
    %v2650 = vrot.slane %v2645, %v2649
    %v2651 = vlaneseq
    %v2652 = vshrl.u32 %v2651, 7
    %v2653 = vsub.s32 1, %v2652
    %v2654 = vrot.slane %v2645, %v2653
    %2657 = vmatprep.subr.mxu0 %v2614
    %2658 = vmatpush1.msra.mxu0 %v2613
    %2659 = vmatprep.subr.mxu0 %v2616
    %2660 = vmatpush1.msra.mxu0 %v2615
    %2661 = vmatprep.subr.mxu0 %v2618
    %2662 = vmatpush1.msra.mxu0 %v2617
    %2663 = vmatprep.subr.mxu0 %v2620
    %2664 = vmatpush1.msra.mxu0 %v2619
    %2665 = vmatprep.subr.mxu0 %v2622
    %2666 = vmatpush1.msra.mxu0 %v2621
    %2667 = vmatprep.subr.mxu0 %v2624
    %2668 = vmatpush1.msra.mxu0 %v2623
    %2669 = vmatprep.subr.mxu0 %v2626
    %2670 = vmatpush1.msra.mxu0 %v2625
    %2671 = vmatprep.subr.mxu0 %v2628
    %2672 = vmatpush1.msra.mxu0 %v2627
    %2673 = vmatprep.subr.mxu0 %v2630
    %2674 = vmatpush1.msra.mxu0 %v2629
    %2675 = vmatprep.subr.mxu0 %v2632
    %2676 = vmatpush1.msra.mxu0 %v2631
    %2677 = vmatprep.subr.mxu0 %v2634
    %2678 = vmatpush1.msra.mxu0 %v2633
    %2679 = vmatprep.subr.mxu0 %v2636
    %2680 = vmatpush1.msra.mxu0 %v2635
    %2681 = vmatprep.subr.mxu0 %v2638
    %2682 = vmatpush1.msra.mxu0 %v2637
    %2683 = vmatprep.subr.mxu0 %v2640
    %2684 = vmatpush1.msra.mxu0 %v2639
    %2685 = vmatprep.subr.mxu0 %v2642
    %2686 = vmatpush1.msra.mxu0 %v2641
    %2687 = vmatprep.subr.mxu0 %v2644
    %2688 = vmatpush1.msra.mxu0 %v2643
    %2689 = vmatprep.subr.mxu0 0.0
    %2690 = vmatpush1.msra.mxu0 0.0
    %2691 = vmatprep.subr.mxu0 0.0
    %2692 = vmatpush1.msra.mxu0 0.0
    %2693 = vmatprep.subr.mxu0 0.0
    %2694 = vmatpush1.msra.mxu0 0.0
    %2695 = vmatprep.subr.mxu0 0.0
    %2696 = vmatpush1.msra.mxu0 0.0
    %2697 = vmatprep.subr.mxu0 0.0
    %2698 = vmatpush1.msra.mxu0 0.0
    %2699 = vmatprep.subr.mxu0 0.0
    %2700 = vmatpush1.msra.mxu0 0.0
    %2701 = vmatprep.subr.mxu0 0.0
    %2702 = vmatpush1.msra.mxu0 0.0
    %2703 = vmatprep.subr.mxu0 0.0
    %2704 = vmatpush1.msra.mxu0 0.0
    %2705 = vmatprep.subr.mxu0 0.0
    %2706 = vmatpush1.msra.mxu0 0.0
    %2707 = vmatprep.subr.mxu0 0.0
    %2708 = vmatpush1.msra.mxu0 0.0
    %2709 = vmatprep.subr.mxu0 0.0
    %2710 = vmatpush1.msra.mxu0 0.0
    %2711 = vmatprep.subr.mxu0 0.0
    %2712 = vmatpush1.msra.mxu0 0.0
    %2713 = vmatprep.subr.mxu0 0.0
    %2714 = vmatpush1.msra.mxu0 0.0
    %2715 = vmatprep.subr.mxu0 0.0
    %2716 = vmatpush1.msra.mxu0 0.0
    %2717 = vmatprep.subr.mxu0 0.0
    %2718 = vmatpush1.msra.mxu0 0.0
    %2719 = vmatprep.subr.mxu0 0.0
    %2720 = vmatpush1.msra.mxu0 0.0
    %2721 = vmatprep.mubr.f32.mxu0 0.0
    %2722 = vmatmul.mubr.f32.gmra.mrb[0].mxu0 %v2610
    %v2723 = vpop.f32.mrb[0].mxu0
    %v2724 = vadd.f32 %v2650, %v2723
    %v2725 = vpop.f32.mrb[0].mxu0
    %v2726 = vadd.f32 %v2654, %v2725
    %2727 = vdwg.mxu0
    %v2728 = vmax.f32 %v2724, 0.0
    %v2729 = vmax.f32 %v2726, 0.0
    %v2730 = vmul.f32 %v2611, %v2728
    %v2731 = vmul.f32 %v2612, %v2729
    %2732 = vst [vmem:[#allocation3] sm:$0xff] %v2730
    %2733 = vst [vmem:[#allocation3 + $0x8] sm:$0xff] %v2731
    %v2734 = vsub.f32 %v2611, %v2728
    %v2735 = vsub.f32 %v2612, %v2729
    %2736 = vst [vmem:[#allocation3 + $0x10] sm:$0xff] %v2734
    %2737 = vst [vmem:[#allocation3 + $0x18] sm:$0xff] %v2735
    %v2738 = vld [vmem:[#allocation3] sm:$0xff]
    %v2739 = vld [vmem:[#allocation3 + $0x8] sm:$0xff]
    %v2740 = vld [vmem:[#allocation3 + $0x10] sm:$0xff]
    %v2741 = vld [vmem:[#allocation3 + $0x18] sm:$0xff]
    %v2742 = vld [vmem:[%s10] sm:$0xff]
    %v2743 = vld [vmem:[%s10 + $0x8] sm:$0xff]
    %v2744 = vld [vmem:[%s10 + $0x10] sm:$0xff]
    %v2745 = vld [vmem:[%s10 + $0x18] sm:$0xff]
    %v2746 = vld [vmem:[%s10 + $0x20] sm:$0xff]
    %v2747 = vld [vmem:[%s10 + $0x28] sm:$0xff]
    %v2748 = vld [vmem:[%s10 + $0x30] sm:$0xff]
    %v2749 = vld [vmem:[%s10 + $0x38] sm:$0xff]
    %v2750 = vld [vmem:[%s10 + $0x40] sm:$0xff]
    %v2751 = vld [vmem:[%s10 + $0x48] sm:$0xff]
    %v2752 = vld [vmem:[%s10 + $0x50] sm:$0xff]
    %v2753 = vld [vmem:[%s10 + $0x58] sm:$0xff]
    %v2754 = vld [vmem:[%s10 + $0x60] sm:$0xff]
    %v2755 = vld [vmem:[%s10 + $0x68] sm:$0xff]
    %v2756 = vld [vmem:[%s10 + $0x70] sm:$0xff]
    %v2757 = vld [vmem:[%s10 + $0x78] sm:$0xff]
    %v2758 = vld [vmem:[%s10 + $0x80] sm:$0xff]
    %v2759 = vld [vmem:[%s10 + $0x88] sm:$0xff]
    %v2760 = vld [vmem:[%s10 + $0x90] sm:$0xff]
    %v2761 = vld [vmem:[%s10 + $0x98] sm:$0xff]
    %v2762 = vld [vmem:[%s10 + $0xa0] sm:$0xff]
    %v2763 = vld [vmem:[%s10 + $0xa8] sm:$0xff]
    %v2764 = vld [vmem:[%s10 + $0xb0] sm:$0xff]
    %v2765 = vld [vmem:[%s10 + $0xb8] sm:$0xff]
    %v2766 = vld [vmem:[%s10 + $0xc0] sm:$0xff]
    %v2767 = vld [vmem:[%s10 + $0xc8] sm:$0xff]
    %v2768 = vld [vmem:[%s10 + $0xd0] sm:$0xff]
    %v2769 = vld [vmem:[%s10 + $0xd8] sm:$0xff]
    %v2770 = vld [vmem:[%s10 + $0xe0] sm:$0xff]
    %v2771 = vld [vmem:[%s10 + $0xe8] sm:$0xff]
    %v2772 = vld [vmem:[%s10 + $0xf0] sm:$0xff]
    %v2773 = vld [vmem:[%s10 + $0xf8] sm:$0xff]
    %v2774 = vld [vmem:[%s10 + $0x100] sm:$0xff]
    %v2775 = vld [vmem:[%s10 + $0x108] sm:$0xff]
    %v2776 = vld [vmem:[%s10 + $0x110] sm:$0xff]
    %v2777 = vld [vmem:[%s10 + $0x118] sm:$0xff]
    %v2778 = vld [vmem:[%s10 + $0x120] sm:$0xff]
    %v2779 = vld [vmem:[%s10 + $0x128] sm:$0xff]
    %v2780 = vld [vmem:[%s10 + $0x130] sm:$0xff]
    %v2781 = vld [vmem:[%s10 + $0x138] sm:$0xff]
    %v2782 = vld [vmem:[%s10 + $0x140] sm:$0xff]
    %v2783 = vld [vmem:[%s10 + $0x148] sm:$0xff]
    %v2784 = vld [vmem:[%s10 + $0x150] sm:$0xff]
    %v2785 = vld [vmem:[%s10 + $0x158] sm:$0xff]
    %v2786 = vld [vmem:[%s10 + $0x160] sm:$0xff]
    %v2787 = vld [vmem:[%s10 + $0x168] sm:$0xff]
    %v2788 = vld [vmem:[%s10 + $0x170] sm:$0xff]
    %v2789 = vld [vmem:[%s10 + $0x178] sm:$0xff]
    %v2790 = vld [vmem:[%s10 + $0x180] sm:$0xff]
    %v2791 = vld [vmem:[%s10 + $0x188] sm:$0xff]
    %v2792 = vld [vmem:[%s10 + $0x190] sm:$0xff]
    %v2793 = vld [vmem:[%s10 + $0x198] sm:$0xff]
    %v2794 = vld [vmem:[%s10 + $0x1a0] sm:$0xff]
    %v2795 = vld [vmem:[%s10 + $0x1a8] sm:$0xff]
    %v2796 = vld [vmem:[%s10 + $0x1b0] sm:$0xff]
    %v2797 = vld [vmem:[%s10 + $0x1b8] sm:$0xff]
    %v2798 = vld [vmem:[%s10 + $0x1c0] sm:$0xff]
    %v2799 = vld [vmem:[%s10 + $0x1c8] sm:$0xff]
    %v2800 = vld [vmem:[%s10 + $0x1d0] sm:$0xff]
    %v2801 = vld [vmem:[%s10 + $0x1d8] sm:$0xff]
    %v2802 = vld [vmem:[%s10 + $0x1e0] sm:$0xff]
    %v2803 = vld [vmem:[%s10 + $0x1e8] sm:$0xff]
    %v2804 = vld [vmem:[%s10 + $0x1f0] sm:$0xff]
    %v2805 = vld [vmem:[%s10 + $0x1f8] sm:$0xff]
    %v2806 = vld [vmem:[%s10 + $0x200] sm:$0xff]
    %v2807 = vld [vmem:[%s10 + $0x208] sm:$0xff]
    %v2808 = vld [vmem:[%s10 + $0x210] sm:$0xff]
    %v2809 = vld [vmem:[%s10 + $0x218] sm:$0xff]
    %v2810 = vld [vmem:[%s10 + $0x220] sm:$0xff]
    %v2811 = vld [vmem:[%s10 + $0x228] sm:$0xff]
    %v2812 = vld [vmem:[%s10 + $0x230] sm:$0xff]
    %v2813 = vld [vmem:[%s10 + $0x238] sm:$0xff]
    %v2814 = vld [vmem:[%s10 + $0x240] sm:$0xff]
    %v2815 = vld [vmem:[%s10 + $0x248] sm:$0xff]
    %v2816 = vld [vmem:[%s10 + $0x250] sm:$0xff]
    %v2817 = vld [vmem:[%s10 + $0x258] sm:$0xff]
    %v2818 = vld [vmem:[%s10 + $0x260] sm:$0xff]
    %v2819 = vld [vmem:[%s10 + $0x268] sm:$0xff]
    %v2820 = vld [vmem:[%s10 + $0x270] sm:$0xff]
    %v2821 = vld [vmem:[%s10 + $0x278] sm:$0xff]
    %v2822 = vld [vmem:[%s10 + $0x280] sm:$0xff]
    %v2823 = vld [vmem:[%s10 + $0x288] sm:$0xff]
    %v2824 = vld [vmem:[%s10 + $0x290] sm:$0xff]
    %v2825 = vld [vmem:[%s10 + $0x298] sm:$0xff]
    %v2826 = vld [vmem:[%s10 + $0x2a0] sm:$0xff]
    %v2827 = vld [vmem:[%s10 + $0x2a8] sm:$0xff]
    %v2828 = vld [vmem:[%s10 + $0x2b0] sm:$0xff]
    %v2829 = vld [vmem:[%s10 + $0x2b8] sm:$0xff]
    %v2830 = vld [vmem:[%s10 + $0x2c0] sm:$0xff]
    %v2831 = vld [vmem:[%s10 + $0x2c8] sm:$0xff]
    %v2832 = vld [vmem:[%s10 + $0x2d0] sm:$0xff]
    %v2833 = vld [vmem:[%s10 + $0x2d8] sm:$0xff]
    %v2834 = vld [vmem:[%s10 + $0x2e0] sm:$0xff]
    %v2835 = vld [vmem:[%s10 + $0x2e8] sm:$0xff]
    %v2836 = vld [vmem:[%s10 + $0x2f0] sm:$0xff]
    %v2837 = vld [vmem:[%s10 + $0x2f8] sm:$0xff]
    %v2838 = vld [vmem:[%s10 + $0x300] sm:$0xff]
    %v2839 = vld [vmem:[%s10 + $0x308] sm:$0xff]
    %v2840 = vld [vmem:[%s10 + $0x310] sm:$0xff]
    %v2841 = vld [vmem:[%s10 + $0x318] sm:$0xff]
    %v2842 = vld [vmem:[%s10 + $0x320] sm:$0xff]
    %v2843 = vld [vmem:[%s10 + $0x328] sm:$0xff]
    %v2844 = vld [vmem:[%s10 + $0x330] sm:$0xff]
    %v2845 = vld [vmem:[%s10 + $0x338] sm:$0xff]
    %v2846 = vld [vmem:[%s10 + $0x340] sm:$0xff]
    %v2847 = vld [vmem:[%s10 + $0x348] sm:$0xff]
    %v2848 = vld [vmem:[%s10 + $0x350] sm:$0xff]
    %v2849 = vld [vmem:[%s10 + $0x358] sm:$0xff]
    %v2850 = vld [vmem:[%s10 + $0x360] sm:$0xff]
    %v2851 = vld [vmem:[%s10 + $0x368] sm:$0xff]
    %v2852 = vld [vmem:[%s10 + $0x370] sm:$0xff]
    %v2853 = vld [vmem:[%s10 + $0x378] sm:$0xff]
    %v2854 = vld [vmem:[%s10 + $0x380] sm:$0xff]
    %v2855 = vld [vmem:[%s10 + $0x388] sm:$0xff]
    %v2856 = vld [vmem:[%s10 + $0x390] sm:$0xff]
    %v2857 = vld [vmem:[%s10 + $0x398] sm:$0xff]
    %v2858 = vld [vmem:[%s10 + $0x3a0] sm:$0xff]
    %v2859 = vld [vmem:[%s10 + $0x3a8] sm:$0xff]
    %v2860 = vld [vmem:[%s10 + $0x3b0] sm:$0xff]
    %v2861 = vld [vmem:[%s10 + $0x3b8] sm:$0xff]
    %v2862 = vld [vmem:[%s10 + $0x3c0] sm:$0xff]
    %v2863 = vld [vmem:[%s10 + $0x3c8] sm:$0xff]
    %v2864 = vld [vmem:[%s10 + $0x3d0] sm:$0xff]
    %v2865 = vld [vmem:[%s10 + $0x3d8] sm:$0xff]
    %v2866 = vld [vmem:[%s10 + $0x3e0] sm:$0xff]
    %v2867 = vld [vmem:[%s10 + $0x3e8] sm:$0xff]
    %v2868 = vld [vmem:[%s10 + $0x3f0] sm:$0xff]
    %v2869 = vld [vmem:[%s10 + $0x3f8] sm:$0xff]
    %v2870 = vld [vmem:[%s11] sm:$0x3]
    %v2872 = vlaneseq
    %v2873 = vshrl.u32 %v2872, 7
    %v2874 = vsub.s32 0, %v2873
    %v2875 = vrot.slane %v2870, %v2874
    %v2876 = vlaneseq
    %v2877 = vshrl.u32 %v2876, 7
    %v2878 = vsub.s32 1, %v2877
    %v2879 = vrot.slane %v2870, %v2878
    %2882 = vmatprep.subr.mxu0 %v2743
    %2883 = vmatpush1.msra.mxu0 %v2742
    %2884 = vmatprep.subr.mxu0 %v2745
    %2885 = vmatpush1.msra.mxu0 %v2744
    %2886 = vmatprep.subr.mxu0 %v2747
    %2887 = vmatpush1.msra.mxu0 %v2746
    %2888 = vmatprep.subr.mxu0 %v2749
    %2889 = vmatpush1.msra.mxu0 %v2748
    %2890 = vmatprep.subr.mxu0 %v2751
    %2891 = vmatpush1.msra.mxu0 %v2750
    %2892 = vmatprep.subr.mxu0 %v2753
    %2893 = vmatpush1.msra.mxu0 %v2752
    %2894 = vmatprep.subr.mxu0 %v2755
    %2895 = vmatpush1.msra.mxu0 %v2754
    %2896 = vmatprep.subr.mxu0 %v2757
    %2897 = vmatpush1.msra.mxu0 %v2756
    %2898 = vmatprep.subr.mxu0 %v2759
    %2899 = vmatpush1.msra.mxu0 %v2758
    %2900 = vmatprep.subr.mxu0 %v2761
    %2901 = vmatpush1.msra.mxu0 %v2760
    %2902 = vmatprep.subr.mxu0 %v2763
    %2903 = vmatpush1.msra.mxu0 %v2762
    %2904 = vmatprep.subr.mxu0 %v2765
    %2905 = vmatpush1.msra.mxu0 %v2764
    %2906 = vmatprep.subr.mxu0 %v2767
    %2907 = vmatpush1.msra.mxu0 %v2766
    %2908 = vmatprep.subr.mxu0 %v2769
    %2909 = vmatpush1.msra.mxu0 %v2768
    %2910 = vmatprep.subr.mxu0 %v2771
    %2911 = vmatpush1.msra.mxu0 %v2770
    %2912 = vmatprep.subr.mxu0 %v2773
    %2913 = vmatpush1.msra.mxu0 %v2772
    %2914 = vmatprep.subr.mxu0 %v2775
    %2915 = vmatpush1.msra.mxu0 %v2774
    %2916 = vmatprep.subr.mxu0 %v2777
    %2917 = vmatpush1.msra.mxu0 %v2776
    %2918 = vmatprep.subr.mxu0 %v2779
    %2919 = vmatpush1.msra.mxu0 %v2778
    %2920 = vmatprep.subr.mxu0 %v2781
    %2921 = vmatpush1.msra.mxu0 %v2780
    %2922 = vmatprep.subr.mxu0 %v2783
    %2923 = vmatpush1.msra.mxu0 %v2782
    %2924 = vmatprep.subr.mxu0 %v2785
    %2925 = vmatpush1.msra.mxu0 %v2784
    %2926 = vmatprep.subr.mxu0 %v2787
    %2927 = vmatpush1.msra.mxu0 %v2786
    %2928 = vmatprep.subr.mxu0 %v2789
    %2929 = vmatpush1.msra.mxu0 %v2788
    %2930 = vmatprep.subr.mxu0 %v2791
    %2931 = vmatpush1.msra.mxu0 %v2790
    %2932 = vmatprep.subr.mxu0 %v2793
    %2933 = vmatpush1.msra.mxu0 %v2792
    %2934 = vmatprep.subr.mxu0 %v2795
    %2935 = vmatpush1.msra.mxu0 %v2794
    %2936 = vmatprep.subr.mxu0 %v2797
    %2937 = vmatpush1.msra.mxu0 %v2796
    %2938 = vmatprep.subr.mxu0 %v2799
    %2939 = vmatpush1.msra.mxu0 %v2798
    %2940 = vmatprep.subr.mxu0 %v2801
    %2941 = vmatpush1.msra.mxu0 %v2800
    %2942 = vmatprep.subr.mxu0 %v2803
    %2943 = vmatpush1.msra.mxu0 %v2802
    %2944 = vmatprep.subr.mxu0 %v2805
    %2945 = vmatpush1.msra.mxu0 %v2804
    %2946 = vmatprep.mubr.f32.mxu0 %v2739
    %2947 = vmatmul.mubr.f32.gmra.mrb[0].mxu0 %v2738
    %v2948 = vpop.f32.mrb[0].mxu0
    %v2949 = vadd.f32 %v2875, %v2948
    %v2950 = vpop.f32.mrb[0].mxu0
    %v2951 = vadd.f32 %v2879, %v2950
    %2952 = vdwg.mxu0
    %2953 = vmatprep.subr.mxu0 %v2807
    %2954 = vmatpush1.msra.mxu0 %v2806
    %2955 = vmatprep.subr.mxu0 %v2809
    %2956 = vmatpush1.msra.mxu0 %v2808
    %2957 = vmatprep.subr.mxu0 %v2811
    %2958 = vmatpush1.msra.mxu0 %v2810
    %2959 = vmatprep.subr.mxu0 %v2813
    %2960 = vmatpush1.msra.mxu0 %v2812
    %2961 = vmatprep.subr.mxu0 %v2815
    %2962 = vmatpush1.msra.mxu0 %v2814
    %2963 = vmatprep.subr.mxu0 %v2817
    %2964 = vmatpush1.msra.mxu0 %v2816
    %2965 = vmatprep.subr.mxu0 %v2819
    %2966 = vmatpush1.msra.mxu0 %v2818
    %2967 = vmatprep.subr.mxu0 %v2821
    %2968 = vmatpush1.msra.mxu0 %v2820
    %2969 = vmatprep.subr.mxu0 %v2823
    %2970 = vmatpush1.msra.mxu0 %v2822
    %2971 = vmatprep.subr.mxu0 %v2825
    %2972 = vmatpush1.msra.mxu0 %v2824
    %2973 = vmatprep.subr.mxu0 %v2827
    %2974 = vmatpush1.msra.mxu0 %v2826
    %2975 = vmatprep.subr.mxu0 %v2829
    %2976 = vmatpush1.msra.mxu0 %v2828
    %2977 = vmatprep.subr.mxu0 %v2831
    %2978 = vmatpush1.msra.mxu0 %v2830
    %2979 = vmatprep.subr.mxu0 %v2833
    %2980 = vmatpush1.msra.mxu0 %v2832
    %2981 = vmatprep.subr.mxu0 %v2835
    %2982 = vmatpush1.msra.mxu0 %v2834
    %2983 = vmatprep.subr.mxu0 %v2837
    %2984 = vmatpush1.msra.mxu0 %v2836
    %2985 = vmatprep.subr.mxu0 %v2839
    %2986 = vmatpush1.msra.mxu0 %v2838
    %2987 = vmatprep.subr.mxu0 %v2841
    %2988 = vmatpush1.msra.mxu0 %v2840
    %2989 = vmatprep.subr.mxu0 %v2843
    %2990 = vmatpush1.msra.mxu0 %v2842
    %2991 = vmatprep.subr.mxu0 %v2845
    %2992 = vmatpush1.msra.mxu0 %v2844
    %2993 = vmatprep.subr.mxu0 %v2847
    %2994 = vmatpush1.msra.mxu0 %v2846
    %2995 = vmatprep.subr.mxu0 %v2849
    %2996 = vmatpush1.msra.mxu0 %v2848
    %2997 = vmatprep.subr.mxu0 %v2851
    %2998 = vmatpush1.msra.mxu0 %v2850
    %2999 = vmatprep.subr.mxu0 %v2853
    %3000 = vmatpush1.msra.mxu0 %v2852
    %3001 = vmatprep.subr.mxu0 %v2855
    %3002 = vmatpush1.msra.mxu0 %v2854
    %3003 = vmatprep.subr.mxu0 %v2857
    %3004 = vmatpush1.msra.mxu0 %v2856
    %3005 = vmatprep.subr.mxu0 %v2859
    %3006 = vmatpush1.msra.mxu0 %v2858
    %3007 = vmatprep.subr.mxu0 %v2861
    %3008 = vmatpush1.msra.mxu0 %v2860
    %3009 = vmatprep.subr.mxu0 %v2863
    %3010 = vmatpush1.msra.mxu0 %v2862
    %3011 = vmatprep.subr.mxu0 %v2865
    %3012 = vmatpush1.msra.mxu0 %v2864
    %3013 = vmatprep.subr.mxu0 %v2867
    %3014 = vmatpush1.msra.mxu0 %v2866
    %3015 = vmatprep.subr.mxu0 %v2869
    %3016 = vmatpush1.msra.mxu0 %v2868
    %3017 = vmatprep.mubr.f32.mxu0 %v2741
    %3018 = vmatmul.mubr.f32.gmra.mrb[0].mxu0 %v2740
    %v3019 = vpop.f32.mrb[0].mxu0
    %v3020 = vadd.f32 %v2949, %v3019
    %v3021 = vpop.f32.mrb[0].mxu0
    %v3022 = vadd.f32 %v2951, %v3021
    %3023 = vdwg.mxu0
    %v3024 = vmax.f32 %v3020, 0.0
    %v3025 = vmax.f32 %v3022, 0.0
    %v3026 = vld [vmem:[%s12] sm:$0xff]
    %v3027 = vld [vmem:[%s12 + $0x8] sm:$0xff]
    %v3028 = vld [vmem:[%s12 + $0x10] sm:$0xff]
    %v3029 = vld [vmem:[%s12 + $0x18] sm:$0xff]
    %v3030 = vld [vmem:[%s12 + $0x20] sm:$0xff]
    %v3031 = vld [vmem:[%s12 + $0x28] sm:$0xff]
    %v3032 = vld [vmem:[%s12 + $0x30] sm:$0xff]
    %v3033 = vld [vmem:[%s12 + $0x38] sm:$0xff]
    %v3034 = vld [vmem:[%s12 + $0x40] sm:$0xff]
    %v3035 = vld [vmem:[%s12 + $0x48] sm:$0xff]
    %v3036 = vld [vmem:[%s12 + $0x50] sm:$0xff]
    %v3037 = vld [vmem:[%s12 + $0x58] sm:$0xff]
    %v3038 = vld [vmem:[%s12 + $0x60] sm:$0xff]
    %v3039 = vld [vmem:[%s12 + $0x68] sm:$0xff]
    %v3040 = vld [vmem:[%s12 + $0x70] sm:$0xff]
    %v3041 = vld [vmem:[%s12 + $0x78] sm:$0xff]
    %v3042 = vld [vmem:[%s12 + $0x80] sm:$0xff]
    %v3043 = vld [vmem:[%s12 + $0x88] sm:$0xff]
    %v3044 = vld [vmem:[%s12 + $0x90] sm:$0xff]
    %v3045 = vld [vmem:[%s12 + $0x98] sm:$0xff]
    %v3046 = vld [vmem:[%s12 + $0xa0] sm:$0xff]
    %v3047 = vld [vmem:[%s12 + $0xa8] sm:$0xff]
    %v3048 = vld [vmem:[%s12 + $0xb0] sm:$0xff]
    %v3049 = vld [vmem:[%s12 + $0xb8] sm:$0xff]
    %v3050 = vld [vmem:[%s12 + $0xc0] sm:$0xff]
    %v3051 = vld [vmem:[%s12 + $0xc8] sm:$0xff]
    %v3052 = vld [vmem:[%s12 + $0xd0] sm:$0xff]
    %v3053 = vld [vmem:[%s12 + $0xd8] sm:$0xff]
    %v3054 = vld [vmem:[%s12 + $0xe0] sm:$0xff]
    %v3055 = vld [vmem:[%s12 + $0xe8] sm:$0xff]
    %v3056 = vld [vmem:[%s12 + $0xf0] sm:$0xff]
    %v3057 = vld [vmem:[%s12 + $0xf8] sm:$0xff]
    %v3058 = vld [vmem:[%s12 + $0x100] sm:$0xff]
    %v3059 = vld [vmem:[%s12 + $0x108] sm:$0xff]
    %v3060 = vld [vmem:[%s12 + $0x110] sm:$0xff]
    %v3061 = vld [vmem:[%s12 + $0x118] sm:$0xff]
    %v3062 = vld [vmem:[%s12 + $0x120] sm:$0xff]
    %v3063 = vld [vmem:[%s12 + $0x128] sm:$0xff]
    %v3064 = vld [vmem:[%s12 + $0x130] sm:$0xff]
    %v3065 = vld [vmem:[%s12 + $0x138] sm:$0xff]
    %v3066 = vld [vmem:[%s12 + $0x140] sm:$0xff]
    %v3067 = vld [vmem:[%s12 + $0x148] sm:$0xff]
    %v3068 = vld [vmem:[%s12 + $0x150] sm:$0xff]
    %v3069 = vld [vmem:[%s12 + $0x158] sm:$0xff]
    %v3070 = vld [vmem:[%s12 + $0x160] sm:$0xff]
    %v3071 = vld [vmem:[%s12 + $0x168] sm:$0xff]
    %v3072 = vld [vmem:[%s12 + $0x170] sm:$0xff]
    %v3073 = vld [vmem:[%s12 + $0x178] sm:$0xff]
    %v3074 = vld [vmem:[%s12 + $0x180] sm:$0xff]
    %v3075 = vld [vmem:[%s12 + $0x188] sm:$0xff]
    %v3076 = vld [vmem:[%s12 + $0x190] sm:$0xff]
    %v3077 = vld [vmem:[%s12 + $0x198] sm:$0xff]
    %v3078 = vld [vmem:[%s12 + $0x1a0] sm:$0xff]
    %v3079 = vld [vmem:[%s12 + $0x1a8] sm:$0xff]
    %v3080 = vld [vmem:[%s12 + $0x1b0] sm:$0xff]
    %v3081 = vld [vmem:[%s12 + $0x1b8] sm:$0xff]
    %v3082 = vld [vmem:[%s12 + $0x1c0] sm:$0xff]
    %v3083 = vld [vmem:[%s12 + $0x1c8] sm:$0xff]
    %v3084 = vld [vmem:[%s12 + $0x1d0] sm:$0xff]
    %v3085 = vld [vmem:[%s12 + $0x1d8] sm:$0xff]
    %v3086 = vld [vmem:[%s12 + $0x1e0] sm:$0xff]
    %v3087 = vld [vmem:[%s12 + $0x1e8] sm:$0xff]
    %v3088 = vld [vmem:[%s12 + $0x1f0] sm:$0xff]
    %v3089 = vld [vmem:[%s12 + $0x1f8] sm:$0xff]
    %v3090 = vld [vmem:[%s12 + $0x200] sm:$0xff]
    %v3091 = vld [vmem:[%s12 + $0x208] sm:$0xff]
    %v3092 = vld [vmem:[%s12 + $0x210] sm:$0xff]
    %v3093 = vld [vmem:[%s12 + $0x218] sm:$0xff]
    %v3094 = vld [vmem:[%s12 + $0x220] sm:$0xff]
    %v3095 = vld [vmem:[%s12 + $0x228] sm:$0xff]
    %v3096 = vld [vmem:[%s12 + $0x230] sm:$0xff]
    %v3097 = vld [vmem:[%s12 + $0x238] sm:$0xff]
    %v3098 = vld [vmem:[%s12 + $0x240] sm:$0xff]
    %v3099 = vld [vmem:[%s12 + $0x248] sm:$0xff]
    %v3100 = vld [vmem:[%s12 + $0x250] sm:$0xff]
    %v3101 = vld [vmem:[%s12 + $0x258] sm:$0xff]
    %v3102 = vld [vmem:[%s12 + $0x260] sm:$0xff]
    %v3103 = vld [vmem:[%s12 + $0x268] sm:$0xff]
    %v3104 = vld [vmem:[%s12 + $0x270] sm:$0xff]
    %v3105 = vld [vmem:[%s12 + $0x278] sm:$0xff]
    %v3106 = vld [vmem:[%s12 + $0x280] sm:$0xff]
    %v3107 = vld [vmem:[%s12 + $0x288] sm:$0xff]
    %v3108 = vld [vmem:[%s12 + $0x290] sm:$0xff]
    %v3109 = vld [vmem:[%s12 + $0x298] sm:$0xff]
    %v3110 = vld [vmem:[%s12 + $0x2a0] sm:$0xff]
    %v3111 = vld [vmem:[%s12 + $0x2a8] sm:$0xff]
    %v3112 = vld [vmem:[%s12 + $0x2b0] sm:$0xff]
    %v3113 = vld [vmem:[%s12 + $0x2b8] sm:$0xff]
    %v3114 = vld [vmem:[%s12 + $0x2c0] sm:$0xff]
    %v3115 = vld [vmem:[%s12 + $0x2c8] sm:$0xff]
    %v3116 = vld [vmem:[%s12 + $0x2d0] sm:$0xff]
    %v3117 = vld [vmem:[%s12 + $0x2d8] sm:$0xff]
    %v3118 = vld [vmem:[%s12 + $0x2e0] sm:$0xff]
    %v3119 = vld [vmem:[%s12 + $0x2e8] sm:$0xff]
    %v3120 = vld [vmem:[%s12 + $0x2f0] sm:$0xff]
    %v3121 = vld [vmem:[%s12 + $0x2f8] sm:$0xff]
    %v3122 = vld [vmem:[%s12 + $0x300] sm:$0xff]
    %v3123 = vld [vmem:[%s12 + $0x308] sm:$0xff]
    %v3124 = vld [vmem:[%s12 + $0x310] sm:$0xff]
    %v3125 = vld [vmem:[%s12 + $0x318] sm:$0xff]
    %v3126 = vld [vmem:[%s12 + $0x320] sm:$0xff]
    %v3127 = vld [vmem:[%s12 + $0x328] sm:$0xff]
    %v3128 = vld [vmem:[%s12 + $0x330] sm:$0xff]
    %v3129 = vld [vmem:[%s12 + $0x338] sm:$0xff]
    %v3130 = vld [vmem:[%s12 + $0x340] sm:$0xff]
    %v3131 = vld [vmem:[%s12 + $0x348] sm:$0xff]
    %v3132 = vld [vmem:[%s12 + $0x350] sm:$0xff]
    %v3133 = vld [vmem:[%s12 + $0x358] sm:$0xff]
    %v3134 = vld [vmem:[%s12 + $0x360] sm:$0xff]
    %v3135 = vld [vmem:[%s12 + $0x368] sm:$0xff]
    %v3136 = vld [vmem:[%s12 + $0x370] sm:$0xff]
    %v3137 = vld [vmem:[%s12 + $0x378] sm:$0xff]
    %v3138 = vld [vmem:[%s12 + $0x380] sm:$0xff]
    %v3139 = vld [vmem:[%s12 + $0x388] sm:$0xff]
    %v3140 = vld [vmem:[%s12 + $0x390] sm:$0xff]
    %v3141 = vld [vmem:[%s12 + $0x398] sm:$0xff]
    %v3142 = vld [vmem:[%s12 + $0x3a0] sm:$0xff]
    %v3143 = vld [vmem:[%s12 + $0x3a8] sm:$0xff]
    %v3144 = vld [vmem:[%s12 + $0x3b0] sm:$0xff]
    %v3145 = vld [vmem:[%s12 + $0x3b8] sm:$0xff]
    %v3146 = vld [vmem:[%s12 + $0x3c0] sm:$0xff]
    %v3147 = vld [vmem:[%s12 + $0x3c8] sm:$0xff]
    %v3148 = vld [vmem:[%s12 + $0x3d0] sm:$0xff]
    %v3149 = vld [vmem:[%s12 + $0x3d8] sm:$0xff]
    %v3150 = vld [vmem:[%s12 + $0x3e0] sm:$0xff]
    %v3151 = vld [vmem:[%s12 + $0x3e8] sm:$0xff]
    %v3152 = vld [vmem:[%s12 + $0x3f0] sm:$0xff]
    %v3153 = vld [vmem:[%s12 + $0x3f8] sm:$0xff]
    %v3154 = vld [vmem:[%s12 + $0x400] sm:$0xff]
    %v3155 = vld [vmem:[%s12 + $0x408] sm:$0xff]
    %v3156 = vld [vmem:[%s12 + $0x410] sm:$0xff]
    %v3157 = vld [vmem:[%s12 + $0x418] sm:$0xff]
    %v3158 = vld [vmem:[%s12 + $0x420] sm:$0xff]
    %v3159 = vld [vmem:[%s12 + $0x428] sm:$0xff]
    %v3160 = vld [vmem:[%s12 + $0x430] sm:$0xff]
    %v3161 = vld [vmem:[%s12 + $0x438] sm:$0xff]
    %v3162 = vld [vmem:[%s12 + $0x440] sm:$0xff]
    %v3163 = vld [vmem:[%s12 + $0x448] sm:$0xff]
    %v3164 = vld [vmem:[%s12 + $0x450] sm:$0xff]
    %v3165 = vld [vmem:[%s12 + $0x458] sm:$0xff]
    %v3166 = vld [vmem:[%s12 + $0x460] sm:$0xff]
    %v3167 = vld [vmem:[%s12 + $0x468] sm:$0xff]
    %v3168 = vld [vmem:[%s12 + $0x470] sm:$0xff]
    %v3169 = vld [vmem:[%s12 + $0x478] sm:$0xff]
    %v3170 = vld [vmem:[%s12 + $0x480] sm:$0xff]
    %v3171 = vld [vmem:[%s12 + $0x488] sm:$0xff]
    %v3172 = vld [vmem:[%s12 + $0x490] sm:$0xff]
    %v3173 = vld [vmem:[%s12 + $0x498] sm:$0xff]
    %v3174 = vld [vmem:[%s12 + $0x4a0] sm:$0xff]
    %v3175 = vld [vmem:[%s12 + $0x4a8] sm:$0xff]
    %v3176 = vld [vmem:[%s12 + $0x4b0] sm:$0xff]
    %v3177 = vld [vmem:[%s12 + $0x4b8] sm:$0xff]
    %v3178 = vld [vmem:[%s12 + $0x4c0] sm:$0xff]
    %v3179 = vld [vmem:[%s12 + $0x4c8] sm:$0xff]
    %v3180 = vld [vmem:[%s12 + $0x4d0] sm:$0xff]
    %v3181 = vld [vmem:[%s12 + $0x4d8] sm:$0xff]
    %v3182 = vld [vmem:[%s12 + $0x4e0] sm:$0xff]
    %v3183 = vld [vmem:[%s12 + $0x4e8] sm:$0xff]
    %v3184 = vld [vmem:[%s12 + $0x4f0] sm:$0xff]
    %v3185 = vld [vmem:[%s12 + $0x4f8] sm:$0xff]
    %v3186 = vld [vmem:[%s12 + $0x500] sm:$0xff]
    %v3187 = vld [vmem:[%s12 + $0x508] sm:$0xff]
    %v3188 = vld [vmem:[%s12 + $0x510] sm:$0xff]
    %v3189 = vld [vmem:[%s12 + $0x518] sm:$0xff]
    %v3190 = vld [vmem:[%s12 + $0x520] sm:$0xff]
    %v3191 = vld [vmem:[%s12 + $0x528] sm:$0xff]
    %v3192 = vld [vmem:[%s12 + $0x530] sm:$0xff]
    %v3193 = vld [vmem:[%s12 + $0x538] sm:$0xff]
    %v3194 = vld [vmem:[%s12 + $0x540] sm:$0xff]
    %v3195 = vld [vmem:[%s12 + $0x548] sm:$0xff]
    %v3196 = vld [vmem:[%s12 + $0x550] sm:$0xff]
    %v3197 = vld [vmem:[%s12 + $0x558] sm:$0xff]
    %v3198 = vld [vmem:[%s12 + $0x560] sm:$0xff]
    %v3199 = vld [vmem:[%s12 + $0x568] sm:$0xff]
    %v3200 = vld [vmem:[%s12 + $0x570] sm:$0xff]
    %v3201 = vld [vmem:[%s12 + $0x578] sm:$0xff]
    %v3202 = vld [vmem:[%s12 + $0x580] sm:$0xff]
    %v3203 = vld [vmem:[%s12 + $0x588] sm:$0xff]
    %v3204 = vld [vmem:[%s12 + $0x590] sm:$0xff]
    %v3205 = vld [vmem:[%s12 + $0x598] sm:$0xff]
    %v3206 = vld [vmem:[%s12 + $0x5a0] sm:$0xff]
    %v3207 = vld [vmem:[%s12 + $0x5a8] sm:$0xff]
    %v3208 = vld [vmem:[%s12 + $0x5b0] sm:$0xff]
    %v3209 = vld [vmem:[%s12 + $0x5b8] sm:$0xff]
    %v3210 = vld [vmem:[%s12 + $0x5c0] sm:$0xff]
    %v3211 = vld [vmem:[%s12 + $0x5c8] sm:$0xff]
    %v3212 = vld [vmem:[%s12 + $0x5d0] sm:$0xff]
    %v3213 = vld [vmem:[%s12 + $0x5d8] sm:$0xff]
    %v3214 = vld [vmem:[%s12 + $0x5e0] sm:$0xff]
    %v3215 = vld [vmem:[%s12 + $0x5e8] sm:$0xff]
    %v3216 = vld [vmem:[%s12 + $0x5f0] sm:$0xff]
    %v3217 = vld [vmem:[%s12 + $0x5f8] sm:$0xff]
    %v3218 = vld [vmem:[%s12 + $0x600] sm:$0xff]
    %v3219 = vld [vmem:[%s12 + $0x608] sm:$0xff]
    %v3220 = vld [vmem:[%s12 + $0x610] sm:$0xff]
    %v3221 = vld [vmem:[%s12 + $0x618] sm:$0xff]
    %v3222 = vld [vmem:[%s12 + $0x620] sm:$0xff]
    %v3223 = vld [vmem:[%s12 + $0x628] sm:$0xff]
    %v3224 = vld [vmem:[%s12 + $0x630] sm:$0xff]
    %v3225 = vld [vmem:[%s12 + $0x638] sm:$0xff]
    %v3226 = vld [vmem:[%s12 + $0x640] sm:$0xff]
    %v3227 = vld [vmem:[%s12 + $0x648] sm:$0xff]
    %v3228 = vld [vmem:[%s12 + $0x650] sm:$0xff]
    %v3229 = vld [vmem:[%s12 + $0x658] sm:$0xff]
    %v3230 = vld [vmem:[%s12 + $0x660] sm:$0xff]
    %v3231 = vld [vmem:[%s12 + $0x668] sm:$0xff]
    %v3232 = vld [vmem:[%s12 + $0x670] sm:$0xff]
    %v3233 = vld [vmem:[%s12 + $0x678] sm:$0xff]
    %v3234 = vld [vmem:[%s12 + $0x680] sm:$0xff]
    %v3235 = vld [vmem:[%s12 + $0x688] sm:$0xff]
    %v3236 = vld [vmem:[%s12 + $0x690] sm:$0xff]
    %v3237 = vld [vmem:[%s12 + $0x698] sm:$0xff]
    %v3238 = vld [vmem:[%s12 + $0x6a0] sm:$0xff]
    %v3239 = vld [vmem:[%s12 + $0x6a8] sm:$0xff]
    %v3240 = vld [vmem:[%s12 + $0x6b0] sm:$0xff]
    %v3241 = vld [vmem:[%s12 + $0x6b8] sm:$0xff]
    %v3242 = vld [vmem:[%s12 + $0x6c0] sm:$0xff]
    %v3243 = vld [vmem:[%s12 + $0x6c8] sm:$0xff]
    %v3244 = vld [vmem:[%s12 + $0x6d0] sm:$0xff]
    %v3245 = vld [vmem:[%s12 + $0x6d8] sm:$0xff]
    %v3246 = vld [vmem:[%s12 + $0x6e0] sm:$0xff]
    %v3247 = vld [vmem:[%s12 + $0x6e8] sm:$0xff]
    %v3248 = vld [vmem:[%s12 + $0x6f0] sm:$0xff]
    %v3249 = vld [vmem:[%s12 + $0x6f8] sm:$0xff]
    %v3250 = vld [vmem:[%s13] sm:$0xff]
    %v3251 = vld [vmem:[%s13 + $0x8] sm:$0xff]
    %v3252 = vld [vmem:[%s13 + $0x10] sm:$0xff]
    %v3253 = vld [vmem:[%s13 + $0x18] sm:$0xff]
    %v3254 = vld [vmem:[%s13 + $0x20] sm:$0xff]
    %v3255 = vld [vmem:[%s13 + $0x28] sm:$0xff]
    %v3256 = vld [vmem:[%s13 + $0x30] sm:$0xff]
    %v3257 = vld [vmem:[%s13 + $0x38] sm:$0xff]
    %v3258 = vld [vmem:[%s13 + $0x40] sm:$0xff]
    %v3259 = vld [vmem:[%s13 + $0x48] sm:$0xff]
    %v3260 = vld [vmem:[%s13 + $0x50] sm:$0xff]
    %v3261 = vld [vmem:[%s13 + $0x58] sm:$0xff]
    %v3262 = vld [vmem:[%s13 + $0x60] sm:$0xff]
    %v3263 = vld [vmem:[%s13 + $0x68] sm:$0xff]
    %v3264 = vld [vmem:[%s13 + $0x70] sm:$0xff]
    %v3265 = vld [vmem:[%s13 + $0x78] sm:$0xff]
    %v3266 = vld [vmem:[%s13 + $0x80] sm:$0xff]
    %v3267 = vld [vmem:[%s13 + $0x88] sm:$0xff]
    %v3268 = vld [vmem:[%s13 + $0x90] sm:$0xff]
    %v3269 = vld [vmem:[%s13 + $0x98] sm:$0xff]
    %v3270 = vld [vmem:[%s13 + $0xa0] sm:$0xff]
    %v3271 = vld [vmem:[%s13 + $0xa8] sm:$0xff]
    %v3272 = vld [vmem:[%s13 + $0xb0] sm:$0xff]
    %v3273 = vld [vmem:[%s13 + $0xb8] sm:$0xff]
    %v3274 = vld [vmem:[%s13 + $0xc0] sm:$0xff]
    %v3275 = vld [vmem:[%s13 + $0xc8] sm:$0xff]
    %v3276 = vld [vmem:[%s13 + $0xd0] sm:$0xff]
    %v3277 = vld [vmem:[%s13 + $0xd8] sm:$0xff]
    %v3278 = vld [vmem:[%s13 + $0xe0] sm:$0xff]
    %v3279 = vld [vmem:[%s13 + $0xe8] sm:$0xff]
    %v3280 = vld [vmem:[%s13 + $0xf0] sm:$0xff]
    %v3281 = vld [vmem:[%s13 + $0xf8] sm:$0xff]
    %v3282 = vld [vmem:[%s13 + $0x100] sm:$0xff]
    %v3283 = vld [vmem:[%s13 + $0x108] sm:$0xff]
    %v3284 = vld [vmem:[%s13 + $0x110] sm:$0xff]
    %v3285 = vld [vmem:[%s13 + $0x118] sm:$0xff]
    %v3286 = vld [vmem:[%s13 + $0x120] sm:$0xff]
    %v3287 = vld [vmem:[%s13 + $0x128] sm:$0xff]
    %v3288 = vld [vmem:[%s13 + $0x130] sm:$0xff]
    %v3289 = vld [vmem:[%s13 + $0x138] sm:$0xff]
    %v3290 = vld [vmem:[%s13 + $0x140] sm:$0xff]
    %v3291 = vld [vmem:[%s13 + $0x148] sm:$0xff]
    %v3292 = vld [vmem:[%s13 + $0x150] sm:$0xff]
    %v3293 = vld [vmem:[%s13 + $0x158] sm:$0xff]
    %v3294 = vld [vmem:[%s13 + $0x160] sm:$0xff]
    %v3295 = vld [vmem:[%s13 + $0x168] sm:$0xff]
    %v3296 = vld [vmem:[%s13 + $0x170] sm:$0xff]
    %v3297 = vld [vmem:[%s13 + $0x178] sm:$0xff]
    %v3298 = vld [vmem:[%s13 + $0x180] sm:$0xff]
    %v3299 = vld [vmem:[%s13 + $0x188] sm:$0xff]
    %v3300 = vld [vmem:[%s13 + $0x190] sm:$0xff]
    %v3301 = vld [vmem:[%s13 + $0x198] sm:$0xff]
    %v3302 = vld [vmem:[%s13 + $0x1a0] sm:$0xff]
    %v3303 = vld [vmem:[%s13 + $0x1a8] sm:$0xff]
    %v3304 = vld [vmem:[%s13 + $0x1b0] sm:$0xff]
    %v3305 = vld [vmem:[%s13 + $0x1b8] sm:$0xff]
    %v3306 = vld [vmem:[%s13 + $0x1c0] sm:$0xff]
    %v3307 = vld [vmem:[%s13 + $0x1c8] sm:$0xff]
    %v3308 = vld [vmem:[%s13 + $0x1d0] sm:$0xff]
    %v3309 = vld [vmem:[%s13 + $0x1d8] sm:$0xff]
    %v3310 = vld [vmem:[%s13 + $0x1e0] sm:$0xff]
    %v3311 = vld [vmem:[%s13 + $0x1e8] sm:$0xff]
    %v3312 = vld [vmem:[%s13 + $0x1f0] sm:$0xff]
    %v3313 = vld [vmem:[%s13 + $0x1f8] sm:$0xff]
    %v3314 = vld [vmem:[%s13 + $0x200] sm:$0xff]
    %v3315 = vld [vmem:[%s13 + $0x208] sm:$0xff]
    %v3316 = vld [vmem:[%s13 + $0x210] sm:$0xff]
    %v3317 = vld [vmem:[%s13 + $0x218] sm:$0xff]
    %v3318 = vld [vmem:[%s13 + $0x220] sm:$0xff]
    %v3319 = vld [vmem:[%s13 + $0x228] sm:$0xff]
    %v3320 = vld [vmem:[%s13 + $0x230] sm:$0xff]
    %v3321 = vld [vmem:[%s13 + $0x238] sm:$0xff]
    %v3322 = vld [vmem:[%s13 + $0x240] sm:$0xff]
    %v3323 = vld [vmem:[%s13 + $0x248] sm:$0xff]
    %v3324 = vld [vmem:[%s13 + $0x250] sm:$0xff]
    %v3325 = vld [vmem:[%s13 + $0x258] sm:$0xff]
    %v3326 = vld [vmem:[%s13 + $0x260] sm:$0xff]
    %v3327 = vld [vmem:[%s13 + $0x268] sm:$0xff]
    %v3328 = vld [vmem:[%s13 + $0x270] sm:$0xff]
    %v3329 = vld [vmem:[%s13 + $0x278] sm:$0xff]
    %v3330 = vld [vmem:[%s13 + $0x280] sm:$0xff]
    %v3331 = vld [vmem:[%s13 + $0x288] sm:$0xff]
    %v3332 = vld [vmem:[%s13 + $0x290] sm:$0xff]
    %v3333 = vld [vmem:[%s13 + $0x298] sm:$0xff]
    %v3334 = vld [vmem:[%s13 + $0x2a0] sm:$0xff]
    %v3335 = vld [vmem:[%s13 + $0x2a8] sm:$0xff]
    %v3336 = vld [vmem:[%s13 + $0x2b0] sm:$0xff]
    %v3337 = vld [vmem:[%s13 + $0x2b8] sm:$0xff]
    %v3338 = vld [vmem:[%s13 + $0x2c0] sm:$0xff]
    %v3339 = vld [vmem:[%s13 + $0x2c8] sm:$0xff]
    %v3340 = vld [vmem:[%s13 + $0x2d0] sm:$0xff]
    %v3341 = vld [vmem:[%s13 + $0x2d8] sm:$0xff]
    %v3342 = vld [vmem:[%s13 + $0x2e0] sm:$0xff]
    %v3343 = vld [vmem:[%s13 + $0x2e8] sm:$0xff]
    %v3344 = vld [vmem:[%s13 + $0x2f0] sm:$0xff]
    %v3345 = vld [vmem:[%s13 + $0x2f8] sm:$0xff]
    %v3346 = vld [vmem:[%s13 + $0x300] sm:$0xff]
    %v3347 = vld [vmem:[%s13 + $0x308] sm:$0xff]
    %v3348 = vld [vmem:[%s13 + $0x310] sm:$0xff]
    %v3349 = vld [vmem:[%s13 + $0x318] sm:$0xff]
    %v3350 = vld [vmem:[%s13 + $0x320] sm:$0xff]
    %v3351 = vld [vmem:[%s13 + $0x328] sm:$0xff]
    %v3352 = vld [vmem:[%s13 + $0x330] sm:$0xff]
    %v3353 = vld [vmem:[%s13 + $0x338] sm:$0xff]
    %v3354 = vld [vmem:[%s13 + $0x340] sm:$0xff]
    %v3355 = vld [vmem:[%s13 + $0x348] sm:$0xff]
    %v3356 = vld [vmem:[%s13 + $0x350] sm:$0xff]
    %v3357 = vld [vmem:[%s13 + $0x358] sm:$0xff]
    %v3358 = vld [vmem:[%s13 + $0x360] sm:$0xff]
    %v3359 = vld [vmem:[%s13 + $0x368] sm:$0xff]
    %v3360 = vld [vmem:[%s13 + $0x370] sm:$0xff]
    %v3361 = vld [vmem:[%s13 + $0x378] sm:$0xff]
    %v3362 = vld [vmem:[%s13 + $0x380] sm:$0xff]
    %v3363 = vld [vmem:[%s13 + $0x388] sm:$0xff]
    %v3364 = vld [vmem:[%s13 + $0x390] sm:$0xff]
    %v3365 = vld [vmem:[%s13 + $0x398] sm:$0xff]
    %v3366 = vld [vmem:[%s13 + $0x3a0] sm:$0xff]
    %v3367 = vld [vmem:[%s13 + $0x3a8] sm:$0xff]
    %v3368 = vld [vmem:[%s13 + $0x3b0] sm:$0xff]
    %v3369 = vld [vmem:[%s13 + $0x3b8] sm:$0xff]
    %v3370 = vld [vmem:[%s13 + $0x3c0] sm:$0xff]
    %v3371 = vld [vmem:[%s13 + $0x3c8] sm:$0xff]
    %v3372 = vld [vmem:[%s13 + $0x3d0] sm:$0xff]
    %v3373 = vld [vmem:[%s13 + $0x3d8] sm:$0xff]
    %v3374 = vld [vmem:[%s13 + $0x3e0] sm:$0xff]
    %v3375 = vld [vmem:[%s13 + $0x3e8] sm:$0xff]
    %v3376 = vld [vmem:[%s13 + $0x3f0] sm:$0xff]
    %v3377 = vld [vmem:[%s13 + $0x3f8] sm:$0xff]
    %v3378 = vld [vmem:[%s13 + $0x400] sm:$0xff]
    %v3379 = vld [vmem:[%s13 + $0x408] sm:$0xff]
    %v3380 = vld [vmem:[%s13 + $0x410] sm:$0xff]
    %v3381 = vld [vmem:[%s13 + $0x418] sm:$0xff]
    %v3382 = vld [vmem:[%s13 + $0x420] sm:$0xff]
    %v3383 = vld [vmem:[%s13 + $0x428] sm:$0xff]
    %v3384 = vld [vmem:[%s13 + $0x430] sm:$0xff]
    %v3385 = vld [vmem:[%s13 + $0x438] sm:$0xff]
    %v3386 = vld [vmem:[%s13 + $0x440] sm:$0xff]
    %v3387 = vld [vmem:[%s13 + $0x448] sm:$0xff]
    %v3388 = vld [vmem:[%s13 + $0x450] sm:$0xff]
    %v3389 = vld [vmem:[%s13 + $0x458] sm:$0xff]
    %v3390 = vld [vmem:[%s13 + $0x460] sm:$0xff]
    %v3391 = vld [vmem:[%s13 + $0x468] sm:$0xff]
    %v3392 = vld [vmem:[%s13 + $0x470] sm:$0xff]
    %v3393 = vld [vmem:[%s13 + $0x478] sm:$0xff]
    %v3394 = vld [vmem:[%s13 + $0x480] sm:$0xff]
    %v3395 = vld [vmem:[%s13 + $0x488] sm:$0xff]
    %v3396 = vld [vmem:[%s13 + $0x490] sm:$0xff]
    %v3397 = vld [vmem:[%s13 + $0x498] sm:$0xff]
    %v3398 = vld [vmem:[%s13 + $0x4a0] sm:$0xff]
    %v3399 = vld [vmem:[%s13 + $0x4a8] sm:$0xff]
    %v3400 = vld [vmem:[%s13 + $0x4b0] sm:$0xff]
    %v3401 = vld [vmem:[%s13 + $0x4b8] sm:$0xff]
    %v3402 = vld [vmem:[%s13 + $0x4c0] sm:$0xff]
    %v3403 = vld [vmem:[%s13 + $0x4c8] sm:$0xff]
    %v3404 = vld [vmem:[%s13 + $0x4d0] sm:$0xff]
    %v3405 = vld [vmem:[%s13 + $0x4d8] sm:$0xff]
    %v3406 = vld [vmem:[%s13 + $0x4e0] sm:$0xff]
    %v3407 = vld [vmem:[%s13 + $0x4e8] sm:$0xff]
    %v3408 = vld [vmem:[%s13 + $0x4f0] sm:$0xff]
    %v3409 = vld [vmem:[%s13 + $0x4f8] sm:$0xff]
    %v3410 = vld [vmem:[%s13 + $0x500] sm:$0xff]
    %v3411 = vld [vmem:[%s13 + $0x508] sm:$0xff]
    %v3412 = vld [vmem:[%s13 + $0x510] sm:$0xff]
    %v3413 = vld [vmem:[%s13 + $0x518] sm:$0xff]
    %v3414 = vld [vmem:[%s13 + $0x520] sm:$0xff]
    %v3415 = vld [vmem:[%s13 + $0x528] sm:$0xff]
    %v3416 = vld [vmem:[%s13 + $0x530] sm:$0xff]
    %v3417 = vld [vmem:[%s13 + $0x538] sm:$0xff]
    %v3418 = vld [vmem:[%s13 + $0x540] sm:$0xff]
    %v3419 = vld [vmem:[%s13 + $0x548] sm:$0xff]
    %v3420 = vld [vmem:[%s13 + $0x550] sm:$0xff]
    %v3421 = vld [vmem:[%s13 + $0x558] sm:$0xff]
    %v3422 = vld [vmem:[%s13 + $0x560] sm:$0xff]
    %v3423 = vld [vmem:[%s13 + $0x568] sm:$0xff]
    %v3424 = vld [vmem:[%s13 + $0x570] sm:$0xff]
    %v3425 = vld [vmem:[%s13 + $0x578] sm:$0xff]
    %v3426 = vld [vmem:[%s13 + $0x580] sm:$0xff]
    %v3427 = vld [vmem:[%s13 + $0x588] sm:$0xff]
    %v3428 = vld [vmem:[%s13 + $0x590] sm:$0xff]
    %v3429 = vld [vmem:[%s13 + $0x598] sm:$0xff]
    %v3430 = vld [vmem:[%s13 + $0x5a0] sm:$0xff]
    %v3431 = vld [vmem:[%s13 + $0x5a8] sm:$0xff]
    %v3432 = vld [vmem:[%s13 + $0x5b0] sm:$0xff]
    %v3433 = vld [vmem:[%s13 + $0x5b8] sm:$0xff]
    %v3434 = vld [vmem:[%s13 + $0x5c0] sm:$0xff]
    %v3435 = vld [vmem:[%s13 + $0x5c8] sm:$0xff]
    %v3436 = vld [vmem:[%s13 + $0x5d0] sm:$0xff]
    %v3437 = vld [vmem:[%s13 + $0x5d8] sm:$0xff]
    %v3438 = vld [vmem:[%s13 + $0x5e0] sm:$0xff]
    %v3439 = vld [vmem:[%s13 + $0x5e8] sm:$0xff]
    %v3440 = vld [vmem:[%s13 + $0x5f0] sm:$0xff]
    %v3441 = vld [vmem:[%s13 + $0x5f8] sm:$0xff]
    %v3442 = vld [vmem:[%s13 + $0x600] sm:$0xff]
    %v3443 = vld [vmem:[%s13 + $0x608] sm:$0xff]
    %v3444 = vld [vmem:[%s13 + $0x610] sm:$0xff]
    %v3445 = vld [vmem:[%s13 + $0x618] sm:$0xff]
    %v3446 = vld [vmem:[%s13 + $0x620] sm:$0xff]
    %v3447 = vld [vmem:[%s13 + $0x628] sm:$0xff]
    %v3448 = vld [vmem:[%s13 + $0x630] sm:$0xff]
    %v3449 = vld [vmem:[%s13 + $0x638] sm:$0xff]
    %v3450 = vld [vmem:[%s13 + $0x640] sm:$0xff]
    %v3451 = vld [vmem:[%s13 + $0x648] sm:$0xff]
    %v3452 = vld [vmem:[%s13 + $0x650] sm:$0xff]
    %v3453 = vld [vmem:[%s13 + $0x658] sm:$0xff]
    %v3454 = vld [vmem:[%s13 + $0x660] sm:$0xff]
    %v3455 = vld [vmem:[%s13 + $0x668] sm:$0xff]
    %v3456 = vld [vmem:[%s13 + $0x670] sm:$0xff]
    %v3457 = vld [vmem:[%s13 + $0x678] sm:$0xff]
    %v3458 = vld [vmem:[%s13 + $0x680] sm:$0xff]
    %v3459 = vld [vmem:[%s13 + $0x688] sm:$0xff]
    %v3460 = vld [vmem:[%s13 + $0x690] sm:$0xff]
    %v3461 = vld [vmem:[%s13 + $0x698] sm:$0xff]
    %v3462 = vld [vmem:[%s13 + $0x6a0] sm:$0xff]
    %v3463 = vld [vmem:[%s13 + $0x6a8] sm:$0xff]
    %v3464 = vld [vmem:[%s13 + $0x6b0] sm:$0xff]
    %v3465 = vld [vmem:[%s13 + $0x6b8] sm:$0xff]
    %v3466 = vld [vmem:[%s13 + $0x6c0] sm:$0xff]
    %v3467 = vld [vmem:[%s13 + $0x6c8] sm:$0xff]
    %v3468 = vld [vmem:[%s13 + $0x6d0] sm:$0xff]
    %v3469 = vld [vmem:[%s13 + $0x6d8] sm:$0xff]
    %v3470 = vld [vmem:[%s13 + $0x6e0] sm:$0xff]
    %v3471 = vld [vmem:[%s13 + $0x6e8] sm:$0xff]
    %v3472 = vld [vmem:[%s13 + $0x6f0] sm:$0xff]
    %v3473 = vld [vmem:[%s13 + $0x6f8] sm:$0xff]
    %3474 = vmatprep.subr.mxu0 %v3251
    %3475 = vmatpush1.msra.mxu0 %v3250
    %3476 = vmatprep.subr.mxu0 %v3258
    %3477 = vmatpush1.msra.mxu0 %v3257
    %3478 = vmatprep.subr.mxu0 %v3265
    %3479 = vmatpush1.msra.mxu0 %v3264
    %3480 = vmatprep.subr.mxu0 %v3272
    %3481 = vmatpush1.msra.mxu0 %v3271
    %3482 = vmatprep.subr.mxu0 %v3279
    %3483 = vmatpush1.msra.mxu0 %v3278
    %3484 = vmatprep.subr.mxu0 %v3286
    %3485 = vmatpush1.msra.mxu0 %v3285
    %3486 = vmatprep.subr.mxu0 %v3293
    %3487 = vmatpush1.msra.mxu0 %v3292
    %3488 = vmatprep.subr.mxu0 %v3300
    %3489 = vmatpush1.msra.mxu0 %v3299
    %3490 = vmatprep.subr.mxu0 %v3307
    %3491 = vmatpush1.msra.mxu0 %v3306
    %3492 = vmatprep.subr.mxu0 %v3314
    %3493 = vmatpush1.msra.mxu0 %v3313
    %3494 = vmatprep.subr.mxu0 %v3321
    %3495 = vmatpush1.msra.mxu0 %v3320
    %3496 = vmatprep.subr.mxu0 %v3328
    %3497 = vmatpush1.msra.mxu0 %v3327
    %3498 = vmatprep.subr.mxu0 %v3335
    %3499 = vmatpush1.msra.mxu0 %v3334
    %3500 = vmatprep.subr.mxu0 %v3342
    %3501 = vmatpush1.msra.mxu0 %v3341
    %3502 = vmatprep.subr.mxu0 %v3349
    %3503 = vmatpush1.msra.mxu0 %v3348
    %3504 = vmatprep.subr.mxu0 %v3356
    %3505 = vmatpush1.msra.mxu0 %v3355
    %3506 = vmatprep.subr.mxu0 %v3363
    %3507 = vmatpush1.msra.mxu0 %v3362
    %3508 = vmatprep.subr.mxu0 %v3370
    %3509 = vmatpush1.msra.mxu0 %v3369
    %3510 = vmatprep.subr.mxu0 %v3377
    %3511 = vmatpush1.msra.mxu0 %v3376
    %3512 = vmatprep.subr.mxu0 %v3384
    %3513 = vmatpush1.msra.mxu0 %v3383
    %3514 = vmatprep.subr.mxu0 %v3391
    %3515 = vmatpush1.msra.mxu0 %v3390
    %3516 = vmatprep.subr.mxu0 %v3398
    %3517 = vmatpush1.msra.mxu0 %v3397
    %3518 = vmatprep.subr.mxu0 %v3405
    %3519 = vmatpush1.msra.mxu0 %v3404
    %3520 = vmatprep.subr.mxu0 %v3412
    %3521 = vmatpush1.msra.mxu0 %v3411
    %3522 = vmatprep.subr.mxu0 %v3419
    %3523 = vmatpush1.msra.mxu0 %v3418
    %3524 = vmatprep.subr.mxu0 %v3426
    %3525 = vmatpush1.msra.mxu0 %v3425
    %3526 = vmatprep.subr.mxu0 %v3433
    %3527 = vmatpush1.msra.mxu0 %v3432
    %3528 = vmatprep.subr.mxu0 %v3440
    %3529 = vmatpush1.msra.mxu0 %v3439
    %3530 = vmatprep.subr.mxu0 %v3447
    %3531 = vmatpush1.msra.mxu0 %v3446
    %3532 = vmatprep.subr.mxu0 %v3454
    %3533 = vmatpush1.msra.mxu0 %v3453
    %3534 = vmatprep.subr.mxu0 %v3461
    %3535 = vmatpush1.msra.mxu0 %v3460
    %3536 = vmatprep.subr.mxu0 %v3468
    %3537 = vmatpush1.msra.mxu0 %v3467
    %3538 = vmatprep.mubr.f32.mxu0 %v2612
    %3539 = vmatmul.mubr.f32.gmra.mrb[0].mxu0 %v2611
    %v3540 = vpop.f32.mrb[0].mxu0
    %v3541 = vadd.f32 0.0, %v3540
    %v3542 = vpop.f32.mrb[0].mxu0
    %v3543 = vadd.f32 0.0, %v3542
    %3544 = vdwg.mxu0
    %3545 = vmatprep.subr.mxu0 %v3253
    %3546 = vmatpush1.msra.mxu0 %v3252
    %3547 = vmatprep.subr.mxu0 %v3260
    %3548 = vmatpush1.msra.mxu0 %v3259
    %3549 = vmatprep.subr.mxu0 %v3267
    %3550 = vmatpush1.msra.mxu0 %v3266
    %3551 = vmatprep.subr.mxu0 %v3274
    %3552 = vmatpush1.msra.mxu0 %v3273
    %3553 = vmatprep.subr.mxu0 %v3281
    %3554 = vmatpush1.msra.mxu0 %v3280
    %3555 = vmatprep.subr.mxu0 %v3288
    %3556 = vmatpush1.msra.mxu0 %v3287
    %3557 = vmatprep.subr.mxu0 %v3295
    %3558 = vmatpush1.msra.mxu0 %v3294
    %3559 = vmatprep.subr.mxu0 %v3302
    %3560 = vmatpush1.msra.mxu0 %v3301
    %3561 = vmatprep.subr.mxu0 %v3309
    %3562 = vmatpush1.msra.mxu0 %v3308
    %3563 = vmatprep.subr.mxu0 %v3316
    %3564 = vmatpush1.msra.mxu0 %v3315
    %3565 = vmatprep.subr.mxu0 %v3323
    %3566 = vmatpush1.msra.mxu0 %v3322
    %3567 = vmatprep.subr.mxu0 %v3330
    %3568 = vmatpush1.msra.mxu0 %v3329
    %3569 = vmatprep.subr.mxu0 %v3337
    %3570 = vmatpush1.msra.mxu0 %v3336
    %3571 = vmatprep.subr.mxu0 %v3344
    %3572 = vmatpush1.msra.mxu0 %v3343
    %3573 = vmatprep.subr.mxu0 %v3351
    %3574 = vmatpush1.msra.mxu0 %v3350
    %3575 = vmatprep.subr.mxu0 %v3358
    %3576 = vmatpush1.msra.mxu0 %v3357
    %3577 = vmatprep.subr.mxu0 %v3365
    %3578 = vmatpush1.msra.mxu0 %v3364
    %3579 = vmatprep.subr.mxu0 %v3372
    %3580 = vmatpush1.msra.mxu0 %v3371
    %3581 = vmatprep.subr.mxu0 %v3379
    %3582 = vmatpush1.msra.mxu0 %v3378
    %3583 = vmatprep.subr.mxu0 %v3386
    %3584 = vmatpush1.msra.mxu0 %v3385
    %3585 = vmatprep.subr.mxu0 %v3393
    %3586 = vmatpush1.msra.mxu0 %v3392
    %3587 = vmatprep.subr.mxu0 %v3400
    %3588 = vmatpush1.msra.mxu0 %v3399
    %3589 = vmatprep.subr.mxu0 %v3407
    %3590 = vmatpush1.msra.mxu0 %v3406
    %3591 = vmatprep.subr.mxu0 %v3414
    %3592 = vmatpush1.msra.mxu0 %v3413
    %3593 = vmatprep.subr.mxu0 %v3421
    %3594 = vmatpush1.msra.mxu0 %v3420
    %3595 = vmatprep.subr.mxu0 %v3428
    %3596 = vmatpush1.msra.mxu0 %v3427
    %3597 = vmatprep.subr.mxu0 %v3435
    %3598 = vmatpush1.msra.mxu0 %v3434
    %3599 = vmatprep.subr.mxu0 %v3442
    %3600 = vmatpush1.msra.mxu0 %v3441
    %3601 = vmatprep.subr.mxu0 %v3449
    %3602 = vmatpush1.msra.mxu0 %v3448
    %3603 = vmatprep.subr.mxu0 %v3456
    %3604 = vmatpush1.msra.mxu0 %v3455
    %3605 = vmatprep.subr.mxu0 %v3463
    %3606 = vmatpush1.msra.mxu0 %v3462
    %3607 = vmatprep.subr.mxu0 %v3470
    %3608 = vmatpush1.msra.mxu0 %v3469
    %3609 = vmatprep.mubr.f32.mxu0 %v2612
    %3610 = vmatmul.mubr.f32.gmra.mrb[0].mxu0 %v2611
    %v3611 = vpop.f32.mrb[0].mxu0
    %v3612 = vadd.f32 0.0, %v3611
    %v3613 = vpop.f32.mrb[0].mxu0
    %v3614 = vadd.f32 0.0, %v3613
    %3615 = vdwg.mxu0
    %3616 = vmatprep.subr.mxu0 %v3255
    %3617 = vmatpush1.msra.mxu0 %v3254
    %3618 = vmatprep.subr.mxu0 %v3262
    %3619 = vmatpush1.msra.mxu0 %v3261
    %3620 = vmatprep.subr.mxu0 %v3269
    %3621 = vmatpush1.msra.mxu0 %v3268
    %3622 = vmatprep.subr.mxu0 %v3276
    %3623 = vmatpush1.msra.mxu0 %v3275
    %3624 = vmatprep.subr.mxu0 %v3283
    %3625 = vmatpush1.msra.mxu0 %v3282
    %3626 = vmatprep.subr.mxu0 %v3290
    %3627 = vmatpush1.msra.mxu0 %v3289
    %3628 = vmatprep.subr.mxu0 %v3297
    %3629 = vmatpush1.msra.mxu0 %v3296
    %3630 = vmatprep.subr.mxu0 %v3304
    %3631 = vmatpush1.msra.mxu0 %v3303
    %3632 = vmatprep.subr.mxu0 %v3311
    %3633 = vmatpush1.msra.mxu0 %v3310
    %3634 = vmatprep.subr.mxu0 %v3318
    %3635 = vmatpush1.msra.mxu0 %v3317
    %3636 = vmatprep.subr.mxu0 %v3325
    %3637 = vmatpush1.msra.mxu0 %v3324
    %3638 = vmatprep.subr.mxu0 %v3332
    %3639 = vmatpush1.msra.mxu0 %v3331
    %3640 = vmatprep.subr.mxu0 %v3339
    %3641 = vmatpush1.msra.mxu0 %v3338
    %3642 = vmatprep.subr.mxu0 %v3346
    %3643 = vmatpush1.msra.mxu0 %v3345
    %3644 = vmatprep.subr.mxu0 %v3353
    %3645 = vmatpush1.msra.mxu0 %v3352
    %3646 = vmatprep.subr.mxu0 %v3360
    %3647 = vmatpush1.msra.mxu0 %v3359
    %3648 = vmatprep.subr.mxu0 %v3367
    %3649 = vmatpush1.msra.mxu0 %v3366
    %3650 = vmatprep.subr.mxu0 %v3374
    %3651 = vmatpush1.msra.mxu0 %v3373
    %3652 = vmatprep.subr.mxu0 %v3381
    %3653 = vmatpush1.msra.mxu0 %v3380
    %3654 = vmatprep.subr.mxu0 %v3388
    %3655 = vmatpush1.msra.mxu0 %v3387
    %3656 = vmatprep.subr.mxu0 %v3395
    %3657 = vmatpush1.msra.mxu0 %v3394
    %3658 = vmatprep.subr.mxu0 %v3402
    %3659 = vmatpush1.msra.mxu0 %v3401
    %3660 = vmatprep.subr.mxu0 %v3409
    %3661 = vmatpush1.msra.mxu0 %v3408
    %3662 = vmatprep.subr.mxu0 %v3416
    %3663 = vmatpush1.msra.mxu0 %v3415
    %3664 = vmatprep.subr.mxu0 %v3423
    %3665 = vmatpush1.msra.mxu0 %v3422
    %3666 = vmatprep.subr.mxu0 %v3430
    %3667 = vmatpush1.msra.mxu0 %v3429
    %3668 = vmatprep.subr.mxu0 %v3437
    %3669 = vmatpush1.msra.mxu0 %v3436
    %3670 = vmatprep.subr.mxu0 %v3444
    %3671 = vmatpush1.msra.mxu0 %v3443
    %3672 = vmatprep.subr.mxu0 %v3451
    %3673 = vmatpush1.msra.mxu0 %v3450
    %3674 = vmatprep.subr.mxu0 %v3458
    %3675 = vmatpush1.msra.mxu0 %v3457
    %3676 = vmatprep.subr.mxu0 %v3465
    %3677 = vmatpush1.msra.mxu0 %v3464
    %3678 = vmatprep.subr.mxu0 %v3472
    %3679 = vmatpush1.msra.mxu0 %v3471
    %3680 = vmatprep.mubr.f32.mxu0 %v2612
    %3681 = vmatmul.mubr.f32.gmra.mrb[0].mxu0 %v2611
    %v3682 = vpop.f32.mrb[0].mxu0
    %v3683 = vadd.f32 0.0, %v3682
    %v3684 = vpop.f32.mrb[0].mxu0
    %v3685 = vadd.f32 0.0, %v3684
    %3686 = vdwg.mxu0
    %3687 = vmatprep.subr.mxu0 0.0
    %3688 = vmatpush1.msra.mxu0 %v3256
    %3689 = vmatprep.subr.mxu0 0.0
    %3690 = vmatpush1.msra.mxu0 %v3263
    %3691 = vmatprep.subr.mxu0 0.0
    %3692 = vmatpush1.msra.mxu0 %v3270
    %3693 = vmatprep.subr.mxu0 0.0
    %3694 = vmatpush1.msra.mxu0 %v3277
    %3695 = vmatprep.subr.mxu0 0.0
    %3696 = vmatpush1.msra.mxu0 %v3284
    %3697 = vmatprep.subr.mxu0 0.0
    %3698 = vmatpush1.msra.mxu0 %v3291
    %3699 = vmatprep.subr.mxu0 0.0
    %3700 = vmatpush1.msra.mxu0 %v3298
    %3701 = vmatprep.subr.mxu0 0.0
    %3702 = vmatpush1.msra.mxu0 %v3305
    %3703 = vmatprep.subr.mxu0 0.0
    %3704 = vmatpush1.msra.mxu0 %v3312
    %3705 = vmatprep.subr.mxu0 0.0
    %3706 = vmatpush1.msra.mxu0 %v3319
    %3707 = vmatprep.subr.mxu0 0.0
    %3708 = vmatpush1.msra.mxu0 %v3326
    %3709 = vmatprep.subr.mxu0 0.0
    %3710 = vmatpush1.msra.mxu0 %v3333
    %3711 = vmatprep.subr.mxu0 0.0
    %3712 = vmatpush1.msra.mxu0 %v3340
    %3713 = vmatprep.subr.mxu0 0.0
    %3714 = vmatpush1.msra.mxu0 %v3347
    %3715 = vmatprep.subr.mxu0 0.0
    %3716 = vmatpush1.msra.mxu0 %v3354
    %3717 = vmatprep.subr.mxu0 0.0
    %3718 = vmatpush1.msra.mxu0 %v3361
    %3719 = vmatprep.subr.mxu0 0.0
    %3720 = vmatpush1.msra.mxu0 %v3368
    %3721 = vmatprep.subr.mxu0 0.0
    %3722 = vmatpush1.msra.mxu0 %v3375
    %3723 = vmatprep.subr.mxu0 0.0
    %3724 = vmatpush1.msra.mxu0 %v3382
    %3725 = vmatprep.subr.mxu0 0.0
    %3726 = vmatpush1.msra.mxu0 %v3389
    %3727 = vmatprep.subr.mxu0 0.0
    %3728 = vmatpush1.msra.mxu0 %v3396
    %3729 = vmatprep.subr.mxu0 0.0
    %3730 = vmatpush1.msra.mxu0 %v3403
    %3731 = vmatprep.subr.mxu0 0.0
    %3732 = vmatpush1.msra.mxu0 %v3410
    %3733 = vmatprep.subr.mxu0 0.0
    %3734 = vmatpush1.msra.mxu0 %v3417
    %3735 = vmatprep.subr.mxu0 0.0
    %3736 = vmatpush1.msra.mxu0 %v3424
    %3737 = vmatprep.subr.mxu0 0.0
    %3738 = vmatpush1.msra.mxu0 %v3431
    %3739 = vmatprep.subr.mxu0 0.0
    %3740 = vmatpush1.msra.mxu0 %v3438
    %3741 = vmatprep.subr.mxu0 0.0
    %3742 = vmatpush1.msra.mxu0 %v3445
    %3743 = vmatprep.subr.mxu0 0.0
    %3744 = vmatpush1.msra.mxu0 %v3452
    %3745 = vmatprep.subr.mxu0 0.0
    %3746 = vmatpush1.msra.mxu0 %v3459
    %3747 = vmatprep.subr.mxu0 0.0
    %3748 = vmatpush1.msra.mxu0 %v3466
    %3749 = vmatprep.subr.mxu0 0.0
    %3750 = vmatpush1.msra.mxu0 %v3473
    %3751 = vmatprep.mubr.f32.mxu0 %v2612
    %3752 = vmatmul.mubr.f32.gmra.mrb[0].mxu0 %v2611
    %v3753 = vpop.f32.mrb[0].mxu0
    %v3754 = vadd.f32 0.0, %v3753
    %v3755 = vpop.f32.mrb[0].mxu0
    %3756 = vdwg.mxu0
    %3757 = vmatprep.subr.mxu0 %v3027
    %3758 = vmatpush1.msra.mxu0 %v3026
    %3759 = vmatprep.subr.mxu0 %v3034
    %3760 = vmatpush1.msra.mxu0 %v3033
    %3761 = vmatprep.subr.mxu0 %v3041
    %3762 = vmatpush1.msra.mxu0 %v3040
    %3763 = vmatprep.subr.mxu0 %v3048
    %3764 = vmatpush1.msra.mxu0 %v3047
    %3765 = vmatprep.subr.mxu0 %v3055
    %3766 = vmatpush1.msra.mxu0 %v3054
    %3767 = vmatprep.subr.mxu0 %v3062
    %3768 = vmatpush1.msra.mxu0 %v3061
    %3769 = vmatprep.subr.mxu0 %v3069
    %3770 = vmatpush1.msra.mxu0 %v3068
    %3771 = vmatprep.subr.mxu0 %v3076
    %3772 = vmatpush1.msra.mxu0 %v3075
    %3773 = vmatprep.subr.mxu0 %v3083
    %3774 = vmatpush1.msra.mxu0 %v3082
    %3775 = vmatprep.subr.mxu0 %v3090
    %3776 = vmatpush1.msra.mxu0 %v3089
    %3777 = vmatprep.subr.mxu0 %v3097
    %3778 = vmatpush1.msra.mxu0 %v3096
    %3779 = vmatprep.subr.mxu0 %v3104
    %3780 = vmatpush1.msra.mxu0 %v3103
    %3781 = vmatprep.subr.mxu0 %v3111
    %3782 = vmatpush1.msra.mxu0 %v3110
    %3783 = vmatprep.subr.mxu0 %v3118
    %3784 = vmatpush1.msra.mxu0 %v3117
    %3785 = vmatprep.subr.mxu0 %v3125
    %3786 = vmatpush1.msra.mxu0 %v3124
    %3787 = vmatprep.subr.mxu0 %v3132
    %3788 = vmatpush1.msra.mxu0 %v3131
    %3789 = vmatprep.subr.mxu0 %v3139
    %3790 = vmatpush1.msra.mxu0 %v3138
    %3791 = vmatprep.subr.mxu0 %v3146
    %3792 = vmatpush1.msra.mxu0 %v3145
    %3793 = vmatprep.subr.mxu0 %v3153
    %3794 = vmatpush1.msra.mxu0 %v3152
    %3795 = vmatprep.subr.mxu0 %v3160
    %3796 = vmatpush1.msra.mxu0 %v3159
    %3797 = vmatprep.subr.mxu0 %v3167
    %3798 = vmatpush1.msra.mxu0 %v3166
    %3799 = vmatprep.subr.mxu0 %v3174
    %3800 = vmatpush1.msra.mxu0 %v3173
    %3801 = vmatprep.subr.mxu0 %v3181
    %3802 = vmatpush1.msra.mxu0 %v3180
    %3803 = vmatprep.subr.mxu0 %v3188
    %3804 = vmatpush1.msra.mxu0 %v3187
    %3805 = vmatprep.subr.mxu0 %v3195
    %3806 = vmatpush1.msra.mxu0 %v3194
    %3807 = vmatprep.subr.mxu0 %v3202
    %3808 = vmatpush1.msra.mxu0 %v3201
    %3809 = vmatprep.subr.mxu0 %v3209
    %3810 = vmatpush1.msra.mxu0 %v3208
    %3811 = vmatprep.subr.mxu0 %v3216
    %3812 = vmatpush1.msra.mxu0 %v3215
    %3813 = vmatprep.subr.mxu0 %v3223
    %3814 = vmatpush1.msra.mxu0 %v3222
    %3815 = vmatprep.subr.mxu0 %v3230
    %3816 = vmatpush1.msra.mxu0 %v3229
    %3817 = vmatprep.subr.mxu0 %v3237
    %3818 = vmatpush1.msra.mxu0 %v3236
    %3819 = vmatprep.subr.mxu0 %v3244
    %3820 = vmatpush1.msra.mxu0 %v3243
    %3821 = vmatprep.mubr.f32.mxu0 %v3025
    %3822 = vmatmul.mubr.f32.gmra.mrb[0].mxu0 %v3024
    %v3823 = vpop.f32.mrb[0].mxu0
    %v3824 = vadd.f32 %v3541, %v3823
    %v3825 = vpop.f32.mrb[0].mxu0
    %v3826 = vadd.f32 %v3543, %v3825
    %3827 = vdwg.mxu0
    %3828 = vmatprep.subr.mxu0 %v3029
    %3829 = vmatpush1.msra.mxu0 %v3028
    %3830 = vmatprep.subr.mxu0 %v3036
    %3831 = vmatpush1.msra.mxu0 %v3035
    %3832 = vmatprep.subr.mxu0 %v3043
    %3833 = vmatpush1.msra.mxu0 %v3042
    %3834 = vmatprep.subr.mxu0 %v3050
    %3835 = vmatpush1.msra.mxu0 %v3049
    %3836 = vmatprep.subr.mxu0 %v3057
    %3837 = vmatpush1.msra.mxu0 %v3056
    %3838 = vmatprep.subr.mxu0 %v3064
    %3839 = vmatpush1.msra.mxu0 %v3063
    %3840 = vmatprep.subr.mxu0 %v3071
    %3841 = vmatpush1.msra.mxu0 %v3070
    %3842 = vmatprep.subr.mxu0 %v3078
    %3843 = vmatpush1.msra.mxu0 %v3077
    %3844 = vmatprep.subr.mxu0 %v3085
    %3845 = vmatpush1.msra.mxu0 %v3084
    %3846 = vmatprep.subr.mxu0 %v3092
    %3847 = vmatpush1.msra.mxu0 %v3091
    %3848 = vmatprep.subr.mxu0 %v3099
    %3849 = vmatpush1.msra.mxu0 %v3098
    %3850 = vmatprep.subr.mxu0 %v3106
    %3851 = vmatpush1.msra.mxu0 %v3105
    %3852 = vmatprep.subr.mxu0 %v3113
    %3853 = vmatpush1.msra.mxu0 %v3112
    %3854 = vmatprep.subr.mxu0 %v3120
    %3855 = vmatpush1.msra.mxu0 %v3119
    %3856 = vmatprep.subr.mxu0 %v3127
    %3857 = vmatpush1.msra.mxu0 %v3126
    %3858 = vmatprep.subr.mxu0 %v3134
    %3859 = vmatpush1.msra.mxu0 %v3133
    %3860 = vmatprep.subr.mxu0 %v3141
    %3861 = vmatpush1.msra.mxu0 %v3140
    %3862 = vmatprep.subr.mxu0 %v3148
    %3863 = vmatpush1.msra.mxu0 %v3147
    %3864 = vmatprep.subr.mxu0 %v3155
    %3865 = vmatpush1.msra.mxu0 %v3154
    %3866 = vmatprep.subr.mxu0 %v3162
    %3867 = vmatpush1.msra.mxu0 %v3161
    %3868 = vmatprep.subr.mxu0 %v3169
    %3869 = vmatpush1.msra.mxu0 %v3168
    %3870 = vmatprep.subr.mxu0 %v3176
    %3871 = vmatpush1.msra.mxu0 %v3175
    %3872 = vmatprep.subr.mxu0 %v3183
    %3873 = vmatpush1.msra.mxu0 %v3182
    %3874 = vmatprep.subr.mxu0 %v3190
    %3875 = vmatpush1.msra.mxu0 %v3189
    %3876 = vmatprep.subr.mxu0 %v3197
    %3877 = vmatpush1.msra.mxu0 %v3196
    %3878 = vmatprep.subr.mxu0 %v3204
    %3879 = vmatpush1.msra.mxu0 %v3203
    %3880 = vmatprep.subr.mxu0 %v3211
    %3881 = vmatpush1.msra.mxu0 %v3210
    %3882 = vmatprep.subr.mxu0 %v3218
    %3883 = vmatpush1.msra.mxu0 %v3217
    %3884 = vmatprep.subr.mxu0 %v3225
    %3885 = vmatpush1.msra.mxu0 %v3224
    %3886 = vmatprep.subr.mxu0 %v3232
    %3887 = vmatpush1.msra.mxu0 %v3231
    %3888 = vmatprep.subr.mxu0 %v3239
    %3889 = vmatpush1.msra.mxu0 %v3238
    %3890 = vmatprep.subr.mxu0 %v3246
    %3891 = vmatpush1.msra.mxu0 %v3245
    %3892 = vmatprep.mubr.f32.mxu0 %v3025
    %3893 = vmatmul.mubr.f32.gmra.mrb[0].mxu0 %v3024
    %v3894 = vpop.f32.mrb[0].mxu0
    %v3895 = vadd.f32 %v3612, %v3894
    %v3896 = vpop.f32.mrb[0].mxu0
    %v3897 = vadd.f32 %v3614, %v3896
    %3898 = vdwg.mxu0
    %3899 = vmatprep.subr.mxu0 %v3031
    %3900 = vmatpush1.msra.mxu0 %v3030
    %3901 = vmatprep.subr.mxu0 %v3038
    %3902 = vmatpush1.msra.mxu0 %v3037
    %3903 = vmatprep.subr.mxu0 %v3045
    %3904 = vmatpush1.msra.mxu0 %v3044
    %3905 = vmatprep.subr.mxu0 %v3052
    %3906 = vmatpush1.msra.mxu0 %v3051
    %3907 = vmatprep.subr.mxu0 %v3059
    %3908 = vmatpush1.msra.mxu0 %v3058
    %3909 = vmatprep.subr.mxu0 %v3066
    %3910 = vmatpush1.msra.mxu0 %v3065
    %3911 = vmatprep.subr.mxu0 %v3073
    %3912 = vmatpush1.msra.mxu0 %v3072
    %3913 = vmatprep.subr.mxu0 %v3080
    %3914 = vmatpush1.msra.mxu0 %v3079
    %3915 = vmatprep.subr.mxu0 %v3087
    %3916 = vmatpush1.msra.mxu0 %v3086
    %3917 = vmatprep.subr.mxu0 %v3094
    %3918 = vmatpush1.msra.mxu0 %v3093
    %3919 = vmatprep.subr.mxu0 %v3101
    %3920 = vmatpush1.msra.mxu0 %v3100
    %3921 = vmatprep.subr.mxu0 %v3108
    %3922 = vmatpush1.msra.mxu0 %v3107
    %3923 = vmatprep.subr.mxu0 %v3115
    %3924 = vmatpush1.msra.mxu0 %v3114
    %3925 = vmatprep.subr.mxu0 %v3122
    %3926 = vmatpush1.msra.mxu0 %v3121
    %3927 = vmatprep.subr.mxu0 %v3129
    %3928 = vmatpush1.msra.mxu0 %v3128
    %3929 = vmatprep.subr.mxu0 %v3136
    %3930 = vmatpush1.msra.mxu0 %v3135
    %3931 = vmatprep.subr.mxu0 %v3143
    %3932 = vmatpush1.msra.mxu0 %v3142
    %3933 = vmatprep.subr.mxu0 %v3150
    %3934 = vmatpush1.msra.mxu0 %v3149
    %3935 = vmatprep.subr.mxu0 %v3157
    %3936 = vmatpush1.msra.mxu0 %v3156
    %3937 = vmatprep.subr.mxu0 %v3164
    %3938 = vmatpush1.msra.mxu0 %v3163
    %3939 = vmatprep.subr.mxu0 %v3171
    %3940 = vmatpush1.msra.mxu0 %v3170
    %3941 = vmatprep.subr.mxu0 %v3178
    %3942 = vmatpush1.msra.mxu0 %v3177
    %3943 = vmatprep.subr.mxu0 %v3185
    %3944 = vmatpush1.msra.mxu0 %v3184
    %3945 = vmatprep.subr.mxu0 %v3192
    %3946 = vmatpush1.msra.mxu0 %v3191
    %3947 = vmatprep.subr.mxu0 %v3199
    %3948 = vmatpush1.msra.mxu0 %v3198
    %3949 = vmatprep.subr.mxu0 %v3206
    %3950 = vmatpush1.msra.mxu0 %v3205
    %3951 = vmatprep.subr.mxu0 %v3213
    %3952 = vmatpush1.msra.mxu0 %v3212
    %3953 = vmatprep.subr.mxu0 %v3220
    %3954 = vmatpush1.msra.mxu0 %v3219
    %3955 = vmatprep.subr.mxu0 %v3227
    %3956 = vmatpush1.msra.mxu0 %v3226
    %3957 = vmatprep.subr.mxu0 %v3234
    %3958 = vmatpush1.msra.mxu0 %v3233
    %3959 = vmatprep.subr.mxu0 %v3241
    %3960 = vmatpush1.msra.mxu0 %v3240
    %3961 = vmatprep.subr.mxu0 %v3248
    %3962 = vmatpush1.msra.mxu0 %v3247
    %3963 = vmatprep.mubr.f32.mxu0 %v3025
    %3964 = vmatmul.mubr.f32.gmra.mrb[0].mxu0 %v3024
    %v3965 = vpop.f32.mrb[0].mxu0
    %v3966 = vadd.f32 %v3683, %v3965
    %v3967 = vpop.f32.mrb[0].mxu0
    %v3968 = vadd.f32 %v3685, %v3967
    %3969 = vdwg.mxu0
    %3970 = vmatprep.subr.mxu0 0.0
    %3971 = vmatpush1.msra.mxu0 %v3032
    %3972 = vmatprep.subr.mxu0 0.0
    %3973 = vmatpush1.msra.mxu0 %v3039
    %3974 = vmatprep.subr.mxu0 0.0
    %3975 = vmatpush1.msra.mxu0 %v3046
    %3976 = vmatprep.subr.mxu0 0.0
    %3977 = vmatpush1.msra.mxu0 %v3053
    %3978 = vmatprep.subr.mxu0 0.0
    %3979 = vmatpush1.msra.mxu0 %v3060
    %3980 = vmatprep.subr.mxu0 0.0
    %3981 = vmatpush1.msra.mxu0 %v3067
    %3982 = vmatprep.subr.mxu0 0.0
    %3983 = vmatpush1.msra.mxu0 %v3074
    %3984 = vmatprep.subr.mxu0 0.0
    %3985 = vmatpush1.msra.mxu0 %v3081
    %3986 = vmatprep.subr.mxu0 0.0
    %3987 = vmatpush1.msra.mxu0 %v3088
    %3988 = vmatprep.subr.mxu0 0.0
    %3989 = vmatpush1.msra.mxu0 %v3095
    %3990 = vmatprep.subr.mxu0 0.0
    %3991 = vmatpush1.msra.mxu0 %v3102
    %3992 = vmatprep.subr.mxu0 0.0
    %3993 = vmatpush1.msra.mxu0 %v3109
    %3994 = vmatprep.subr.mxu0 0.0
    %3995 = vmatpush1.msra.mxu0 %v3116
    %3996 = vmatprep.subr.mxu0 0.0
    %3997 = vmatpush1.msra.mxu0 %v3123
    %3998 = vmatprep.subr.mxu0 0.0
    %3999 = vmatpush1.msra.mxu0 %v3130
    %4000 = vmatprep.subr.mxu0 0.0
    %4001 = vmatpush1.msra.mxu0 %v3137
    %4002 = vmatprep.subr.mxu0 0.0
    %4003 = vmatpush1.msra.mxu0 %v3144
    %4004 = vmatprep.subr.mxu0 0.0
    %4005 = vmatpush1.msra.mxu0 %v3151
    %4006 = vmatprep.subr.mxu0 0.0
    %4007 = vmatpush1.msra.mxu0 %v3158
    %4008 = vmatprep.subr.mxu0 0.0
    %4009 = vmatpush1.msra.mxu0 %v3165
    %4010 = vmatprep.subr.mxu0 0.0
    %4011 = vmatpush1.msra.mxu0 %v3172
    %4012 = vmatprep.subr.mxu0 0.0
    %4013 = vmatpush1.msra.mxu0 %v3179
    %4014 = vmatprep.subr.mxu0 0.0
    %4015 = vmatpush1.msra.mxu0 %v3186
    %4016 = vmatprep.subr.mxu0 0.0
    %4017 = vmatpush1.msra.mxu0 %v3193
    %4018 = vmatprep.subr.mxu0 0.0
    %4019 = vmatpush1.msra.mxu0 %v3200
    %4020 = vmatprep.subr.mxu0 0.0
    %4021 = vmatpush1.msra.mxu0 %v3207
    %4022 = vmatprep.subr.mxu0 0.0
    %4023 = vmatpush1.msra.mxu0 %v3214
    %4024 = vmatprep.subr.mxu0 0.0
    %4025 = vmatpush1.msra.mxu0 %v3221
    %4026 = vmatprep.subr.mxu0 0.0
    %4027 = vmatpush1.msra.mxu0 %v3228
    %4028 = vmatprep.subr.mxu0 0.0
    %4029 = vmatpush1.msra.mxu0 %v3235
    %4030 = vmatprep.subr.mxu0 0.0
    %4031 = vmatpush1.msra.mxu0 %v3242
    %4032 = vmatprep.subr.mxu0 0.0
    %4033 = vmatpush1.msra.mxu0 %v3249
    %4034 = vmatprep.mubr.f32.mxu0 %v3025
    %4035 = vmatmul.mubr.f32.gmra.mrb[0].mxu0 %v3024
    %v4036 = vpop.f32.mrb[0].mxu0
    %v4037 = vadd.f32 %v3754, %v4036
    %v4038 = vpop.f32.mrb[0].mxu0
    %4039 = vdwg.mxu0
    %v4040 = vld [vmem:[%s14] sm:$0x7f]
    %v4042 = vlaneseq
    %v4043 = vshrl.u32 %v4042, 7
    %v4044 = vsub.s32 0, %v4043
    %v4045 = vrot.slane %v4040, %v4044
    %v4046 = vlaneseq
    %v4047 = vshrl.u32 %v4046, 7
    %v4048 = vsub.s32 1, %v4047
    %v4049 = vrot.slane %v4040, %v4048
    %v4050 = vlaneseq
    %v4051 = vshrl.u32 %v4050, 7
    %v4052 = vsub.s32 2, %v4051
    %v4053 = vrot.slane %v4040, %v4052
    %v4054 = vlaneseq
    %v4055 = vshrl.u32 %v4054, 7
    %v4056 = vsub.s32 3, %v4055
    %v4057 = vrot.slane %v4040, %v4056
    %v4058 = vlaneseq
    %v4059 = vshrl.u32 %v4058, 7
    %v4060 = vsub.s32 4, %v4059
    %v4061 = vrot.slane %v4040, %v4060
    %v4062 = vlaneseq
    %v4063 = vshrl.u32 %v4062, 7
    %v4064 = vsub.s32 5, %v4063
    %v4065 = vrot.slane %v4040, %v4064
    %v4066 = vlaneseq
    %v4067 = vshrl.u32 %v4066, 7
    %v4068 = vsub.s32 6, %v4067
    %v4069 = vrot.slane %v4040, %v4068
    %v4077 = vadd.f32 %v3824, %v4045
    %v4078 = vadd.f32 %v3826, %v4049
    %v4079 = vadd.f32 %v3895, %v4053
    %v4080 = vadd.f32 %v3897, %v4057
    %v4081 = vadd.f32 %v3966, %v4061
    %v4082 = vadd.f32 %v3968, %v4065
    %v4083 = vadd.f32 %v4037, %v4069
    %v4084 = vmax.f32 %v4077, 0.0
    %v4085 = vmax.f32 %v4078, 0.0
    %v4086 = vmax.f32 %v4079, 0.0
    %v4087 = vmax.f32 %v4080, 0.0
    %v4088 = vmax.f32 %v4081, 0.0
    %v4089 = vmax.f32 %v4082, 0.0
    %v4090 = vmax.f32 %v4083, 0.0
    %v4091 = vld [vmem:[%s15] sm:$0xff]
    %v4092 = vld [vmem:[%s15 + $0x8] sm:$0xff]
    %v4093 = vld [vmem:[%s15 + $0x10] sm:$0xff]
    %v4094 = vld [vmem:[%s15 + $0x18] sm:$0xff]
    %v4095 = vld [vmem:[%s15 + $0x20] sm:$0xff]
    %v4096 = vld [vmem:[%s15 + $0x28] sm:$0xff]
    %v4097 = vld [vmem:[%s15 + $0x30] sm:$0xff]
    %v4098 = vld [vmem:[%s15 + $0x38] sm:$0xff]
    %v4099 = vld [vmem:[%s15 + $0x40] sm:$0xff]
    %v4100 = vld [vmem:[%s15 + $0x48] sm:$0xff]
    %v4101 = vld [vmem:[%s15 + $0x50] sm:$0xff]
    %v4102 = vld [vmem:[%s15 + $0x58] sm:$0xff]
    %v4103 = vld [vmem:[%s15 + $0x60] sm:$0xff]
    %v4104 = vld [vmem:[%s15 + $0x68] sm:$0xff]
    %v4105 = vld [vmem:[%s15 + $0x70] sm:$0xff]
    %v4106 = vld [vmem:[%s15 + $0x78] sm:$0xff]
    %v4107 = vld [vmem:[%s15 + $0x80] sm:$0xff]
    %v4108 = vld [vmem:[%s15 + $0x88] sm:$0xff]
    %v4109 = vld [vmem:[%s15 + $0x90] sm:$0xff]
    %v4110 = vld [vmem:[%s15 + $0x98] sm:$0xff]
    %v4111 = vld [vmem:[%s15 + $0xa0] sm:$0xff]
    %v4112 = vld [vmem:[%s15 + $0xa8] sm:$0xff]
    %v4113 = vld [vmem:[%s15 + $0xb0] sm:$0xff]
    %v4114 = vld [vmem:[%s15 + $0xb8] sm:$0xff]
    %v4115 = vld [vmem:[%s15 + $0xc0] sm:$0xff]
    %v4116 = vld [vmem:[%s15 + $0xc8] sm:$0xff]
    %v4117 = vld [vmem:[%s15 + $0xd0] sm:$0xff]
    %v4118 = vld [vmem:[%s15 + $0xd8] sm:$0xff]
    %v4119 = vld [vmem:[%s15 + $0xe0] sm:$0xff]
    %v4120 = vld [vmem:[%s15 + $0xe8] sm:$0xff]
    %v4121 = vld [vmem:[%s15 + $0xf0] sm:$0xff]
    %v4122 = vld [vmem:[%s15 + $0xf8] sm:$0xff]
    %v4123 = vld [vmem:[%s15 + $0x100] sm:$0xff]
    %v4124 = vld [vmem:[%s15 + $0x108] sm:$0xff]
    %v4125 = vld [vmem:[%s15 + $0x110] sm:$0xff]
    %v4126 = vld [vmem:[%s15 + $0x118] sm:$0xff]
    %v4127 = vld [vmem:[%s15 + $0x120] sm:$0xff]
    %v4128 = vld [vmem:[%s15 + $0x128] sm:$0xff]
    %v4129 = vld [vmem:[%s15 + $0x130] sm:$0xff]
    %v4130 = vld [vmem:[%s15 + $0x138] sm:$0xff]
    %v4131 = vld [vmem:[%s15 + $0x140] sm:$0xff]
    %v4132 = vld [vmem:[%s15 + $0x148] sm:$0xff]
    %v4133 = vld [vmem:[%s15 + $0x150] sm:$0xff]
    %v4134 = vld [vmem:[%s15 + $0x158] sm:$0xff]
    %v4135 = vld [vmem:[%s15 + $0x160] sm:$0xff]
    %v4136 = vld [vmem:[%s15 + $0x168] sm:$0xff]
    %v4137 = vld [vmem:[%s15 + $0x170] sm:$0xff]
    %v4138 = vld [vmem:[%s15 + $0x178] sm:$0xff]
    %v4139 = vld [vmem:[%s15 + $0x180] sm:$0xff]
    %v4140 = vld [vmem:[%s15 + $0x188] sm:$0xff]
    %v4141 = vld [vmem:[%s15 + $0x190] sm:$0xff]
    %v4142 = vld [vmem:[%s15 + $0x198] sm:$0xff]
    %v4143 = vld [vmem:[%s15 + $0x1a0] sm:$0xff]
    %v4144 = vld [vmem:[%s15 + $0x1a8] sm:$0xff]
    %v4145 = vld [vmem:[%s15 + $0x1b0] sm:$0xff]
    %v4146 = vld [vmem:[%s15 + $0x1b8] sm:$0xff]
    %v4147 = vld [vmem:[%s15 + $0x1c0] sm:$0xff]
    %v4148 = vld [vmem:[%s15 + $0x1c8] sm:$0xff]
    %v4149 = vld [vmem:[%s15 + $0x1d0] sm:$0xff]
    %v4150 = vld [vmem:[%s15 + $0x1d8] sm:$0xff]
    %v4151 = vld [vmem:[%s15 + $0x1e0] sm:$0xff]
    %v4152 = vld [vmem:[%s15 + $0x1e8] sm:$0xff]
    %v4153 = vld [vmem:[%s15 + $0x1f0] sm:$0xff]
    %v4154 = vld [vmem:[%s15 + $0x1f8] sm:$0xff]
    %v4155 = vld [vmem:[%s15 + $0x200] sm:$0xff]
    %v4156 = vld [vmem:[%s15 + $0x208] sm:$0xff]
    %v4157 = vld [vmem:[%s15 + $0x210] sm:$0xff]
    %v4158 = vld [vmem:[%s15 + $0x218] sm:$0xff]
    %v4159 = vld [vmem:[%s15 + $0x220] sm:$0xff]
    %v4160 = vld [vmem:[%s15 + $0x228] sm:$0xff]
    %v4161 = vld [vmem:[%s15 + $0x230] sm:$0xff]
    %v4162 = vld [vmem:[%s15 + $0x238] sm:$0xff]
    %v4163 = vld [vmem:[%s15 + $0x240] sm:$0xff]
    %v4164 = vld [vmem:[%s15 + $0x248] sm:$0xff]
    %v4165 = vld [vmem:[%s15 + $0x250] sm:$0xff]
    %v4166 = vld [vmem:[%s15 + $0x258] sm:$0xff]
    %v4167 = vld [vmem:[%s15 + $0x260] sm:$0xff]
    %v4168 = vld [vmem:[%s15 + $0x268] sm:$0xff]
    %v4169 = vld [vmem:[%s15 + $0x270] sm:$0xff]
    %v4170 = vld [vmem:[%s15 + $0x278] sm:$0xff]
    %v4171 = vld [vmem:[%s15 + $0x280] sm:$0xff]
    %v4172 = vld [vmem:[%s15 + $0x288] sm:$0xff]
    %v4173 = vld [vmem:[%s15 + $0x290] sm:$0xff]
    %v4174 = vld [vmem:[%s15 + $0x298] sm:$0xff]
    %v4175 = vld [vmem:[%s15 + $0x2a0] sm:$0xff]
    %v4176 = vld [vmem:[%s15 + $0x2a8] sm:$0xff]
    %v4177 = vld [vmem:[%s15 + $0x2b0] sm:$0xff]
    %v4178 = vld [vmem:[%s15 + $0x2b8] sm:$0xff]
    %v4179 = vld [vmem:[%s15 + $0x2c0] sm:$0xff]
    %v4180 = vld [vmem:[%s15 + $0x2c8] sm:$0xff]
    %v4181 = vld [vmem:[%s15 + $0x2d0] sm:$0xff]
    %v4182 = vld [vmem:[%s15 + $0x2d8] sm:$0xff]
    %v4183 = vld [vmem:[%s15 + $0x2e0] sm:$0xff]
    %v4184 = vld [vmem:[%s15 + $0x2e8] sm:$0xff]
    %v4185 = vld [vmem:[%s15 + $0x2f0] sm:$0xff]
    %v4186 = vld [vmem:[%s15 + $0x2f8] sm:$0xff]
    %v4187 = vld [vmem:[%s15 + $0x300] sm:$0xff]
    %v4188 = vld [vmem:[%s15 + $0x308] sm:$0xff]
    %v4189 = vld [vmem:[%s15 + $0x310] sm:$0xff]
    %v4190 = vld [vmem:[%s15 + $0x318] sm:$0xff]
    %v4191 = vld [vmem:[%s15 + $0x320] sm:$0xff]
    %v4192 = vld [vmem:[%s15 + $0x328] sm:$0xff]
    %v4193 = vld [vmem:[%s15 + $0x330] sm:$0xff]
    %v4194 = vld [vmem:[%s15 + $0x338] sm:$0xff]
    %v4195 = vld [vmem:[%s15 + $0x340] sm:$0xff]
    %v4196 = vld [vmem:[%s15 + $0x348] sm:$0xff]
    %v4197 = vld [vmem:[%s15 + $0x350] sm:$0xff]
    %v4198 = vld [vmem:[%s15 + $0x358] sm:$0xff]
    %v4199 = vld [vmem:[%s15 + $0x360] sm:$0xff]
    %v4200 = vld [vmem:[%s15 + $0x368] sm:$0xff]
    %v4201 = vld [vmem:[%s15 + $0x370] sm:$0xff]
    %v4202 = vld [vmem:[%s15 + $0x378] sm:$0xff]
    %v4203 = vld [vmem:[%s15 + $0x380] sm:$0xff]
    %v4204 = vld [vmem:[%s15 + $0x388] sm:$0xff]
    %v4205 = vld [vmem:[%s15 + $0x390] sm:$0xff]
    %v4206 = vld [vmem:[%s15 + $0x398] sm:$0xff]
    %v4207 = vld [vmem:[%s15 + $0x3a0] sm:$0xff]
    %v4208 = vld [vmem:[%s15 + $0x3a8] sm:$0xff]
    %v4209 = vld [vmem:[%s15 + $0x3b0] sm:$0xff]
    %v4210 = vld [vmem:[%s15 + $0x3b8] sm:$0xff]
    %v4211 = vld [vmem:[%s15 + $0x3c0] sm:$0xff]
    %v4212 = vld [vmem:[%s15 + $0x3c8] sm:$0xff]
    %v4213 = vld [vmem:[%s15 + $0x3d0] sm:$0xff]
    %v4214 = vld [vmem:[%s15 + $0x3d8] sm:$0xff]
    %v4215 = vld [vmem:[%s15 + $0x3e0] sm:$0xff]
    %v4216 = vld [vmem:[%s15 + $0x3e8] sm:$0xff]
    %v4217 = vld [vmem:[%s15 + $0x3f0] sm:$0xff]
    %v4218 = vld [vmem:[%s15 + $0x3f8] sm:$0xff]
    %v4219 = vld [vmem:[%s15 + $0x400] sm:$0xff]
    %v4220 = vld [vmem:[%s15 + $0x408] sm:$0xff]
    %v4221 = vld [vmem:[%s15 + $0x410] sm:$0xff]
    %v4222 = vld [vmem:[%s15 + $0x418] sm:$0xff]
    %v4223 = vld [vmem:[%s15 + $0x420] sm:$0xff]
    %v4224 = vld [vmem:[%s15 + $0x428] sm:$0xff]
    %v4225 = vld [vmem:[%s15 + $0x430] sm:$0xff]
    %v4226 = vld [vmem:[%s15 + $0x438] sm:$0xff]
    %v4227 = vld [vmem:[%s15 + $0x440] sm:$0xff]
    %v4228 = vld [vmem:[%s15 + $0x448] sm:$0xff]
    %v4229 = vld [vmem:[%s15 + $0x450] sm:$0xff]
    %v4230 = vld [vmem:[%s15 + $0x458] sm:$0xff]
    %v4231 = vld [vmem:[%s15 + $0x460] sm:$0xff]
    %v4232 = vld [vmem:[%s15 + $0x468] sm:$0xff]
    %v4233 = vld [vmem:[%s15 + $0x470] sm:$0xff]
    %v4234 = vld [vmem:[%s15 + $0x478] sm:$0xff]
    %v4235 = vld [vmem:[%s15 + $0x480] sm:$0xff]
    %v4236 = vld [vmem:[%s15 + $0x488] sm:$0xff]
    %v4237 = vld [vmem:[%s15 + $0x490] sm:$0xff]
    %v4238 = vld [vmem:[%s15 + $0x498] sm:$0xff]
    %v4239 = vld [vmem:[%s15 + $0x4a0] sm:$0xff]
    %v4240 = vld [vmem:[%s15 + $0x4a8] sm:$0xff]
    %v4241 = vld [vmem:[%s15 + $0x4b0] sm:$0xff]
    %v4242 = vld [vmem:[%s15 + $0x4b8] sm:$0xff]
    %v4243 = vld [vmem:[%s15 + $0x4c0] sm:$0xff]
    %v4244 = vld [vmem:[%s15 + $0x4c8] sm:$0xff]
    %v4245 = vld [vmem:[%s15 + $0x4d0] sm:$0xff]
    %v4246 = vld [vmem:[%s15 + $0x4d8] sm:$0xff]
    %v4247 = vld [vmem:[%s15 + $0x4e0] sm:$0xff]
    %v4248 = vld [vmem:[%s15 + $0x4e8] sm:$0xff]
    %v4249 = vld [vmem:[%s15 + $0x4f0] sm:$0xff]
    %v4250 = vld [vmem:[%s15 + $0x4f8] sm:$0xff]
    %v4251 = vld [vmem:[%s15 + $0x500] sm:$0xff]
    %v4252 = vld [vmem:[%s15 + $0x508] sm:$0xff]
    %v4253 = vld [vmem:[%s15 + $0x510] sm:$0xff]
    %v4254 = vld [vmem:[%s15 + $0x518] sm:$0xff]
    %v4255 = vld [vmem:[%s15 + $0x520] sm:$0xff]
    %v4256 = vld [vmem:[%s15 + $0x528] sm:$0xff]
    %v4257 = vld [vmem:[%s15 + $0x530] sm:$0xff]
    %v4258 = vld [vmem:[%s15 + $0x538] sm:$0xff]
    %v4259 = vld [vmem:[%s15 + $0x540] sm:$0xff]
    %v4260 = vld [vmem:[%s15 + $0x548] sm:$0xff]
    %v4261 = vld [vmem:[%s15 + $0x550] sm:$0xff]
    %v4262 = vld [vmem:[%s15 + $0x558] sm:$0xff]
    %v4263 = vld [vmem:[%s15 + $0x560] sm:$0xff]
    %v4264 = vld [vmem:[%s15 + $0x568] sm:$0xff]
    %v4265 = vld [vmem:[%s15 + $0x570] sm:$0xff]
    %v4266 = vld [vmem:[%s15 + $0x578] sm:$0xff]
    %v4267 = vld [vmem:[%s15 + $0x580] sm:$0xff]
    %v4268 = vld [vmem:[%s15 + $0x588] sm:$0xff]
    %v4269 = vld [vmem:[%s15 + $0x590] sm:$0xff]
    %v4270 = vld [vmem:[%s15 + $0x598] sm:$0xff]
    %v4271 = vld [vmem:[%s15 + $0x5a0] sm:$0xff]
    %v4272 = vld [vmem:[%s15 + $0x5a8] sm:$0xff]
    %v4273 = vld [vmem:[%s15 + $0x5b0] sm:$0xff]
    %v4274 = vld [vmem:[%s15 + $0x5b8] sm:$0xff]
    %v4275 = vld [vmem:[%s15 + $0x5c0] sm:$0xff]
    %v4276 = vld [vmem:[%s15 + $0x5c8] sm:$0xff]
    %v4277 = vld [vmem:[%s15 + $0x5d0] sm:$0xff]
    %v4278 = vld [vmem:[%s15 + $0x5d8] sm:$0xff]
    %v4279 = vld [vmem:[%s15 + $0x5e0] sm:$0xff]
    %v4280 = vld [vmem:[%s15 + $0x5e8] sm:$0xff]
    %v4281 = vld [vmem:[%s15 + $0x5f0] sm:$0xff]
    %v4282 = vld [vmem:[%s15 + $0x5f8] sm:$0xff]
    %v4283 = vld [vmem:[%s15 + $0x600] sm:$0xff]
    %v4284 = vld [vmem:[%s15 + $0x608] sm:$0xff]
    %v4285 = vld [vmem:[%s15 + $0x610] sm:$0xff]
    %v4286 = vld [vmem:[%s15 + $0x618] sm:$0xff]
    %v4287 = vld [vmem:[%s15 + $0x620] sm:$0xff]
    %v4288 = vld [vmem:[%s15 + $0x628] sm:$0xff]
    %v4289 = vld [vmem:[%s15 + $0x630] sm:$0xff]
    %v4290 = vld [vmem:[%s15 + $0x638] sm:$0xff]
    %v4291 = vld [vmem:[%s15 + $0x640] sm:$0xff]
    %v4292 = vld [vmem:[%s15 + $0x648] sm:$0xff]
    %v4293 = vld [vmem:[%s15 + $0x650] sm:$0xff]
    %v4294 = vld [vmem:[%s15 + $0x658] sm:$0xff]
    %v4295 = vld [vmem:[%s15 + $0x660] sm:$0xff]
    %v4296 = vld [vmem:[%s15 + $0x668] sm:$0xff]
    %v4297 = vld [vmem:[%s15 + $0x670] sm:$0xff]
    %v4298 = vld [vmem:[%s15 + $0x678] sm:$0xff]
    %v4299 = vld [vmem:[%s15 + $0x680] sm:$0xff]
    %v4300 = vld [vmem:[%s15 + $0x688] sm:$0xff]
    %v4301 = vld [vmem:[%s15 + $0x690] sm:$0xff]
    %v4302 = vld [vmem:[%s15 + $0x698] sm:$0xff]
    %v4303 = vld [vmem:[%s15 + $0x6a0] sm:$0xff]
    %v4304 = vld [vmem:[%s15 + $0x6a8] sm:$0xff]
    %v4305 = vld [vmem:[%s15 + $0x6b0] sm:$0xff]
    %v4306 = vld [vmem:[%s15 + $0x6b8] sm:$0xff]
    %v4307 = vld [vmem:[%s15 + $0x6c0] sm:$0xff]
    %v4308 = vld [vmem:[%s15 + $0x6c8] sm:$0xff]
    %v4309 = vld [vmem:[%s15 + $0x6d0] sm:$0xff]
    %v4310 = vld [vmem:[%s15 + $0x6d8] sm:$0xff]
    %v4311 = vld [vmem:[%s15 + $0x6e0] sm:$0xff]
    %v4312 = vld [vmem:[%s15 + $0x6e8] sm:$0xff]
    %v4313 = vld [vmem:[%s15 + $0x6f0] sm:$0xff]
    %v4314 = vld [vmem:[%s15 + $0x6f8] sm:$0xff]
    %v4315 = vld [vmem:[%s15 + $0x700] sm:$0xff]
    %v4316 = vld [vmem:[%s15 + $0x708] sm:$0xff]
    %v4317 = vld [vmem:[%s15 + $0x710] sm:$0xff]
    %v4318 = vld [vmem:[%s15 + $0x718] sm:$0xff]
    %v4319 = vld [vmem:[%s15 + $0x720] sm:$0xff]
    %v4320 = vld [vmem:[%s15 + $0x728] sm:$0xff]
    %v4321 = vld [vmem:[%s15 + $0x730] sm:$0xff]
    %v4322 = vld [vmem:[%s15 + $0x738] sm:$0xff]
    %v4323 = vld [vmem:[%s15 + $0x740] sm:$0xff]
    %v4324 = vld [vmem:[%s15 + $0x748] sm:$0xff]
    %v4325 = vld [vmem:[%s15 + $0x750] sm:$0xff]
    %v4326 = vld [vmem:[%s15 + $0x758] sm:$0xff]
    %v4327 = vld [vmem:[%s15 + $0x760] sm:$0xff]
    %v4328 = vld [vmem:[%s15 + $0x768] sm:$0xff]
    %v4329 = vld [vmem:[%s15 + $0x770] sm:$0xff]
    %v4330 = vld [vmem:[%s15 + $0x778] sm:$0xff]
    %v4331 = vld [vmem:[%s15 + $0x780] sm:$0xff]
    %v4332 = vld [vmem:[%s15 + $0x788] sm:$0xff]
    %v4333 = vld [vmem:[%s15 + $0x790] sm:$0xff]
    %v4334 = vld [vmem:[%s15 + $0x798] sm:$0xff]
    %v4335 = vld [vmem:[%s15 + $0x7a0] sm:$0xff]
    %v4336 = vld [vmem:[%s15 + $0x7a8] sm:$0xff]
    %v4337 = vld [vmem:[%s15 + $0x7b0] sm:$0xff]
    %v4338 = vld [vmem:[%s15 + $0x7b8] sm:$0xff]
    %v4339 = vld [vmem:[%s15 + $0x7c0] sm:$0xff]
    %v4340 = vld [vmem:[%s15 + $0x7c8] sm:$0xff]
    %v4341 = vld [vmem:[%s15 + $0x7d0] sm:$0xff]
    %v4342 = vld [vmem:[%s15 + $0x7d8] sm:$0xff]
    %v4343 = vld [vmem:[%s15 + $0x7e0] sm:$0xff]
    %v4344 = vld [vmem:[%s15 + $0x7e8] sm:$0xff]
    %v4345 = vld [vmem:[%s15 + $0x7f0] sm:$0xff]
    %v4346 = vld [vmem:[%s15 + $0x7f8] sm:$0xff]
    %v4347 = vld [vmem:[%s15 + $0x800] sm:$0xff]
    %v4348 = vld [vmem:[%s15 + $0x808] sm:$0xff]
    %v4349 = vld [vmem:[%s15 + $0x810] sm:$0xff]
    %v4350 = vld [vmem:[%s15 + $0x818] sm:$0xff]
    %v4351 = vld [vmem:[%s15 + $0x820] sm:$0xff]
    %v4352 = vld [vmem:[%s15 + $0x828] sm:$0xff]
    %v4353 = vld [vmem:[%s15 + $0x830] sm:$0xff]
    %v4354 = vld [vmem:[%s15 + $0x838] sm:$0xff]
    %v4355 = vld [vmem:[%s15 + $0x840] sm:$0xff]
    %v4356 = vld [vmem:[%s15 + $0x848] sm:$0xff]
    %v4357 = vld [vmem:[%s15 + $0x850] sm:$0xff]
    %v4358 = vld [vmem:[%s15 + $0x858] sm:$0xff]
    %v4359 = vld [vmem:[%s15 + $0x860] sm:$0xff]
    %v4360 = vld [vmem:[%s15 + $0x868] sm:$0xff]
    %v4361 = vld [vmem:[%s15 + $0x870] sm:$0xff]
    %v4362 = vld [vmem:[%s15 + $0x878] sm:$0xff]
    %v4363 = vld [vmem:[%s15 + $0x880] sm:$0xff]
    %v4364 = vld [vmem:[%s15 + $0x888] sm:$0xff]
    %v4365 = vld [vmem:[%s15 + $0x890] sm:$0xff]
    %v4366 = vld [vmem:[%s15 + $0x898] sm:$0xff]
    %v4367 = vld [vmem:[%s15 + $0x8a0] sm:$0xff]
    %v4368 = vld [vmem:[%s15 + $0x8a8] sm:$0xff]
    %v4369 = vld [vmem:[%s15 + $0x8b0] sm:$0xff]
    %v4370 = vld [vmem:[%s15 + $0x8b8] sm:$0xff]
    %v4371 = vld [vmem:[%s15 + $0x8c0] sm:$0xff]
    %v4372 = vld [vmem:[%s15 + $0x8c8] sm:$0xff]
    %v4373 = vld [vmem:[%s15 + $0x8d0] sm:$0xff]
    %v4374 = vld [vmem:[%s15 + $0x8d8] sm:$0xff]
    %v4375 = vld [vmem:[%s15 + $0x8e0] sm:$0xff]
    %v4376 = vld [vmem:[%s15 + $0x8e8] sm:$0xff]
    %v4377 = vld [vmem:[%s15 + $0x8f0] sm:$0xff]
    %v4378 = vld [vmem:[%s15 + $0x8f8] sm:$0xff]
    %v4379 = vld [vmem:[%s15 + $0x900] sm:$0xff]
    %v4380 = vld [vmem:[%s15 + $0x908] sm:$0xff]
    %v4381 = vld [vmem:[%s15 + $0x910] sm:$0xff]
    %v4382 = vld [vmem:[%s15 + $0x918] sm:$0xff]
    %v4383 = vld [vmem:[%s15 + $0x920] sm:$0xff]
    %v4384 = vld [vmem:[%s15 + $0x928] sm:$0xff]
    %v4385 = vld [vmem:[%s15 + $0x930] sm:$0xff]
    %v4386 = vld [vmem:[%s15 + $0x938] sm:$0xff]
    %v4387 = vld [vmem:[%s15 + $0x940] sm:$0xff]
    %v4388 = vld [vmem:[%s15 + $0x948] sm:$0xff]
    %v4389 = vld [vmem:[%s15 + $0x950] sm:$0xff]
    %v4390 = vld [vmem:[%s15 + $0x958] sm:$0xff]
    %v4391 = vld [vmem:[%s15 + $0x960] sm:$0xff]
    %v4392 = vld [vmem:[%s15 + $0x968] sm:$0xff]
    %v4393 = vld [vmem:[%s15 + $0x970] sm:$0xff]
    %v4394 = vld [vmem:[%s15 + $0x978] sm:$0xff]
    %v4395 = vld [vmem:[%s15 + $0x980] sm:$0xff]
    %v4396 = vld [vmem:[%s15 + $0x988] sm:$0xff]
    %v4397 = vld [vmem:[%s15 + $0x990] sm:$0xff]
    %v4398 = vld [vmem:[%s15 + $0x998] sm:$0xff]
    %v4399 = vld [vmem:[%s15 + $0x9a0] sm:$0xff]
    %v4400 = vld [vmem:[%s15 + $0x9a8] sm:$0xff]
    %v4401 = vld [vmem:[%s15 + $0x9b0] sm:$0xff]
    %v4402 = vld [vmem:[%s15 + $0x9b8] sm:$0xff]
    %v4403 = vld [vmem:[%s15 + $0x9c0] sm:$0xff]
    %v4404 = vld [vmem:[%s15 + $0x9c8] sm:$0xff]
    %v4405 = vld [vmem:[%s15 + $0x9d0] sm:$0xff]
    %v4406 = vld [vmem:[%s15 + $0x9d8] sm:$0xff]
    %v4407 = vld [vmem:[%s15 + $0x9e0] sm:$0xff]
    %v4408 = vld [vmem:[%s15 + $0x9e8] sm:$0xff]
    %v4409 = vld [vmem:[%s15 + $0x9f0] sm:$0xff]
    %v4410 = vld [vmem:[%s15 + $0x9f8] sm:$0xff]
    %v4411 = vld [vmem:[%s15 + $0xa00] sm:$0xff]
    %v4412 = vld [vmem:[%s15 + $0xa08] sm:$0xff]
    %v4413 = vld [vmem:[%s15 + $0xa10] sm:$0xff]
    %v4414 = vld [vmem:[%s15 + $0xa18] sm:$0xff]
    %v4415 = vld [vmem:[%s15 + $0xa20] sm:$0xff]
    %v4416 = vld [vmem:[%s15 + $0xa28] sm:$0xff]
    %v4417 = vld [vmem:[%s15 + $0xa30] sm:$0xff]
    %v4418 = vld [vmem:[%s15 + $0xa38] sm:$0xff]
    %v4419 = vld [vmem:[%s15 + $0xa40] sm:$0xff]
    %v4420 = vld [vmem:[%s15 + $0xa48] sm:$0xff]
    %v4421 = vld [vmem:[%s15 + $0xa50] sm:$0xff]
    %v4422 = vld [vmem:[%s15 + $0xa58] sm:$0xff]
    %v4423 = vld [vmem:[%s15 + $0xa60] sm:$0xff]
    %v4424 = vld [vmem:[%s15 + $0xa68] sm:$0xff]
    %v4425 = vld [vmem:[%s15 + $0xa70] sm:$0xff]
    %v4426 = vld [vmem:[%s15 + $0xa78] sm:$0xff]
    %v4427 = vld [vmem:[%s15 + $0xa80] sm:$0xff]
    %v4428 = vld [vmem:[%s15 + $0xa88] sm:$0xff]
    %v4429 = vld [vmem:[%s15 + $0xa90] sm:$0xff]
    %v4430 = vld [vmem:[%s15 + $0xa98] sm:$0xff]
    %v4431 = vld [vmem:[%s15 + $0xaa0] sm:$0xff]
    %v4432 = vld [vmem:[%s15 + $0xaa8] sm:$0xff]
    %v4433 = vld [vmem:[%s15 + $0xab0] sm:$0xff]
    %v4434 = vld [vmem:[%s15 + $0xab8] sm:$0xff]
    %v4435 = vld [vmem:[%s15 + $0xac0] sm:$0xff]
    %v4436 = vld [vmem:[%s15 + $0xac8] sm:$0xff]
    %v4437 = vld [vmem:[%s15 + $0xad0] sm:$0xff]
    %v4438 = vld [vmem:[%s15 + $0xad8] sm:$0xff]
    %v4439 = vld [vmem:[%s15 + $0xae0] sm:$0xff]
    %v4440 = vld [vmem:[%s15 + $0xae8] sm:$0xff]
    %v4441 = vld [vmem:[%s15 + $0xaf0] sm:$0xff]
    %v4442 = vld [vmem:[%s15 + $0xaf8] sm:$0xff]
    %v4443 = vld [vmem:[%s15 + $0xb00] sm:$0xff]
    %v4444 = vld [vmem:[%s15 + $0xb08] sm:$0xff]
    %v4445 = vld [vmem:[%s15 + $0xb10] sm:$0xff]
    %v4446 = vld [vmem:[%s15 + $0xb18] sm:$0xff]
    %v4447 = vld [vmem:[%s15 + $0xb20] sm:$0xff]
    %v4448 = vld [vmem:[%s15 + $0xb28] sm:$0xff]
    %v4449 = vld [vmem:[%s15 + $0xb30] sm:$0xff]
    %v4450 = vld [vmem:[%s15 + $0xb38] sm:$0xff]
    %v4451 = vld [vmem:[%s15 + $0xb40] sm:$0xff]
    %v4452 = vld [vmem:[%s15 + $0xb48] sm:$0xff]
    %v4453 = vld [vmem:[%s15 + $0xb50] sm:$0xff]
    %v4454 = vld [vmem:[%s15 + $0xb58] sm:$0xff]
    %v4455 = vld [vmem:[%s15 + $0xb60] sm:$0xff]
    %v4456 = vld [vmem:[%s15 + $0xb68] sm:$0xff]
    %v4457 = vld [vmem:[%s15 + $0xb70] sm:$0xff]
    %v4458 = vld [vmem:[%s15 + $0xb78] sm:$0xff]
    %v4459 = vld [vmem:[%s15 + $0xb80] sm:$0xff]
    %v4460 = vld [vmem:[%s15 + $0xb88] sm:$0xff]
    %v4461 = vld [vmem:[%s15 + $0xb90] sm:$0xff]
    %v4462 = vld [vmem:[%s15 + $0xb98] sm:$0xff]
    %v4463 = vld [vmem:[%s15 + $0xba0] sm:$0xff]
    %v4464 = vld [vmem:[%s15 + $0xba8] sm:$0xff]
    %v4465 = vld [vmem:[%s15 + $0xbb0] sm:$0xff]
    %v4466 = vld [vmem:[%s15 + $0xbb8] sm:$0xff]
    %v4467 = vld [vmem:[%s15 + $0xbc0] sm:$0xff]
    %v4468 = vld [vmem:[%s15 + $0xbc8] sm:$0xff]
    %v4469 = vld [vmem:[%s15 + $0xbd0] sm:$0xff]
    %v4470 = vld [vmem:[%s15 + $0xbd8] sm:$0xff]
    %v4471 = vld [vmem:[%s15 + $0xbe0] sm:$0xff]
    %v4472 = vld [vmem:[%s15 + $0xbe8] sm:$0xff]
    %v4473 = vld [vmem:[%s15 + $0xbf0] sm:$0xff]
    %v4474 = vld [vmem:[%s15 + $0xbf8] sm:$0xff]
    %v4475 = vld [vmem:[%s15 + $0xc00] sm:$0xff]
    %v4476 = vld [vmem:[%s15 + $0xc08] sm:$0xff]
    %v4477 = vld [vmem:[%s15 + $0xc10] sm:$0xff]
    %v4478 = vld [vmem:[%s15 + $0xc18] sm:$0xff]
    %v4479 = vld [vmem:[%s15 + $0xc20] sm:$0xff]
    %v4480 = vld [vmem:[%s15 + $0xc28] sm:$0xff]
    %v4481 = vld [vmem:[%s15 + $0xc30] sm:$0xff]
    %v4482 = vld [vmem:[%s15 + $0xc38] sm:$0xff]
    %v4483 = vld [vmem:[%s15 + $0xc40] sm:$0xff]
    %v4484 = vld [vmem:[%s15 + $0xc48] sm:$0xff]
    %v4485 = vld [vmem:[%s15 + $0xc50] sm:$0xff]
    %v4486 = vld [vmem:[%s15 + $0xc58] sm:$0xff]
    %v4487 = vld [vmem:[%s15 + $0xc60] sm:$0xff]
    %v4488 = vld [vmem:[%s15 + $0xc68] sm:$0xff]
    %v4489 = vld [vmem:[%s15 + $0xc70] sm:$0xff]
    %v4490 = vld [vmem:[%s15 + $0xc78] sm:$0xff]
    %v4491 = vld [vmem:[%s16] sm:$0xf]
    %v4493 = vlaneseq
    %v4494 = vshrl.u32 %v4493, 7
    %v4495 = vsub.s32 0, %v4494
    %v4496 = vrot.slane %v4491, %v4495
    %v4497 = vlaneseq
    %v4498 = vshrl.u32 %v4497, 7
    %v4499 = vsub.s32 1, %v4498
    %v4500 = vrot.slane %v4491, %v4499
    %v4501 = vlaneseq
    %v4502 = vshrl.u32 %v4501, 7
    %v4503 = vsub.s32 2, %v4502
    %v4504 = vrot.slane %v4491, %v4503
    %v4505 = vlaneseq
    %v4506 = vshrl.u32 %v4505, 7
    %v4507 = vsub.s32 3, %v4506
    %v4508 = vrot.slane %v4491, %v4507
    %vm4513 = vcmask 261120
    %v4515 = vsel %vm4513, %v4090, 0
    %4517 = vmatprep.subr.mxu0 %v4092
    %4518 = vmatpush1.msra.mxu0 %v4091
    %4519 = vmatprep.subr.mxu0 %v4096
    %4520 = vmatpush1.msra.mxu0 %v4095
    %4521 = vmatprep.subr.mxu0 %v4100
    %4522 = vmatpush1.msra.mxu0 %v4099
    %4523 = vmatprep.subr.mxu0 %v4104
    %4524 = vmatpush1.msra.mxu0 %v4103
    %4525 = vmatprep.subr.mxu0 %v4108
    %4526 = vmatpush1.msra.mxu0 %v4107
    %4527 = vmatprep.subr.mxu0 %v4112
    %4528 = vmatpush1.msra.mxu0 %v4111
    %4529 = vmatprep.subr.mxu0 %v4116
    %4530 = vmatpush1.msra.mxu0 %v4115
    %4531 = vmatprep.subr.mxu0 %v4120
    %4532 = vmatpush1.msra.mxu0 %v4119
    %4533 = vmatprep.subr.mxu0 %v4124
    %4534 = vmatpush1.msra.mxu0 %v4123
    %4535 = vmatprep.subr.mxu0 %v4128
    %4536 = vmatpush1.msra.mxu0 %v4127
    %4537 = vmatprep.subr.mxu0 %v4132
    %4538 = vmatpush1.msra.mxu0 %v4131
    %4539 = vmatprep.subr.mxu0 %v4136
    %4540 = vmatpush1.msra.mxu0 %v4135
    %4541 = vmatprep.subr.mxu0 %v4140
    %4542 = vmatpush1.msra.mxu0 %v4139
    %4543 = vmatprep.subr.mxu0 %v4144
    %4544 = vmatpush1.msra.mxu0 %v4143
    %4545 = vmatprep.subr.mxu0 %v4148
    %4546 = vmatpush1.msra.mxu0 %v4147
    %4547 = vmatprep.subr.mxu0 %v4152
    %4548 = vmatpush1.msra.mxu0 %v4151
    %4549 = vmatprep.subr.mxu0 %v4156
    %4550 = vmatpush1.msra.mxu0 %v4155
    %4551 = vmatprep.subr.mxu0 %v4160
    %4552 = vmatpush1.msra.mxu0 %v4159
    %4553 = vmatprep.subr.mxu0 %v4164
    %4554 = vmatpush1.msra.mxu0 %v4163
    %4555 = vmatprep.subr.mxu0 %v4168
    %4556 = vmatpush1.msra.mxu0 %v4167
    %4557 = vmatprep.subr.mxu0 %v4172
    %4558 = vmatpush1.msra.mxu0 %v4171
    %4559 = vmatprep.subr.mxu0 %v4176
    %4560 = vmatpush1.msra.mxu0 %v4175
    %4561 = vmatprep.subr.mxu0 %v4180
    %4562 = vmatpush1.msra.mxu0 %v4179
    %4563 = vmatprep.subr.mxu0 %v4184
    %4564 = vmatpush1.msra.mxu0 %v4183
    %4565 = vmatprep.subr.mxu0 %v4188
    %4566 = vmatpush1.msra.mxu0 %v4187
    %4567 = vmatprep.subr.mxu0 %v4192
    %4568 = vmatpush1.msra.mxu0 %v4191
    %4569 = vmatprep.subr.mxu0 %v4196
    %4570 = vmatpush1.msra.mxu0 %v4195
    %4571 = vmatprep.subr.mxu0 %v4200
    %4572 = vmatpush1.msra.mxu0 %v4199
    %4573 = vmatprep.subr.mxu0 %v4204
    %4574 = vmatpush1.msra.mxu0 %v4203
    %4575 = vmatprep.subr.mxu0 %v4208
    %4576 = vmatpush1.msra.mxu0 %v4207
    %4577 = vmatprep.subr.mxu0 %v4212
    %4578 = vmatpush1.msra.mxu0 %v4211
    %4579 = vmatprep.subr.mxu0 %v4216
    %4580 = vmatpush1.msra.mxu0 %v4215
    %4581 = vmatprep.mubr.f32.mxu0 %v4085
    %4582 = vmatmul.mubr.f32.gmra.mrb[0].mxu0 %v4084
    %v4583 = vpop.f32.mrb[0].mxu0
    %v4584 = vadd.f32 %v4496, %v4583
    %v4585 = vpop.f32.mrb[0].mxu0
    %v4586 = vadd.f32 %v4500, %v4585
    %4587 = vdwg.mxu0
    %4588 = vmatprep.subr.mxu0 %v4220
    %4589 = vmatpush1.msra.mxu0 %v4219
    %4590 = vmatprep.subr.mxu0 %v4224
    %4591 = vmatpush1.msra.mxu0 %v4223
    %4592 = vmatprep.subr.mxu0 %v4228
    %4593 = vmatpush1.msra.mxu0 %v4227
    %4594 = vmatprep.subr.mxu0 %v4232
    %4595 = vmatpush1.msra.mxu0 %v4231
    %4596 = vmatprep.subr.mxu0 %v4236
    %4597 = vmatpush1.msra.mxu0 %v4235
    %4598 = vmatprep.subr.mxu0 %v4240
    %4599 = vmatpush1.msra.mxu0 %v4239
    %4600 = vmatprep.subr.mxu0 %v4244
    %4601 = vmatpush1.msra.mxu0 %v4243
    %4602 = vmatprep.subr.mxu0 %v4248
    %4603 = vmatpush1.msra.mxu0 %v4247
    %4604 = vmatprep.subr.mxu0 %v4252
    %4605 = vmatpush1.msra.mxu0 %v4251
    %4606 = vmatprep.subr.mxu0 %v4256
    %4607 = vmatpush1.msra.mxu0 %v4255
    %4608 = vmatprep.subr.mxu0 %v4260
    %4609 = vmatpush1.msra.mxu0 %v4259
    %4610 = vmatprep.subr.mxu0 %v4264
    %4611 = vmatpush1.msra.mxu0 %v4263
    %4612 = vmatprep.subr.mxu0 %v4268
    %4613 = vmatpush1.msra.mxu0 %v4267
    %4614 = vmatprep.subr.mxu0 %v4272
    %4615 = vmatpush1.msra.mxu0 %v4271
    %4616 = vmatprep.subr.mxu0 %v4276
    %4617 = vmatpush1.msra.mxu0 %v4275
    %4618 = vmatprep.subr.mxu0 %v4280
    %4619 = vmatpush1.msra.mxu0 %v4279
    %4620 = vmatprep.subr.mxu0 %v4284
    %4621 = vmatpush1.msra.mxu0 %v4283
    %4622 = vmatprep.subr.mxu0 %v4288
    %4623 = vmatpush1.msra.mxu0 %v4287
    %4624 = vmatprep.subr.mxu0 %v4292
    %4625 = vmatpush1.msra.mxu0 %v4291
    %4626 = vmatprep.subr.mxu0 %v4296
    %4627 = vmatpush1.msra.mxu0 %v4295
    %4628 = vmatprep.subr.mxu0 %v4300
    %4629 = vmatpush1.msra.mxu0 %v4299
    %4630 = vmatprep.subr.mxu0 %v4304
    %4631 = vmatpush1.msra.mxu0 %v4303
    %4632 = vmatprep.subr.mxu0 %v4308
    %4633 = vmatpush1.msra.mxu0 %v4307
    %4634 = vmatprep.subr.mxu0 %v4312
    %4635 = vmatpush1.msra.mxu0 %v4311
    %4636 = vmatprep.subr.mxu0 %v4316
    %4637 = vmatpush1.msra.mxu0 %v4315
    %4638 = vmatprep.subr.mxu0 %v4320
    %4639 = vmatpush1.msra.mxu0 %v4319
    %4640 = vmatprep.subr.mxu0 %v4324
    %4641 = vmatpush1.msra.mxu0 %v4323
    %4642 = vmatprep.subr.mxu0 %v4328
    %4643 = vmatpush1.msra.mxu0 %v4327
    %4644 = vmatprep.subr.mxu0 %v4332
    %4645 = vmatpush1.msra.mxu0 %v4331
    %4646 = vmatprep.subr.mxu0 %v4336
    %4647 = vmatpush1.msra.mxu0 %v4335
    %4648 = vmatprep.subr.mxu0 %v4340
    %4649 = vmatpush1.msra.mxu0 %v4339
    %4650 = vmatprep.subr.mxu0 %v4344
    %4651 = vmatpush1.msra.mxu0 %v4343
    %4652 = vmatprep.mubr.f32.mxu0 %v4087
    %4653 = vmatmul.mubr.f32.gmra.mrb[0].mxu0 %v4086
    %v4654 = vpop.f32.mrb[0].mxu0
    %v4655 = vadd.f32 %v4584, %v4654
    %v4656 = vpop.f32.mrb[0].mxu0
    %v4657 = vadd.f32 %v4586, %v4656
    %4658 = vdwg.mxu0
    %4659 = vmatprep.subr.mxu0 %v4348
    %4660 = vmatpush1.msra.mxu0 %v4347
    %4661 = vmatprep.subr.mxu0 %v4352
    %4662 = vmatpush1.msra.mxu0 %v4351
    %4663 = vmatprep.subr.mxu0 %v4356
    %4664 = vmatpush1.msra.mxu0 %v4355
    %4665 = vmatprep.subr.mxu0 %v4360
    %4666 = vmatpush1.msra.mxu0 %v4359
    %4667 = vmatprep.subr.mxu0 %v4364
    %4668 = vmatpush1.msra.mxu0 %v4363
    %4669 = vmatprep.subr.mxu0 %v4368
    %4670 = vmatpush1.msra.mxu0 %v4367
    %4671 = vmatprep.subr.mxu0 %v4372
    %4672 = vmatpush1.msra.mxu0 %v4371
    %4673 = vmatprep.subr.mxu0 %v4376
    %4674 = vmatpush1.msra.mxu0 %v4375
    %4675 = vmatprep.subr.mxu0 %v4380
    %4676 = vmatpush1.msra.mxu0 %v4379
    %4677 = vmatprep.subr.mxu0 %v4384
    %4678 = vmatpush1.msra.mxu0 %v4383
    %4679 = vmatprep.subr.mxu0 %v4388
    %4680 = vmatpush1.msra.mxu0 %v4387
    %4681 = vmatprep.subr.mxu0 %v4392
    %4682 = vmatpush1.msra.mxu0 %v4391
    %4683 = vmatprep.subr.mxu0 %v4396
    %4684 = vmatpush1.msra.mxu0 %v4395
    %4685 = vmatprep.subr.mxu0 %v4400
    %4686 = vmatpush1.msra.mxu0 %v4399
    %4687 = vmatprep.subr.mxu0 %v4404
    %4688 = vmatpush1.msra.mxu0 %v4403
    %4689 = vmatprep.subr.mxu0 %v4408
    %4690 = vmatpush1.msra.mxu0 %v4407
    %4691 = vmatprep.subr.mxu0 %v4412
    %4692 = vmatpush1.msra.mxu0 %v4411
    %4693 = vmatprep.subr.mxu0 %v4416
    %4694 = vmatpush1.msra.mxu0 %v4415
    %4695 = vmatprep.subr.mxu0 %v4420
    %4696 = vmatpush1.msra.mxu0 %v4419
    %4697 = vmatprep.subr.mxu0 %v4424
    %4698 = vmatpush1.msra.mxu0 %v4423
    %4699 = vmatprep.subr.mxu0 %v4428
    %4700 = vmatpush1.msra.mxu0 %v4427
    %4701 = vmatprep.subr.mxu0 %v4432
    %4702 = vmatpush1.msra.mxu0 %v4431
    %4703 = vmatprep.subr.mxu0 %v4436
    %4704 = vmatpush1.msra.mxu0 %v4435
    %4705 = vmatprep.subr.mxu0 %v4440
    %4706 = vmatpush1.msra.mxu0 %v4439
    %4707 = vmatprep.subr.mxu0 %v4444
    %4708 = vmatpush1.msra.mxu0 %v4443
    %4709 = vmatprep.subr.mxu0 %v4448
    %4710 = vmatpush1.msra.mxu0 %v4447
    %4711 = vmatprep.subr.mxu0 %v4452
    %4712 = vmatpush1.msra.mxu0 %v4451
    %4713 = vmatprep.subr.mxu0 %v4456
    %4714 = vmatpush1.msra.mxu0 %v4455
    %4715 = vmatprep.subr.mxu0 %v4460
    %4716 = vmatpush1.msra.mxu0 %v4459
    %4717 = vmatprep.subr.mxu0 %v4464
    %4718 = vmatpush1.msra.mxu0 %v4463
    %4719 = vmatprep.subr.mxu0 %v4468
    %4720 = vmatpush1.msra.mxu0 %v4467
    %4721 = vmatprep.subr.mxu0 %v4472
    %4722 = vmatpush1.msra.mxu0 %v4471
    %4723 = vmatprep.mubr.f32.mxu0 %v4089
    %4724 = vmatmul.mubr.f32.gmra.mrb[0].mxu0 %v4088
    %v4725 = vpop.f32.mrb[0].mxu0
    %v4726 = vadd.f32 %v4655, %v4725
    %v4727 = vpop.f32.mrb[0].mxu0
    %v4728 = vadd.f32 %v4657, %v4727
    %4729 = vdwg.mxu0
    %4730 = vmatprep.subr.mxu0 %v4476
    %4731 = vmatpush1.msra.mxu0 %v4475
    %4732 = vmatprep.subr.mxu0 %v4480
    %4733 = vmatpush1.msra.mxu0 %v4479
    %4734 = vmatprep.subr.mxu0 %v4484
    %4735 = vmatpush1.msra.mxu0 %v4483
    %4736 = vmatprep.subr.mxu0 %v4488
    %4737 = vmatpush1.msra.mxu0 %v4487
    %4738 = vmatprep.subr.mxu0 0.0
    %4739 = vmatpush1.msra.mxu0 0.0
    %4740 = vmatprep.subr.mxu0 0.0
    %4741 = vmatpush1.msra.mxu0 0.0
    %4742 = vmatprep.subr.mxu0 0.0
    %4743 = vmatpush1.msra.mxu0 0.0
    %4744 = vmatprep.subr.mxu0 0.0
    %4745 = vmatpush1.msra.mxu0 0.0
    %4746 = vmatprep.subr.mxu0 0.0
    %4747 = vmatpush1.msra.mxu0 0.0
    %4748 = vmatprep.subr.mxu0 0.0
    %4749 = vmatpush1.msra.mxu0 0.0
    %4750 = vmatprep.subr.mxu0 0.0
    %4751 = vmatpush1.msra.mxu0 0.0
    %4752 = vmatprep.subr.mxu0 0.0
    %4753 = vmatpush1.msra.mxu0 0.0
    %4754 = vmatprep.subr.mxu0 0.0
    %4755 = vmatpush1.msra.mxu0 0.0
    %4756 = vmatprep.subr.mxu0 0.0
    %4757 = vmatpush1.msra.mxu0 0.0
    %4758 = vmatprep.subr.mxu0 0.0
    %4759 = vmatpush1.msra.mxu0 0.0
    %4760 = vmatprep.subr.mxu0 0.0
    %4761 = vmatpush1.msra.mxu0 0.0
    %4762 = vmatprep.subr.mxu0 0.0
    %4763 = vmatpush1.msra.mxu0 0.0
    %4764 = vmatprep.subr.mxu0 0.0
    %4765 = vmatpush1.msra.mxu0 0.0
    %4766 = vmatprep.subr.mxu0 0.0
    %4767 = vmatpush1.msra.mxu0 0.0
    %4768 = vmatprep.subr.mxu0 0.0
    %4769 = vmatpush1.msra.mxu0 0.0
    %4770 = vmatprep.subr.mxu0 0.0
    %4771 = vmatpush1.msra.mxu0 0.0
    %4772 = vmatprep.subr.mxu0 0.0
    %4773 = vmatpush1.msra.mxu0 0.0
    %4774 = vmatprep.subr.mxu0 0.0
    %4775 = vmatpush1.msra.mxu0 0.0
    %4776 = vmatprep.subr.mxu0 0.0
    %4777 = vmatpush1.msra.mxu0 0.0
    %4778 = vmatprep.subr.mxu0 0.0
    %4779 = vmatpush1.msra.mxu0 0.0
    %4780 = vmatprep.subr.mxu0 0.0
    %4781 = vmatpush1.msra.mxu0 0.0
    %4782 = vmatprep.subr.mxu0 0.0
    %4783 = vmatpush1.msra.mxu0 0.0
    %4784 = vmatprep.subr.mxu0 0.0
    %4785 = vmatpush1.msra.mxu0 0.0
    %4786 = vmatprep.subr.mxu0 0.0
    %4787 = vmatpush1.msra.mxu0 0.0
    %4788 = vmatprep.subr.mxu0 0.0
    %4789 = vmatpush1.msra.mxu0 0.0
    %4790 = vmatprep.subr.mxu0 0.0
    %4791 = vmatpush1.msra.mxu0 0.0
    %4792 = vmatprep.subr.mxu0 0.0
    %4793 = vmatpush1.msra.mxu0 0.0
    %4794 = vmatprep.mubr.f32.mxu0 0.0
    %4795 = vmatmul.mubr.f32.gmra.mrb[0].mxu0 %v4515
    %v4796 = vpop.f32.mrb[0].mxu0
    %v4797 = vadd.f32 %v4726, %v4796
    %v4798 = vpop.f32.mrb[0].mxu0
    %v4799 = vadd.f32 %v4728, %v4798
    %4800 = vdwg.mxu0
    %4801 = vmatprep.subr.mxu0 %v4094
    %4802 = vmatpush1.msra.mxu0 %v4093
    %4803 = vmatprep.subr.mxu0 %v4098
    %4804 = vmatpush1.msra.mxu0 %v4097
    %4805 = vmatprep.subr.mxu0 %v4102
    %4806 = vmatpush1.msra.mxu0 %v4101
    %4807 = vmatprep.subr.mxu0 %v4106
    %4808 = vmatpush1.msra.mxu0 %v4105
    %4809 = vmatprep.subr.mxu0 %v4110
    %4810 = vmatpush1.msra.mxu0 %v4109
    %4811 = vmatprep.subr.mxu0 %v4114
    %4812 = vmatpush1.msra.mxu0 %v4113
    %4813 = vmatprep.subr.mxu0 %v4118
    %4814 = vmatpush1.msra.mxu0 %v4117
    %4815 = vmatprep.subr.mxu0 %v4122
    %4816 = vmatpush1.msra.mxu0 %v4121
    %4817 = vmatprep.subr.mxu0 %v4126
    %4818 = vmatpush1.msra.mxu0 %v4125
    %4819 = vmatprep.subr.mxu0 %v4130
    %4820 = vmatpush1.msra.mxu0 %v4129
    %4821 = vmatprep.subr.mxu0 %v4134
    %4822 = vmatpush1.msra.mxu0 %v4133
    %4823 = vmatprep.subr.mxu0 %v4138
    %4824 = vmatpush1.msra.mxu0 %v4137
    %4825 = vmatprep.subr.mxu0 %v4142
    %4826 = vmatpush1.msra.mxu0 %v4141
    %4827 = vmatprep.subr.mxu0 %v4146
    %4828 = vmatpush1.msra.mxu0 %v4145
    %4829 = vmatprep.subr.mxu0 %v4150
    %4830 = vmatpush1.msra.mxu0 %v4149
    %4831 = vmatprep.subr.mxu0 %v4154
    %4832 = vmatpush1.msra.mxu0 %v4153
    %4833 = vmatprep.subr.mxu0 %v4158
    %4834 = vmatpush1.msra.mxu0 %v4157
    %4835 = vmatprep.subr.mxu0 %v4162
    %4836 = vmatpush1.msra.mxu0 %v4161
    %4837 = vmatprep.subr.mxu0 %v4166
    %4838 = vmatpush1.msra.mxu0 %v4165
    %4839 = vmatprep.subr.mxu0 %v4170
    %4840 = vmatpush1.msra.mxu0 %v4169
    %4841 = vmatprep.subr.mxu0 %v4174
    %4842 = vmatpush1.msra.mxu0 %v4173
    %4843 = vmatprep.subr.mxu0 %v4178
    %4844 = vmatpush1.msra.mxu0 %v4177
    %4845 = vmatprep.subr.mxu0 %v4182
    %4846 = vmatpush1.msra.mxu0 %v4181
    %4847 = vmatprep.subr.mxu0 %v4186
    %4848 = vmatpush1.msra.mxu0 %v4185
    %4849 = vmatprep.subr.mxu0 %v4190
    %4850 = vmatpush1.msra.mxu0 %v4189
    %4851 = vmatprep.subr.mxu0 %v4194
    %4852 = vmatpush1.msra.mxu0 %v4193
    %4853 = vmatprep.subr.mxu0 %v4198
    %4854 = vmatpush1.msra.mxu0 %v4197
    %4855 = vmatprep.subr.mxu0 %v4202
    %4856 = vmatpush1.msra.mxu0 %v4201
    %4857 = vmatprep.subr.mxu0 %v4206
    %4858 = vmatpush1.msra.mxu0 %v4205
    %4859 = vmatprep.subr.mxu0 %v4210
    %4860 = vmatpush1.msra.mxu0 %v4209
    %4861 = vmatprep.subr.mxu0 %v4214
    %4862 = vmatpush1.msra.mxu0 %v4213
    %4863 = vmatprep.subr.mxu0 %v4218
    %4864 = vmatpush1.msra.mxu0 %v4217
    %4865 = vmatprep.mubr.f32.mxu0 %v4085
    %4866 = vmatmul.mubr.f32.gmra.mrb[0].mxu0 %v4084
    %v4867 = vpop.f32.mrb[0].mxu0
    %v4868 = vadd.f32 %v4504, %v4867
    %v4869 = vpop.f32.mrb[0].mxu0
    %v4870 = vadd.f32 %v4508, %v4869
    %4871 = vdwg.mxu0
    %4872 = vmatprep.subr.mxu0 %v4222
    %4873 = vmatpush1.msra.mxu0 %v4221
    %4874 = vmatprep.subr.mxu0 %v4226
    %4875 = vmatpush1.msra.mxu0 %v4225
    %4876 = vmatprep.subr.mxu0 %v4230
    %4877 = vmatpush1.msra.mxu0 %v4229
    %4878 = vmatprep.subr.mxu0 %v4234
    %4879 = vmatpush1.msra.mxu0 %v4233
    %4880 = vmatprep.subr.mxu0 %v4238
    %4881 = vmatpush1.msra.mxu0 %v4237
    %4882 = vmatprep.subr.mxu0 %v4242
    %4883 = vmatpush1.msra.mxu0 %v4241
    %4884 = vmatprep.subr.mxu0 %v4246
    %4885 = vmatpush1.msra.mxu0 %v4245
    %4886 = vmatprep.subr.mxu0 %v4250
    %4887 = vmatpush1.msra.mxu0 %v4249
    %4888 = vmatprep.subr.mxu0 %v4254
    %4889 = vmatpush1.msra.mxu0 %v4253
    %4890 = vmatprep.subr.mxu0 %v4258
    %4891 = vmatpush1.msra.mxu0 %v4257
    %4892 = vmatprep.subr.mxu0 %v4262
    %4893 = vmatpush1.msra.mxu0 %v4261
    %4894 = vmatprep.subr.mxu0 %v4266
    %4895 = vmatpush1.msra.mxu0 %v4265
    %4896 = vmatprep.subr.mxu0 %v4270
    %4897 = vmatpush1.msra.mxu0 %v4269
    %4898 = vmatprep.subr.mxu0 %v4274
    %4899 = vmatpush1.msra.mxu0 %v4273
    %4900 = vmatprep.subr.mxu0 %v4278
    %4901 = vmatpush1.msra.mxu0 %v4277
    %4902 = vmatprep.subr.mxu0 %v4282
    %4903 = vmatpush1.msra.mxu0 %v4281
    %4904 = vmatprep.subr.mxu0 %v4286
    %4905 = vmatpush1.msra.mxu0 %v4285
    %4906 = vmatprep.subr.mxu0 %v4290
    %4907 = vmatpush1.msra.mxu0 %v4289
    %4908 = vmatprep.subr.mxu0 %v4294
    %4909 = vmatpush1.msra.mxu0 %v4293
    %4910 = vmatprep.subr.mxu0 %v4298
    %4911 = vmatpush1.msra.mxu0 %v4297
    %4912 = vmatprep.subr.mxu0 %v4302
    %4913 = vmatpush1.msra.mxu0 %v4301
    %4914 = vmatprep.subr.mxu0 %v4306
    %4915 = vmatpush1.msra.mxu0 %v4305
    %4916 = vmatprep.subr.mxu0 %v4310
    %4917 = vmatpush1.msra.mxu0 %v4309
    %4918 = vmatprep.subr.mxu0 %v4314
    %4919 = vmatpush1.msra.mxu0 %v4313
    %4920 = vmatprep.subr.mxu0 %v4318
    %4921 = vmatpush1.msra.mxu0 %v4317
    %4922 = vmatprep.subr.mxu0 %v4322
    %4923 = vmatpush1.msra.mxu0 %v4321
    %4924 = vmatprep.subr.mxu0 %v4326
    %4925 = vmatpush1.msra.mxu0 %v4325
    %4926 = vmatprep.subr.mxu0 %v4330
    %4927 = vmatpush1.msra.mxu0 %v4329
    %4928 = vmatprep.subr.mxu0 %v4334
    %4929 = vmatpush1.msra.mxu0 %v4333
    %4930 = vmatprep.subr.mxu0 %v4338
    %4931 = vmatpush1.msra.mxu0 %v4337
    %4932 = vmatprep.subr.mxu0 %v4342
    %4933 = vmatpush1.msra.mxu0 %v4341
    %4934 = vmatprep.subr.mxu0 %v4346
    %4935 = vmatpush1.msra.mxu0 %v4345
    %4936 = vmatprep.mubr.f32.mxu0 %v4087
    %4937 = vmatmul.mubr.f32.gmra.mrb[0].mxu0 %v4086
    %v4938 = vpop.f32.mrb[0].mxu0
    %v4939 = vadd.f32 %v4868, %v4938
    %v4940 = vpop.f32.mrb[0].mxu0
    %v4941 = vadd.f32 %v4870, %v4940
    %4942 = vdwg.mxu0
    %4943 = vmatprep.subr.mxu0 %v4350
    %4944 = vmatpush1.msra.mxu0 %v4349
    %4945 = vmatprep.subr.mxu0 %v4354
    %4946 = vmatpush1.msra.mxu0 %v4353
    %4947 = vmatprep.subr.mxu0 %v4358
    %4948 = vmatpush1.msra.mxu0 %v4357
    %4949 = vmatprep.subr.mxu0 %v4362
    %4950 = vmatpush1.msra.mxu0 %v4361
    %4951 = vmatprep.subr.mxu0 %v4366
    %4952 = vmatpush1.msra.mxu0 %v4365
    %4953 = vmatprep.subr.mxu0 %v4370
    %4954 = vmatpush1.msra.mxu0 %v4369
    %4955 = vmatprep.subr.mxu0 %v4374
    %4956 = vmatpush1.msra.mxu0 %v4373
    %4957 = vmatprep.subr.mxu0 %v4378
    %4958 = vmatpush1.msra.mxu0 %v4377
    %4959 = vmatprep.subr.mxu0 %v4382
    %4960 = vmatpush1.msra.mxu0 %v4381
    %4961 = vmatprep.subr.mxu0 %v4386
    %4962 = vmatpush1.msra.mxu0 %v4385
    %4963 = vmatprep.subr.mxu0 %v4390
    %4964 = vmatpush1.msra.mxu0 %v4389
    %4965 = vmatprep.subr.mxu0 %v4394
    %4966 = vmatpush1.msra.mxu0 %v4393
    %4967 = vmatprep.subr.mxu0 %v4398
    %4968 = vmatpush1.msra.mxu0 %v4397
    %4969 = vmatprep.subr.mxu0 %v4402
    %4970 = vmatpush1.msra.mxu0 %v4401
    %4971 = vmatprep.subr.mxu0 %v4406
    %4972 = vmatpush1.msra.mxu0 %v4405
    %4973 = vmatprep.subr.mxu0 %v4410
    %4974 = vmatpush1.msra.mxu0 %v4409
    %4975 = vmatprep.subr.mxu0 %v4414
    %4976 = vmatpush1.msra.mxu0 %v4413
    %4977 = vmatprep.subr.mxu0 %v4418
    %4978 = vmatpush1.msra.mxu0 %v4417
    %4979 = vmatprep.subr.mxu0 %v4422
    %4980 = vmatpush1.msra.mxu0 %v4421
    %4981 = vmatprep.subr.mxu0 %v4426
    %4982 = vmatpush1.msra.mxu0 %v4425
    %4983 = vmatprep.subr.mxu0 %v4430
    %4984 = vmatpush1.msra.mxu0 %v4429
    %4985 = vmatprep.subr.mxu0 %v4434
    %4986 = vmatpush1.msra.mxu0 %v4433
    %4987 = vmatprep.subr.mxu0 %v4438
    %4988 = vmatpush1.msra.mxu0 %v4437
    %4989 = vmatprep.subr.mxu0 %v4442
    %4990 = vmatpush1.msra.mxu0 %v4441
    %4991 = vmatprep.subr.mxu0 %v4446
    %4992 = vmatpush1.msra.mxu0 %v4445
    %4993 = vmatprep.subr.mxu0 %v4450
    %4994 = vmatpush1.msra.mxu0 %v4449
    %4995 = vmatprep.subr.mxu0 %v4454
    %4996 = vmatpush1.msra.mxu0 %v4453
    %4997 = vmatprep.subr.mxu0 %v4458
    %4998 = vmatpush1.msra.mxu0 %v4457
    %4999 = vmatprep.subr.mxu0 %v4462
    %5000 = vmatpush1.msra.mxu0 %v4461
    %5001 = vmatprep.subr.mxu0 %v4466
    %5002 = vmatpush1.msra.mxu0 %v4465
    %5003 = vmatprep.subr.mxu0 %v4470
    %5004 = vmatpush1.msra.mxu0 %v4469
    %5005 = vmatprep.subr.mxu0 %v4474
    %5006 = vmatpush1.msra.mxu0 %v4473
    %5007 = vmatprep.mubr.f32.mxu0 %v4089
    %5008 = vmatmul.mubr.f32.gmra.mrb[0].mxu0 %v4088
    %v5009 = vpop.f32.mrb[0].mxu0
    %v5010 = vadd.f32 %v4939, %v5009
    %v5011 = vpop.f32.mrb[0].mxu0
    %v5012 = vadd.f32 %v4941, %v5011
    %5013 = vdwg.mxu0
    %5014 = vmatprep.subr.mxu0 %v4478
    %5015 = vmatpush1.msra.mxu0 %v4477
    %5016 = vmatprep.subr.mxu0 %v4482
    %5017 = vmatpush1.msra.mxu0 %v4481
    %5018 = vmatprep.subr.mxu0 %v4486
    %5019 = vmatpush1.msra.mxu0 %v4485
    %5020 = vmatprep.subr.mxu0 %v4490
    %5021 = vmatpush1.msra.mxu0 %v4489
    %5022 = vmatprep.subr.mxu0 0.0
    %5023 = vmatpush1.msra.mxu0 0.0
    %5024 = vmatprep.subr.mxu0 0.0
    %5025 = vmatpush1.msra.mxu0 0.0
    %5026 = vmatprep.subr.mxu0 0.0
    %5027 = vmatpush1.msra.mxu0 0.0
    %5028 = vmatprep.subr.mxu0 0.0
    %5029 = vmatpush1.msra.mxu0 0.0
    %5030 = vmatprep.subr.mxu0 0.0
    %5031 = vmatpush1.msra.mxu0 0.0
    %5032 = vmatprep.subr.mxu0 0.0
    %5033 = vmatpush1.msra.mxu0 0.0
    %5034 = vmatprep.subr.mxu0 0.0
    %5035 = vmatpush1.msra.mxu0 0.0
    %5036 = vmatprep.subr.mxu0 0.0
    %5037 = vmatpush1.msra.mxu0 0.0
    %5038 = vmatprep.subr.mxu0 0.0
    %5039 = vmatpush1.msra.mxu0 0.0
    %5040 = vmatprep.subr.mxu0 0.0
    %5041 = vmatpush1.msra.mxu0 0.0
    %5042 = vmatprep.subr.mxu0 0.0
    %5043 = vmatpush1.msra.mxu0 0.0
    %5044 = vmatprep.subr.mxu0 0.0
    %5045 = vmatpush1.msra.mxu0 0.0
    %5046 = vmatprep.subr.mxu0 0.0
    %5047 = vmatpush1.msra.mxu0 0.0
    %5048 = vmatprep.subr.mxu0 0.0
    %5049 = vmatpush1.msra.mxu0 0.0
    %5050 = vmatprep.subr.mxu0 0.0
    %5051 = vmatpush1.msra.mxu0 0.0
    %5052 = vmatprep.subr.mxu0 0.0
    %5053 = vmatpush1.msra.mxu0 0.0
    %5054 = vmatprep.subr.mxu0 0.0
    %5055 = vmatpush1.msra.mxu0 0.0
    %5056 = vmatprep.subr.mxu0 0.0
    %5057 = vmatpush1.msra.mxu0 0.0
    %5058 = vmatprep.subr.mxu0 0.0
    %5059 = vmatpush1.msra.mxu0 0.0
    %5060 = vmatprep.subr.mxu0 0.0
    %5061 = vmatpush1.msra.mxu0 0.0
    %5062 = vmatprep.subr.mxu0 0.0
    %5063 = vmatpush1.msra.mxu0 0.0
    %5064 = vmatprep.subr.mxu0 0.0
    %5065 = vmatpush1.msra.mxu0 0.0
    %5066 = vmatprep.subr.mxu0 0.0
    %5067 = vmatpush1.msra.mxu0 0.0
    %5068 = vmatprep.subr.mxu0 0.0
    %5069 = vmatpush1.msra.mxu0 0.0
    %5070 = vmatprep.subr.mxu0 0.0
    %5071 = vmatpush1.msra.mxu0 0.0
    %5072 = vmatprep.subr.mxu0 0.0
    %5073 = vmatpush1.msra.mxu0 0.0
    %5074 = vmatprep.subr.mxu0 0.0
    %5075 = vmatpush1.msra.mxu0 0.0
    %5076 = vmatprep.subr.mxu0 0.0
    %5077 = vmatpush1.msra.mxu0 0.0
    %5078 = vmatprep.mubr.f32.mxu0 0.0
    %5079 = vmatmul.mubr.f32.gmra.mrb[0].mxu0 %v4515
    %v5080 = vpop.f32.mrb[0].mxu0
    %v5081 = vadd.f32 %v5010, %v5080
    %v5082 = vpop.f32.mrb[0].mxu0
    %v5083 = vadd.f32 %v5012, %v5082
    %5084 = vdwg.mxu0
    %v5085 = vmax.f32 %v4797, 0.0
    %v5086 = vmax.f32 %v4799, 0.0
    %v5087 = vmax.f32 %v5081, 0.0
    %v5088 = vmax.f32 %v5083, 0.0
    %v5089 = vld [vmem:[%s17] sm:$0xff]
    %v5090 = vld [vmem:[%s17 + $0x8] sm:$0xff]
    %v5091 = vld [vmem:[%s17 + $0x10] sm:$0xff]
    %v5092 = vld [vmem:[%s17 + $0x18] sm:$0xff]
    %v5093 = vld [vmem:[%s17 + $0x20] sm:$0xff]
    %v5094 = vld [vmem:[%s17 + $0x28] sm:$0xff]
    %v5095 = vld [vmem:[%s17 + $0x30] sm:$0xff]
    %v5096 = vld [vmem:[%s17 + $0x38] sm:$0xff]
    %v5097 = vld [vmem:[%s17 + $0x40] sm:$0xff]
    %v5098 = vld [vmem:[%s17 + $0x48] sm:$0xff]
    %v5099 = vld [vmem:[%s17 + $0x50] sm:$0xff]
    %v5100 = vld [vmem:[%s17 + $0x58] sm:$0xff]
    %v5101 = vld [vmem:[%s17 + $0x60] sm:$0xff]
    %v5102 = vld [vmem:[%s17 + $0x68] sm:$0xff]
    %v5103 = vld [vmem:[%s17 + $0x70] sm:$0xff]
    %v5104 = vld [vmem:[%s17 + $0x78] sm:$0xff]
    %v5105 = vld [vmem:[%s17 + $0x80] sm:$0xff]
    %v5106 = vld [vmem:[%s17 + $0x88] sm:$0xff]
    %v5107 = vld [vmem:[%s17 + $0x90] sm:$0xff]
    %v5108 = vld [vmem:[%s17 + $0x98] sm:$0xff]
    %v5109 = vld [vmem:[%s17 + $0xa0] sm:$0xff]
    %v5110 = vld [vmem:[%s17 + $0xa8] sm:$0xff]
    %v5111 = vld [vmem:[%s17 + $0xb0] sm:$0xff]
    %v5112 = vld [vmem:[%s17 + $0xb8] sm:$0xff]
    %v5113 = vld [vmem:[%s17 + $0xc0] sm:$0xff]
    %v5114 = vld [vmem:[%s17 + $0xc8] sm:$0xff]
    %v5115 = vld [vmem:[%s17 + $0xd0] sm:$0xff]
    %v5116 = vld [vmem:[%s17 + $0xd8] sm:$0xff]
    %v5117 = vld [vmem:[%s17 + $0xe0] sm:$0xff]
    %v5118 = vld [vmem:[%s17 + $0xe8] sm:$0xff]
    %v5119 = vld [vmem:[%s17 + $0xf0] sm:$0xff]
    %v5120 = vld [vmem:[%s17 + $0xf8] sm:$0xff]
    %v5121 = vld [vmem:[%s17 + $0x100] sm:$0xff]
    %v5122 = vld [vmem:[%s17 + $0x108] sm:$0xff]
    %v5123 = vld [vmem:[%s17 + $0x110] sm:$0xff]
    %v5124 = vld [vmem:[%s17 + $0x118] sm:$0xff]
    %v5125 = vld [vmem:[%s17 + $0x120] sm:$0xff]
    %v5126 = vld [vmem:[%s17 + $0x128] sm:$0xff]
    %v5127 = vld [vmem:[%s17 + $0x130] sm:$0xff]
    %v5128 = vld [vmem:[%s17 + $0x138] sm:$0xff]
    %v5129 = vld [vmem:[%s17 + $0x140] sm:$0xff]
    %v5130 = vld [vmem:[%s17 + $0x148] sm:$0xff]
    %v5131 = vld [vmem:[%s17 + $0x150] sm:$0xff]
    %v5132 = vld [vmem:[%s17 + $0x158] sm:$0xff]
    %v5133 = vld [vmem:[%s17 + $0x160] sm:$0xff]
    %v5134 = vld [vmem:[%s17 + $0x168] sm:$0xff]
    %v5135 = vld [vmem:[%s17 + $0x170] sm:$0xff]
    %v5136 = vld [vmem:[%s17 + $0x178] sm:$0xff]
    %v5137 = vld [vmem:[%s17 + $0x180] sm:$0xff]
    %v5138 = vld [vmem:[%s17 + $0x188] sm:$0xff]
    %v5139 = vld [vmem:[%s17 + $0x190] sm:$0xff]
    %v5140 = vld [vmem:[%s17 + $0x198] sm:$0xff]
    %v5141 = vld [vmem:[%s17 + $0x1a0] sm:$0xff]
    %v5142 = vld [vmem:[%s17 + $0x1a8] sm:$0xff]
    %v5143 = vld [vmem:[%s17 + $0x1b0] sm:$0xff]
    %v5144 = vld [vmem:[%s17 + $0x1b8] sm:$0xff]
    %v5145 = vld [vmem:[%s17 + $0x1c0] sm:$0xff]
    %v5146 = vld [vmem:[%s17 + $0x1c8] sm:$0xff]
    %v5147 = vld [vmem:[%s17 + $0x1d0] sm:$0xff]
    %v5148 = vld [vmem:[%s17 + $0x1d8] sm:$0xff]
    %v5149 = vld [vmem:[%s17 + $0x1e0] sm:$0xff]
    %v5150 = vld [vmem:[%s17 + $0x1e8] sm:$0xff]
    %v5151 = vld [vmem:[%s17 + $0x1f0] sm:$0xff]
    %v5152 = vld [vmem:[%s17 + $0x1f8] sm:$0xff]
    %v5153 = vld [vmem:[%s17 + $0x200] sm:$0xff]
    %v5154 = vld [vmem:[%s17 + $0x208] sm:$0xff]
    %v5155 = vld [vmem:[%s17 + $0x210] sm:$0xff]
    %v5156 = vld [vmem:[%s17 + $0x218] sm:$0xff]
    %v5157 = vld [vmem:[%s17 + $0x220] sm:$0xff]
    %v5158 = vld [vmem:[%s17 + $0x228] sm:$0xff]
    %v5159 = vld [vmem:[%s17 + $0x230] sm:$0xff]
    %v5160 = vld [vmem:[%s17 + $0x238] sm:$0xff]
    %v5161 = vld [vmem:[%s17 + $0x240] sm:$0xff]
    %v5162 = vld [vmem:[%s17 + $0x248] sm:$0xff]
    %v5163 = vld [vmem:[%s17 + $0x250] sm:$0xff]
    %v5164 = vld [vmem:[%s17 + $0x258] sm:$0xff]
    %v5165 = vld [vmem:[%s17 + $0x260] sm:$0xff]
    %v5166 = vld [vmem:[%s17 + $0x268] sm:$0xff]
    %v5167 = vld [vmem:[%s17 + $0x270] sm:$0xff]
    %v5168 = vld [vmem:[%s17 + $0x278] sm:$0xff]
    %v5169 = vld [vmem:[%s17 + $0x280] sm:$0xff]
    %v5170 = vld [vmem:[%s17 + $0x288] sm:$0xff]
    %v5171 = vld [vmem:[%s17 + $0x290] sm:$0xff]
    %v5172 = vld [vmem:[%s17 + $0x298] sm:$0xff]
    %v5173 = vld [vmem:[%s17 + $0x2a0] sm:$0xff]
    %v5174 = vld [vmem:[%s17 + $0x2a8] sm:$0xff]
    %v5175 = vld [vmem:[%s17 + $0x2b0] sm:$0xff]
    %v5176 = vld [vmem:[%s17 + $0x2b8] sm:$0xff]
    %v5177 = vld [vmem:[%s17 + $0x2c0] sm:$0xff]
    %v5178 = vld [vmem:[%s17 + $0x2c8] sm:$0xff]
    %v5179 = vld [vmem:[%s17 + $0x2d0] sm:$0xff]
    %v5180 = vld [vmem:[%s17 + $0x2d8] sm:$0xff]
    %v5181 = vld [vmem:[%s17 + $0x2e0] sm:$0xff]
    %v5182 = vld [vmem:[%s17 + $0x2e8] sm:$0xff]
    %v5183 = vld [vmem:[%s17 + $0x2f0] sm:$0xff]
    %v5184 = vld [vmem:[%s17 + $0x2f8] sm:$0xff]
    %v5185 = vld [vmem:[%s17 + $0x300] sm:$0xff]
    %v5186 = vld [vmem:[%s17 + $0x308] sm:$0xff]
    %v5187 = vld [vmem:[%s17 + $0x310] sm:$0xff]
    %v5188 = vld [vmem:[%s17 + $0x318] sm:$0xff]
    %v5189 = vld [vmem:[%s18] sm:$0x3]
    %v5191 = vlaneseq
    %v5192 = vshrl.u32 %v5191, 7
    %v5193 = vsub.s32 0, %v5192
    %v5194 = vrot.slane %v5189, %v5193
    %v5195 = vlaneseq
    %v5196 = vshrl.u32 %v5195, 7
    %v5197 = vsub.s32 1, %v5196
    %v5198 = vrot.slane %v5189, %v5197
    %vm5201 = vcmask 130048
    %v5203 = vsel %vm5201, %v5088, 0
    %5205 = vmatprep.subr.mxu0 %v5090
    %5206 = vmatpush1.msra.mxu0 %v5089
    %5207 = vmatprep.subr.mxu0 %v5092
    %5208 = vmatpush1.msra.mxu0 %v5091
    %5209 = vmatprep.subr.mxu0 %v5094
    %5210 = vmatpush1.msra.mxu0 %v5093
    %5211 = vmatprep.subr.mxu0 %v5096
    %5212 = vmatpush1.msra.mxu0 %v5095
    %5213 = vmatprep.subr.mxu0 %v5098
    %5214 = vmatpush1.msra.mxu0 %v5097
    %5215 = vmatprep.subr.mxu0 %v5100
    %5216 = vmatpush1.msra.mxu0 %v5099
    %5217 = vmatprep.subr.mxu0 %v5102
    %5218 = vmatpush1.msra.mxu0 %v5101
    %5219 = vmatprep.subr.mxu0 %v5104
    %5220 = vmatpush1.msra.mxu0 %v5103
    %5221 = vmatprep.subr.mxu0 %v5106
    %5222 = vmatpush1.msra.mxu0 %v5105
    %5223 = vmatprep.subr.mxu0 %v5108
    %5224 = vmatpush1.msra.mxu0 %v5107
    %5225 = vmatprep.subr.mxu0 %v5110
    %5226 = vmatpush1.msra.mxu0 %v5109
    %5227 = vmatprep.subr.mxu0 %v5112
    %5228 = vmatpush1.msra.mxu0 %v5111
    %5229 = vmatprep.subr.mxu0 %v5114
    %5230 = vmatpush1.msra.mxu0 %v5113
    %5231 = vmatprep.subr.mxu0 %v5116
    %5232 = vmatpush1.msra.mxu0 %v5115
    %5233 = vmatprep.subr.mxu0 %v5118
    %5234 = vmatpush1.msra.mxu0 %v5117
    %5235 = vmatprep.subr.mxu0 %v5120
    %5236 = vmatpush1.msra.mxu0 %v5119
    %5237 = vmatprep.subr.mxu0 %v5122
    %5238 = vmatpush1.msra.mxu0 %v5121
    %5239 = vmatprep.subr.mxu0 %v5124
    %5240 = vmatpush1.msra.mxu0 %v5123
    %5241 = vmatprep.subr.mxu0 %v5126
    %5242 = vmatpush1.msra.mxu0 %v5125
    %5243 = vmatprep.subr.mxu0 %v5128
    %5244 = vmatpush1.msra.mxu0 %v5127
    %5245 = vmatprep.subr.mxu0 %v5130
    %5246 = vmatpush1.msra.mxu0 %v5129
    %5247 = vmatprep.subr.mxu0 %v5132
    %5248 = vmatpush1.msra.mxu0 %v5131
    %5249 = vmatprep.subr.mxu0 %v5134
    %5250 = vmatpush1.msra.mxu0 %v5133
    %5251 = vmatprep.subr.mxu0 %v5136
    %5252 = vmatpush1.msra.mxu0 %v5135
    %5253 = vmatprep.subr.mxu0 %v5138
    %5254 = vmatpush1.msra.mxu0 %v5137
    %5255 = vmatprep.subr.mxu0 %v5140
    %5256 = vmatpush1.msra.mxu0 %v5139
    %5257 = vmatprep.subr.mxu0 %v5142
    %5258 = vmatpush1.msra.mxu0 %v5141
    %5259 = vmatprep.subr.mxu0 %v5144
    %5260 = vmatpush1.msra.mxu0 %v5143
    %5261 = vmatprep.subr.mxu0 %v5146
    %5262 = vmatpush1.msra.mxu0 %v5145
    %5263 = vmatprep.subr.mxu0 %v5148
    %5264 = vmatpush1.msra.mxu0 %v5147
    %5265 = vmatprep.subr.mxu0 %v5150
    %5266 = vmatpush1.msra.mxu0 %v5149
    %5267 = vmatprep.subr.mxu0 %v5152
    %5268 = vmatpush1.msra.mxu0 %v5151
    %5269 = vmatprep.mubr.f32.mxu0 %v5086
    %5270 = vmatmul.mubr.f32.gmra.mrb[0].mxu0 %v5085
    %v5271 = vpop.f32.mrb[0].mxu0
    %v5272 = vadd.f32 %v5194, %v5271
    %v5273 = vpop.f32.mrb[0].mxu0
    %v5274 = vadd.f32 %v5198, %v5273
    %5275 = vdwg.mxu0
    %5276 = vmatprep.subr.mxu0 %v5154
    %5277 = vmatpush1.msra.mxu0 %v5153
    %5278 = vmatprep.subr.mxu0 %v5156
    %5279 = vmatpush1.msra.mxu0 %v5155
    %5280 = vmatprep.subr.mxu0 %v5158
    %5281 = vmatpush1.msra.mxu0 %v5157
    %5282 = vmatprep.subr.mxu0 %v5160
    %5283 = vmatpush1.msra.mxu0 %v5159
    %5284 = vmatprep.subr.mxu0 %v5162
    %5285 = vmatpush1.msra.mxu0 %v5161
    %5286 = vmatprep.subr.mxu0 %v5164
    %5287 = vmatpush1.msra.mxu0 %v5163
    %5288 = vmatprep.subr.mxu0 %v5166
    %5289 = vmatpush1.msra.mxu0 %v5165
    %5290 = vmatprep.subr.mxu0 %v5168
    %5291 = vmatpush1.msra.mxu0 %v5167
    %5292 = vmatprep.subr.mxu0 %v5170
    %5293 = vmatpush1.msra.mxu0 %v5169
    %5294 = vmatprep.subr.mxu0 %v5172
    %5295 = vmatpush1.msra.mxu0 %v5171
    %5296 = vmatprep.subr.mxu0 %v5174
    %5297 = vmatpush1.msra.mxu0 %v5173
    %5298 = vmatprep.subr.mxu0 %v5176
    %5299 = vmatpush1.msra.mxu0 %v5175
    %5300 = vmatprep.subr.mxu0 %v5178
    %5301 = vmatpush1.msra.mxu0 %v5177
    %5302 = vmatprep.subr.mxu0 %v5180
    %5303 = vmatpush1.msra.mxu0 %v5179
    %5304 = vmatprep.subr.mxu0 %v5182
    %5305 = vmatpush1.msra.mxu0 %v5181
    %5306 = vmatprep.subr.mxu0 %v5184
    %5307 = vmatpush1.msra.mxu0 %v5183
    %5308 = vmatprep.subr.mxu0 %v5186
    %5309 = vmatpush1.msra.mxu0 %v5185
    %5310 = vmatprep.subr.mxu0 %v5188
    %5311 = vmatpush1.msra.mxu0 %v5187
    %5312 = vmatprep.subr.mxu0 0.0
    %5313 = vmatpush1.msra.mxu0 0.0
    %5314 = vmatprep.subr.mxu0 0.0
    %5315 = vmatpush1.msra.mxu0 0.0
    %5316 = vmatprep.subr.mxu0 0.0
    %5317 = vmatpush1.msra.mxu0 0.0
    %5318 = vmatprep.subr.mxu0 0.0
    %5319 = vmatpush1.msra.mxu0 0.0
    %5320 = vmatprep.subr.mxu0 0.0
    %5321 = vmatpush1.msra.mxu0 0.0
    %5322 = vmatprep.subr.mxu0 0.0
    %5323 = vmatpush1.msra.mxu0 0.0
    %5324 = vmatprep.subr.mxu0 0.0
    %5325 = vmatpush1.msra.mxu0 0.0
    %5326 = vmatprep.subr.mxu0 0.0
    %5327 = vmatpush1.msra.mxu0 0.0
    %5328 = vmatprep.subr.mxu0 0.0
    %5329 = vmatpush1.msra.mxu0 0.0
    %5330 = vmatprep.subr.mxu0 0.0
    %5331 = vmatpush1.msra.mxu0 0.0
    %5332 = vmatprep.subr.mxu0 0.0
    %5333 = vmatpush1.msra.mxu0 0.0
    %5334 = vmatprep.subr.mxu0 0.0
    %5335 = vmatpush1.msra.mxu0 0.0
    %5336 = vmatprep.subr.mxu0 0.0
    %5337 = vmatpush1.msra.mxu0 0.0
    %5338 = vmatprep.subr.mxu0 0.0
    %5339 = vmatpush1.msra.mxu0 0.0
    %5340 = vmatprep.mubr.f32.mxu0 %v5203
    %5341 = vmatmul.mubr.f32.gmra.mrb[0].mxu0 %v5087
    %v5342 = vpop.f32.mrb[0].mxu0
    %v5343 = vadd.f32 %v5272, %v5342
    %v5344 = vpop.f32.mrb[0].mxu0
    %v5345 = vadd.f32 %v5274, %v5344
    %5346 = vdwg.mxu0
    %v5347 = vmax.f32 %v5343, 0.0
    %v5348 = vmax.f32 %v5345, 0.0
    %v5349 = vld [vmem:[%s19] sm:$0xff]
    %v5350 = vld [vmem:[%s19 + $0x8] sm:$0xff]
    %v5351 = vld [vmem:[%s19 + $0x10] sm:$0xff]
    %v5352 = vld [vmem:[%s19 + $0x18] sm:$0xff]
    %v5353 = vld [vmem:[%s19 + $0x20] sm:$0xff]
    %v5354 = vld [vmem:[%s19 + $0x28] sm:$0xff]
    %v5355 = vld [vmem:[%s19 + $0x30] sm:$0xff]
    %v5356 = vld [vmem:[%s19 + $0x38] sm:$0xff]
    %v5357 = vld [vmem:[%s19 + $0x40] sm:$0xff]
    %v5358 = vld [vmem:[%s19 + $0x48] sm:$0xff]
    %v5359 = vld [vmem:[%s19 + $0x50] sm:$0xff]
    %v5360 = vld [vmem:[%s19 + $0x58] sm:$0xff]
    %v5361 = vld [vmem:[%s19 + $0x60] sm:$0xff]
    %v5362 = vld [vmem:[%s19 + $0x68] sm:$0xff]
    %v5363 = vld [vmem:[%s19 + $0x70] sm:$0xff]
    %v5364 = vld [vmem:[%s19 + $0x78] sm:$0xff]
    %v5365 = vld [vmem:[%s19 + $0x80] sm:$0xff]
    %v5366 = vld [vmem:[%s19 + $0x88] sm:$0xff]
    %v5367 = vld [vmem:[%s19 + $0x90] sm:$0xff]
    %v5368 = vld [vmem:[%s19 + $0x98] sm:$0xff]
    %v5369 = vld [vmem:[%s19 + $0xa0] sm:$0xff]
    %v5370 = vld [vmem:[%s19 + $0xa8] sm:$0xff]
    %v5371 = vld [vmem:[%s19 + $0xb0] sm:$0xff]
    %v5372 = vld [vmem:[%s19 + $0xb8] sm:$0xff]
    %v5373 = vld [vmem:[%s19 + $0xc0] sm:$0xff]
    %v5374 = vld [vmem:[%s20] sm:$0x1]
    %v5376 = vlaneseq
    %v5377 = vshrl.u32 %v5376, 7
    %v5378 = vsub.s32 0, %v5377
    %v5379 = vrot.slane %v5374, %v5378
    %vm5381 = vcmask 588800
    %v5383 = vsel %vm5381, %v5348, 0
    %5385 = vmatprep.subr.mxu0 0.0
    %5386 = vmatpush1.msra.mxu0 %v5349
    %5387 = vmatprep.subr.mxu0 0.0
    %5388 = vmatpush1.msra.mxu0 %v5350
    %5389 = vmatprep.subr.mxu0 0.0
    %5390 = vmatpush1.msra.mxu0 %v5351
    %5391 = vmatprep.subr.mxu0 0.0
    %5392 = vmatpush1.msra.mxu0 %v5352
    %5393 = vmatprep.subr.mxu0 0.0
    %5394 = vmatpush1.msra.mxu0 %v5353
    %5395 = vmatprep.subr.mxu0 0.0
    %5396 = vmatpush1.msra.mxu0 %v5354
    %5397 = vmatprep.subr.mxu0 0.0
    %5398 = vmatpush1.msra.mxu0 %v5355
    %5399 = vmatprep.subr.mxu0 0.0
    %5400 = vmatpush1.msra.mxu0 %v5356
    %5401 = vmatprep.subr.mxu0 0.0
    %5402 = vmatpush1.msra.mxu0 %v5357
    %5403 = vmatprep.subr.mxu0 0.0
    %5404 = vmatpush1.msra.mxu0 %v5358
    %5405 = vmatprep.subr.mxu0 0.0
    %5406 = vmatpush1.msra.mxu0 %v5359
    %5407 = vmatprep.subr.mxu0 0.0
    %5408 = vmatpush1.msra.mxu0 %v5360
    %5409 = vmatprep.subr.mxu0 0.0
    %5410 = vmatpush1.msra.mxu0 %v5361
    %5411 = vmatprep.subr.mxu0 0.0
    %5412 = vmatpush1.msra.mxu0 %v5362
    %5413 = vmatprep.subr.mxu0 0.0
    %5414 = vmatpush1.msra.mxu0 %v5363
    %5415 = vmatprep.subr.mxu0 0.0
    %5416 = vmatpush1.msra.mxu0 %v5364
    %5417 = vmatprep.subr.mxu0 0.0
    %5418 = vmatpush1.msra.mxu0 %v5365
    %5419 = vmatprep.subr.mxu0 0.0
    %5420 = vmatpush1.msra.mxu0 %v5366
    %5421 = vmatprep.subr.mxu0 0.0
    %5422 = vmatpush1.msra.mxu0 %v5367
    %5423 = vmatprep.subr.mxu0 0.0
    %5424 = vmatpush1.msra.mxu0 %v5368
    %5425 = vmatprep.subr.mxu0 0.0
    %5426 = vmatpush1.msra.mxu0 %v5369
    %5427 = vmatprep.subr.mxu0 0.0
    %5428 = vmatpush1.msra.mxu0 %v5370
    %5429 = vmatprep.subr.mxu0 0.0
    %5430 = vmatpush1.msra.mxu0 %v5371
    %5431 = vmatprep.subr.mxu0 0.0
    %5432 = vmatpush1.msra.mxu0 %v5372
    %5433 = vmatprep.subr.mxu0 0.0
    %5434 = vmatpush1.msra.mxu0 %v5373
    %5435 = vmatprep.subr.mxu0 0.0
    %5436 = vmatpush1.msra.mxu0 0.0
    %5437 = vmatprep.subr.mxu0 0.0
    %5438 = vmatpush1.msra.mxu0 0.0
    %5439 = vmatprep.subr.mxu0 0.0
    %5440 = vmatpush1.msra.mxu0 0.0
    %5441 = vmatprep.subr.mxu0 0.0
    %5442 = vmatpush1.msra.mxu0 0.0
    %5443 = vmatprep.subr.mxu0 0.0
    %5444 = vmatpush1.msra.mxu0 0.0
    %5445 = vmatprep.subr.mxu0 0.0
    %5446 = vmatpush1.msra.mxu0 0.0
    %5447 = vmatprep.subr.mxu0 0.0
    %5448 = vmatpush1.msra.mxu0 0.0
    %5449 = vmatprep.mubr.f32.mxu0 %v5383
    %5450 = vmatmul.mubr.f32.gmra.mrb[0].mxu0 %v5347
    %v5451 = vpop.f32.mrb[0].mxu0
    %v5452 = vadd.f32 %v5379, %v5451
    %v5453 = vpop.f32.mrb[0].mxu0
    %5454 = vdwg.mxu0
    %5455 = vst [vmem:[#allocation4] sm:$0xff] %v5452
    // Predicated region
    $region86: #{tpu_custom_call.1} parent=1 // pred_check
      _
    $region87: #{tpu_custom_call.1} parent=1 // pred_check_branch
      %5457 = sbr.rel (0) target = $region89
    $region88: #{tpu_custom_call.1} parent=1 // pred_region
      %s5459 = ssub.s32 128, 128
      %5460 = vsyncadd [#allocation5], %s5459
      %s5462 = sshll.u32 [#allocation4], 4
      %s5463 = int_to_ptr.vmem [resolvable:$true] %s5462
      %5465 = dma.vmem_to_hbm [thread:$0]  %s5463, 128, %s21, [#allocation5]
    $region89: #{tpu_custom_call.1} parent=1 // pred_fallthru
      _
    // Predicated region
    $region90: #{tpu_custom_call.1} parent=1 // pred_check
      _
    $region91: #{tpu_custom_call.1} parent=1 // pred_check_branch
      %5467 = sbr.rel (0) target = $region93
    $region92: #{tpu_custom_call.1} parent=1 // pred_region
      %5468 = dma.done [#allocation5], 128
    $region93: #{tpu_custom_call.1} parent=1 // pred_fallthru
      _
    %5469 = vsyncpa [#allocation5], 1

</llo_original>
